<compile_context>
chip_gen: v5e
topology: v5e:2x2
jax: 0.10.0
libtpu: 0.0.40
codegen_flags: <defaults>
</compile_context>

<pallas_src>
import functools

import jax
import jax.numpy as jnp
from jax.experimental import pallas as pl
from jax.experimental.pallas import tpu as pltpu

HIDDEN_LAYERS = 6
NEURONS = 50
IN_DIM = 2
OUT_DIM = 3
OUT_PAD = 8          # output rows padded to a sublane multiple for unmasked stores
_LANE = 128


def pinn_mlp_kernel(x_ref, w0_ref, b0_ref, wh_ref, bh_ref, wo_ref, bo_ref, o_ref):
    """Fused MLP forward for one tile of batch columns (feature-major layout).

    x_ref : (IN_DIM, TN)              -- batch on the lane axis
    w0_ref: (NEURONS, IN_DIM)          b0_ref: (NEURONS, 1)
    wh_ref: (HIDDEN_LAYERS, NEURONS, NEURONS)
    bh_ref: (HIDDEN_LAYERS, NEURONS, 1)
    wo_ref: (OUT_PAD, NEURONS)         bo_ref: (OUT_PAD, 1)
    o_ref : (OUT_PAD, TN)
    """
    x = x_ref[...]
    w0 = w0_ref[...]

    # Input layer: K=2 contraction done on the VPU (broadcast FMAs), not the MXU.
    h = jnp.tanh(w0[:, 0:1] * x[0:1, :] + w0[:, 1:2] * x[1:2, :] + b0_ref[...])

    # Hidden layers (statically unrolled; each layer depends on the previous).
    for l in range(HIDDEN_LAYERS):
        h = jnp.tanh(
            jnp.dot(wh_ref[l], h, preferred_element_type=jnp.float32) + bh_ref[l]
        )

    # Output layer (no activation). OUT_PAD = 8 rows -> unmasked, lane-dense store.
    o_ref[...] = (
        jnp.dot(wo_ref[...], h, preferred_element_type=jnp.float32) + bo_ref[...]
    ).astype(o_ref.dtype)


def _choose_tiling(n, max_tile_n):
    """Pick (tile_n, n_blocks, n_pad): 128-multiple tiles adapted to the batch,
    with an even block count (>= 2) whenever the batch needs more than one tile
    so v7x's two TensorCores stay balanced."""
    n_lane = -(-n // _LANE) * _LANE
    max_tile_n = max(_LANE, (max_tile_n // _LANE) * _LANE)
    n_blocks = -(-n_lane // max_tile_n)
    if n_blocks > 1 and n_blocks % 2 == 1:
        n_blocks += 1
    tile_n = -(-n_lane // n_blocks)
    tile_n = -(-tile_n // _LANE) * _LANE
    n_pad = tile_n * n_blocks
    return tile_n, n_blocks, n_pad


def _const_spec(shape):
    """BlockSpec for a grid-invariant (weight/bias) operand: constant index_map,
    single-buffered when the running JAX supports pipeline_mode."""
    rank = len(shape)

    def index_map(i):
        return (0,) * rank

    if hasattr(pl, "Buffered"):
        return pl.BlockSpec(shape, index_map, pipeline_mode=pl.Buffered(1))
    return pl.BlockSpec(shape, index_map)


@functools.partial(jax.jit, static_argnames=("max_tile_n",))
def pinn_forward_t(x_t, params, *, max_tile_n=2048):
    """Feature-major interface: x_t (IN_DIM, N) float32 -> (OUT_DIM, N) float32.

    Preferred entry point for PINN training loops (no transposes around the
    kernel)."""
    w0, b0, wh, bh, wo, bo = params
    n = x_t.shape[1]
    tile_n, n_blocks, n_pad = _choose_tiling(n, max_tile_n)

    # Pad the batch to a tile multiple (zero columns are inert, sliced off below).
    x_p = x_t if n_pad == n else jnp.pad(x_t, ((0, 0), (0, n_pad - n)))
    # Pad the output layer to 8 rows (zeros) so the kernel store is unmasked.
    wo_p = jnp.pad(wo, ((0, OUT_PAD - OUT_DIM), (0, 0)))
    bo_p = jnp.pad(bo, ((0, OUT_PAD - OUT_DIM), (0, 0)))

    in_specs = [
        pl.BlockSpec((IN_DIM, tile_n), lambda i: (0, i)),        # x: tiled over batch
        _const_spec((NEURONS, IN_DIM)),                          # w0
        _const_spec((NEURONS, 1)),                               # b0
        _const_spec((HIDDEN_LAYERS, NEURONS, NEURONS)),          # wh
        _const_spec((HIDDEN_LAYERS, NEURONS, 1)),                # bh
        _const_spec((OUT_PAD, NEURONS)),                         # wo (padded)
        _const_spec((OUT_PAD, 1)),                               # bo (padded)
    ]
    out_spec = pl.BlockSpec((OUT_PAD, tile_n), lambda i: (0, i))

    # Scheduler hint for XLA (forward pass only).
    flops = 2 * n_pad * (IN_DIM * NEURONS
                         + HIDDEN_LAYERS * NEURONS * NEURONS
                         + NEURONS * OUT_PAD)
    transcendentals = n_pad * NEURONS * (HIDDEN_LAYERS + 1)
    weight_bytes = 4 * (NEURONS * IN_DIM + NEURONS
                        + HIDDEN_LAYERS * (NEURONS * NEURONS + NEURONS)
                        + OUT_PAD * NEURONS + OUT_PAD)
    bytes_accessed = 4 * n_pad * (IN_DIM + OUT_PAD) + weight_bytes

    out_p = pl.pallas_call(
        pinn_mlp_kernel,
        out_shape=jax.ShapeDtypeStruct((OUT_PAD, n_pad), jnp.float32),
        grid_spec=pltpu.PrefetchScalarGridSpec(
            num_scalar_prefetch=0,
            grid=(n_blocks,),
            in_specs=in_specs,
            out_specs=out_spec,
        ),
        compiler_params=pltpu.CompilerParams(
            dimension_semantics=("parallel",),
        ),
        cost_estimate=pl.CostEstimate(
            flops=flops,
            transcendentals=transcendentals,
            bytes_accessed=bytes_accessed,
        ),
    )(x_p, w0, b0, wh, bh, wo_p, bo_p)

    return out_p[:OUT_DIM, :n]


@functools.partial(jax.jit, static_argnames=("max_tile_n",))
def pinn_forward(x, params, *, max_tile_n=2048):
    """Torch-compatible interface: x (N, 2) float32 -> (N, 3) float32."""
    return pinn_forward_t(x.T, params, max_tile_n=max_tile_n).T


def init_params(key):
    """Deterministic init mimicking torch.nn.Linear default
    (U[-1/sqrt(fan_in), 1/sqrt(fan_in)]). Weights stored torch-style
    as (out_features, in_features); biases as (out_features, 1)."""
    keys = jax.random.split(key, 6)

    def uniform(k, shape, fan_in):
        bound = 1.0 / jnp.sqrt(jnp.float32(fan_in))
        return jax.random.uniform(k, shape, jnp.float32, -bound, bound)

    w0 = uniform(keys[0], (NEURONS, IN_DIM), IN_DIM)
    b0 = uniform(keys[1], (NEURONS, 1), IN_DIM)
    wh = uniform(keys[2], (HIDDEN_LAYERS, NEURONS, NEURONS), NEURONS)
    bh = uniform(keys[3], (HIDDEN_LAYERS, NEURONS, 1), NEURONS)
    wo = uniform(keys[4], (OUT_DIM, NEURONS), NEURONS)
    bo = uniform(keys[5], (OUT_DIM, 1), NEURONS)
    return (w0, b0, wh, bh, wo, bo)


def pinn_forward_ref(x, params):
    """Pure-JAX reference (batch-major, like torch) for correctness checking."""
    w0, b0, wh, bh, wo, bo = params
    h = jnp.tanh(x @ w0.T + b0.T)
    for l in range(HIDDEN_LAYERS):
        h = jnp.tanh(h @ wh[l].T + bh[l].T)
    return h @ wo.T + bo.T


if __name__ == "__main__":
    key = jax.random.PRNGKey(0)
    pkey, xkey, xkey2 = jax.random.split(key, 3)

    params = init_params(pkey)

    # (x, y) collocation points: 8192 rows -> 4 blocks of 2048 columns
    # (even block count -> both v7x TensorCores busy; few fat steps everywhere).
    n = 8192
    x = jax.random.uniform(xkey, (n, IN_DIM), jnp.float32, -1.0, 1.0)

    out = jax.block_until_ready(pinn_forward(x, params))
    ref = pinn_forward_ref(x, params)
    assert out.shape == (n, OUT_DIM)
    assert jnp.allclose(out, ref, atol=1e-5, rtol=1e-5), "mismatch vs reference"

    # feature-major entry point (no wrapper transposes) gives the same answer
    out_fm = jax.block_until_ready(pinn_forward_t(x.T, params))
    assert out_fm.shape == (OUT_DIM, n)
    assert jnp.allclose(out_fm.T, ref, atol=1e-5, rtol=1e-5), "mismatch (feature-major)"

    # ragged / small batch: adaptive tiling gives one 256-wide block, not 2048
    n2 = 200
    x2 = jax.random.uniform(xkey2, (n2, IN_DIM), jnp.float32, -1.0, 1.0)
    out2 = jax.block_until_ready(pinn_forward(x2, params))
    ref2 = pinn_forward_ref(x2, params)
    assert out2.shape == (n2, OUT_DIM)
    assert jnp.allclose(out2, ref2, atol=1e-5, rtol=1e-5), "mismatch vs reference (ragged)"

    print("KERNEL_OK")
</pallas_src>

<mosaic_0001>
module attributes {stable_mosaic.version = 11 : i64} {
  func.func @pinn_mlp_kernel(%arg0: i32, %arg1: memref<2x2048xf32, #tpu.memory_space<vmem>>, %arg2: memref<50x2xf32, #tpu.memory_space<vmem>>, %arg3: memref<50x1xf32, #tpu.memory_space<vmem>>, %arg4: memref<6x50x50xf32, #tpu.memory_space<vmem>>, %arg5: memref<6x50x1xf32, #tpu.memory_space<vmem>>, %arg6: memref<8x50xf32, #tpu.memory_space<vmem>>, %arg7: memref<8x1xf32, #tpu.memory_space<vmem>>, %arg8: memref<8x2048xf32, #tpu.memory_space<vmem>>) attributes {dimension_semantics = [#tpu.dimension_semantics<parallel>], iteration_bounds = array<i64: 4>, scalar_prefetch = 0 : i64, scratch_operands = 0 : i64, tpu.core_type = #tpu.core_type<tc>, window_params = [{transform_indices = @transform_0, window_bounds = array<i64: 2, 2048>}, {pipeline_mode = #tpu.pipeline_mode<synchronous>, transform_indices = @transform_1, window_bounds = array<i64: 50, 2>}, {pipeline_mode = #tpu.pipeline_mode<synchronous>, transform_indices = @transform_2, window_bounds = array<i64: 50, 1>}, {pipeline_mode = #tpu.pipeline_mode<synchronous>, transform_indices = @transform_3, window_bounds = array<i64: 6, 50, 50>}, {pipeline_mode = #tpu.pipeline_mode<synchronous>, transform_indices = @transform_4, window_bounds = array<i64: 6, 50, 1>}, {pipeline_mode = #tpu.pipeline_mode<synchronous>, transform_indices = @transform_5, window_bounds = array<i64: 8, 50>}, {pipeline_mode = #tpu.pipeline_mode<synchronous>, transform_indices = @transform_6, window_bounds = array<i64: 8, 1>}, {transform_indices = @transform_7, window_bounds = array<i64: 8, 2048>}]} {
    %c0 = arith.constant 0 : index
    %c0_0 = arith.constant 0 : index
    %0 = vector.load %arg1[%c0, %c0_0] : memref<2x2048xf32, #tpu.memory_space<vmem>>, vector<2x2048xf32>
    %c0_1 = arith.constant 0 : index
    %c0_2 = arith.constant 0 : index
    %1 = vector.load %arg2[%c0_1, %c0_2] : memref<50x2xf32, #tpu.memory_space<vmem>>, vector<50x2xf32>
    %2 = vector.extract_strided_slice %1 {offsets = [0, 0], sizes = [50, 1], strides = [1, 1]} : vector<50x2xf32> to vector<50x1xf32>
    %3 = vector.extract_strided_slice %0 {offsets = [0, 0], sizes = [1, 2048], strides = [1, 1]} : vector<2x2048xf32> to vector<1x2048xf32>
    %4 = vector.broadcast %2 : vector<50x1xf32> to vector<50x2048xf32>
    %5 = vector.broadcast %3 : vector<1x2048xf32> to vector<50x2048xf32>
    %6 = arith.mulf %4, %5 : vector<50x2048xf32>
    %7 = vector.extract_strided_slice %1 {offsets = [0, 1], sizes = [50, 1], strides = [1, 1]} : vector<50x2xf32> to vector<50x1xf32>
    %8 = vector.extract_strided_slice %0 {offsets = [1, 0], sizes = [1, 2048], strides = [1, 1]} : vector<2x2048xf32> to vector<1x2048xf32>
    %9 = vector.broadcast %7 : vector<50x1xf32> to vector<50x2048xf32>
    %10 = vector.broadcast %8 : vector<1x2048xf32> to vector<50x2048xf32>
    %11 = arith.mulf %9, %10 : vector<50x2048xf32>
    %12 = arith.addf %6, %11 : vector<50x2048xf32>
    %c0_3 = arith.constant 0 : index
    %c0_4 = arith.constant 0 : index
    %13 = vector.load %arg3[%c0_3, %c0_4] : memref<50x1xf32, #tpu.memory_space<vmem>>, vector<50x1xf32>
    %14 = vector.broadcast %13 : vector<50x1xf32> to vector<50x2048xf32>
    %15 = arith.addf %12, %14 : vector<50x2048xf32>
    %16 = math.tanh %15 : vector<50x2048xf32>
    %c0_5 = arith.constant 0 : index
    %c0_6 = arith.constant 0 : index
    %c0_7 = arith.constant 0 : index
    %17 = vector.load %arg4[%c0_5, %c0_6, %c0_7] : memref<6x50x50xf32, #tpu.memory_space<vmem>>, vector<1x50x50xf32>
    %18 = vector.shape_cast %17 : vector<1x50x50xf32> to vector<50x50xf32>
    %cst = arith.constant dense<0.000000e+00> : vector<50x2048xf32>
    %19 = tpu.matmul %18, %16, %cst {dimension_numbers = #tpu.dot_dimension_numbers<[1], [0], [0], [1], [0, 0, 1, 1], [], []>} : vector<50x50xf32>, vector<50x2048xf32>, vector<50x2048xf32> -> vector<50x2048xf32>
    %c0_8 = arith.constant 0 : index
    %c0_9 = arith.constant 0 : index
    %c0_10 = arith.constant 0 : index
    %20 = vector.load %arg5[%c0_8, %c0_9, %c0_10] : memref<6x50x1xf32, #tpu.memory_space<vmem>>, vector<1x50x1xf32>
    %21 = vector.shape_cast %20 : vector<1x50x1xf32> to vector<50x1xf32>
    %22 = vector.broadcast %21 : vector<50x1xf32> to vector<50x2048xf32>
    %23 = arith.addf %19, %22 : vector<50x2048xf32>
    %24 = math.tanh %23 : vector<50x2048xf32>
    %c1 = arith.constant 1 : index
    %c0_11 = arith.constant 0 : index
    %c0_12 = arith.constant 0 : index
    %25 = vector.load %arg4[%c1, %c0_11, %c0_12] : memref<6x50x50xf32, #tpu.memory_space<vmem>>, vector<1x50x50xf32>
    %26 = vector.shape_cast %25 : vector<1x50x50xf32> to vector<50x50xf32>
    %cst_13 = arith.constant dense<0.000000e+00> : vector<50x2048xf32>
    %27 = tpu.matmul %26, %24, %cst_13 {dimension_numbers = #tpu.dot_dimension_numbers<[1], [0], [0], [1], [0, 0, 1, 1], [], []>} : vector<50x50xf32>, vector<50x2048xf32>, vector<50x2048xf32> -> vector<50x2048xf32>
    %c1_14 = arith.constant 1 : index
    %c0_15 = arith.constant 0 : index
    %c0_16 = arith.constant 0 : index
    %28 = vector.load %arg5[%c1_14, %c0_15, %c0_16] : memref<6x50x1xf32, #tpu.memory_space<vmem>>, vector<1x50x1xf32>
    %29 = vector.shape_cast %28 : vector<1x50x1xf32> to vector<50x1xf32>
    %30 = vector.broadcast %29 : vector<50x1xf32> to vector<50x2048xf32>
    %31 = arith.addf %27, %30 : vector<50x2048xf32>
    %32 = math.tanh %31 : vector<50x2048xf32>
    %c2 = arith.constant 2 : index
    %c0_17 = arith.constant 0 : index
    %c0_18 = arith.constant 0 : index
    %33 = vector.load %arg4[%c2, %c0_17, %c0_18] : memref<6x50x50xf32, #tpu.memory_space<vmem>>, vector<1x50x50xf32>
    %34 = vector.shape_cast %33 : vector<1x50x50xf32> to vector<50x50xf32>
    %cst_19 = arith.constant dense<0.000000e+00> : vector<50x2048xf32>
    %35 = tpu.matmul %34, %32, %cst_19 {dimension_numbers = #tpu.dot_dimension_numbers<[1], [0], [0], [1], [0, 0, 1, 1], [], []>} : vector<50x50xf32>, vector<50x2048xf32>, vector<50x2048xf32> -> vector<50x2048xf32>
    %c2_20 = arith.constant 2 : index
    %c0_21 = arith.constant 0 : index
    %c0_22 = arith.constant 0 : index
    %36 = vector.load %arg5[%c2_20, %c0_21, %c0_22] : memref<6x50x1xf32, #tpu.memory_space<vmem>>, vector<1x50x1xf32>
    %37 = vector.shape_cast %36 : vector<1x50x1xf32> to vector<50x1xf32>
    %38 = vector.broadcast %37 : vector<50x1xf32> to vector<50x2048xf32>
    %39 = arith.addf %35, %38 : vector<50x2048xf32>
    %40 = math.tanh %39 : vector<50x2048xf32>
    %c3 = arith.constant 3 : index
    %c0_23 = arith.constant 0 : index
    %c0_24 = arith.constant 0 : index
    %41 = vector.load %arg4[%c3, %c0_23, %c0_24] : memref<6x50x50xf32, #tpu.memory_space<vmem>>, vector<1x50x50xf32>
    %42 = vector.shape_cast %41 : vector<1x50x50xf32> to vector<50x50xf32>
    %cst_25 = arith.constant dense<0.000000e+00> : vector<50x2048xf32>
    %43 = tpu.matmul %42, %40, %cst_25 {dimension_numbers = #tpu.dot_dimension_numbers<[1], [0], [0], [1], [0, 0, 1, 1], [], []>} : vector<50x50xf32>, vector<50x2048xf32>, vector<50x2048xf32> -> vector<50x2048xf32>
    %c3_26 = arith.constant 3 : index
    %c0_27 = arith.constant 0 : index
    %c0_28 = arith.constant 0 : index
    %44 = vector.load %arg5[%c3_26, %c0_27, %c0_28] : memref<6x50x1xf32, #tpu.memory_space<vmem>>, vector<1x50x1xf32>
    %45 = vector.shape_cast %44 : vector<1x50x1xf32> to vector<50x1xf32>
    %46 = vector.broadcast %45 : vector<50x1xf32> to vector<50x2048xf32>
    %47 = arith.addf %43, %46 : vector<50x2048xf32>
    %48 = math.tanh %47 : vector<50x2048xf32>
    %c4 = arith.constant 4 : index
    %c0_29 = arith.constant 0 : index
    %c0_30 = arith.constant 0 : index
    %49 = vector.load %arg4[%c4, %c0_29, %c0_30] : memref<6x50x50xf32, #tpu.memory_space<vmem>>, vector<1x50x50xf32>
    %50 = vector.shape_cast %49 : vector<1x50x50xf32> to vector<50x50xf32>
    %cst_31 = arith.constant dense<0.000000e+00> : vector<50x2048xf32>
    %51 = tpu.matmul %50, %48, %cst_31 {dimension_numbers = #tpu.dot_dimension_numbers<[1], [0], [0], [1], [0, 0, 1, 1], [], []>} : vector<50x50xf32>, vector<50x2048xf32>, vector<50x2048xf32> -> vector<50x2048xf32>
    %c4_32 = arith.constant 4 : index
    %c0_33 = arith.constant 0 : index
    %c0_34 = arith.constant 0 : index
    %52 = vector.load %arg5[%c4_32, %c0_33, %c0_34] : memref<6x50x1xf32, #tpu.memory_space<vmem>>, vector<1x50x1xf32>
    %53 = vector.shape_cast %52 : vector<1x50x1xf32> to vector<50x1xf32>
    %54 = vector.broadcast %53 : vector<50x1xf32> to vector<50x2048xf32>
    %55 = arith.addf %51, %54 : vector<50x2048xf32>
    %56 = math.tanh %55 : vector<50x2048xf32>
    %c5 = arith.constant 5 : index
    %c0_35 = arith.constant 0 : index
    %c0_36 = arith.constant 0 : index
    %57 = vector.load %arg4[%c5, %c0_35, %c0_36] : memref<6x50x50xf32, #tpu.memory_space<vmem>>, vector<1x50x50xf32>
    %58 = vector.shape_cast %57 : vector<1x50x50xf32> to vector<50x50xf32>
    %cst_37 = arith.constant dense<0.000000e+00> : vector<50x2048xf32>
    %59 = tpu.matmul %58, %56, %cst_37 {dimension_numbers = #tpu.dot_dimension_numbers<[1], [0], [0], [1], [0, 0, 1, 1], [], []>} : vector<50x50xf32>, vector<50x2048xf32>, vector<50x2048xf32> -> vector<50x2048xf32>
    %c5_38 = arith.constant 5 : index
    %c0_39 = arith.constant 0 : index
    %c0_40 = arith.constant 0 : index
    %60 = vector.load %arg5[%c5_38, %c0_39, %c0_40] : memref<6x50x1xf32, #tpu.memory_space<vmem>>, vector<1x50x1xf32>
    %61 = vector.shape_cast %60 : vector<1x50x1xf32> to vector<50x1xf32>
    %62 = vector.broadcast %61 : vector<50x1xf32> to vector<50x2048xf32>
    %63 = arith.addf %59, %62 : vector<50x2048xf32>
    %64 = math.tanh %63 : vector<50x2048xf32>
    %c0_41 = arith.constant 0 : index
    %c0_42 = arith.constant 0 : index
    %65 = vector.load %arg6[%c0_41, %c0_42] : memref<8x50xf32, #tpu.memory_space<vmem>>, vector<8x50xf32>
    %cst_43 = arith.constant dense<0.000000e+00> : vector<8x2048xf32>
    %66 = tpu.matmul %65, %64, %cst_43 {dimension_numbers = #tpu.dot_dimension_numbers<[1], [0], [0], [1], [0, 0, 1, 1], [], []>} : vector<8x50xf32>, vector<50x2048xf32>, vector<8x2048xf32> -> vector<8x2048xf32>
    %c0_44 = arith.constant 0 : index
    %c0_45 = arith.constant 0 : index
    %67 = vector.load %arg7[%c0_44, %c0_45] : memref<8x1xf32, #tpu.memory_space<vmem>>, vector<8x1xf32>
    %68 = vector.broadcast %67 : vector<8x1xf32> to vector<8x2048xf32>
    %69 = arith.addf %66, %68 : vector<8x2048xf32>
    %c0_46 = arith.constant 0 : index
    %c0_47 = arith.constant 0 : index
    %70 = vector.load %arg8[%c0_46, %c0_47] : memref<8x2048xf32, #tpu.memory_space<vmem>>, vector<8x2048xf32>
    tpu.vector_store %arg8[%c0_46, %c0_47], %69 {strides = array<i32>} : memref<8x2048xf32, #tpu.memory_space<vmem>>, vector<8x2048xf32>,
    return
  }
  func.func @transform_0(%arg0: i32) -> (i32, i32) {
    %c0_i32 = arith.constant 0 : i32
    %c0_i32_0 = arith.constant 0 : i32
    return %c0_i32, %arg0 : i32, i32
  }
  func.func @transform_1(%arg0: i32) -> (i32, i32) {
    %c0_i32 = arith.constant 0 : i32
    %c0_i32_0 = arith.constant 0 : i32
    %c0_i32_1 = arith.constant 0 : i32
    return %c0_i32, %c0_i32_0 : i32, i32
  }
  func.func @transform_2(%arg0: i32) -> (i32, i32) {
    %c0_i32 = arith.constant 0 : i32
    %c0_i32_0 = arith.constant 0 : i32
    %c0_i32_1 = arith.constant 0 : i32
    return %c0_i32, %c0_i32_0 : i32, i32
  }
  func.func @transform_3(%arg0: i32) -> (i32, i32, i32) {
    %c0_i32 = arith.constant 0 : i32
    %c0_i32_0 = arith.constant 0 : i32
    %c0_i32_1 = arith.constant 0 : i32
    %c0_i32_2 = arith.constant 0 : i32
    return %c0_i32, %c0_i32_0, %c0_i32_1 : i32, i32, i32
  }
  func.func @transform_4(%arg0: i32) -> (i32, i32, i32) {
    %c0_i32 = arith.constant 0 : i32
    %c0_i32_0 = arith.constant 0 : i32
    %c0_i32_1 = arith.constant 0 : i32
    %c0_i32_2 = arith.constant 0 : i32
    return %c0_i32, %c0_i32_0, %c0_i32_1 : i32, i32, i32
  }
  func.func @transform_5(%arg0: i32) -> (i32, i32) {
    %c0_i32 = arith.constant 0 : i32
    %c0_i32_0 = arith.constant 0 : i32
    %c0_i32_1 = arith.constant 0 : i32
    return %c0_i32, %c0_i32_0 : i32, i32
  }
  func.func @transform_6(%arg0: i32) -> (i32, i32) {
    %c0_i32 = arith.constant 0 : i32
    %c0_i32_0 = arith.constant 0 : i32
    %c0_i32_1 = arith.constant 0 : i32
    return %c0_i32, %c0_i32_0 : i32, i32
  }
  func.func @transform_7(%arg0: i32) -> (i32, i32) {
    %c0_i32 = arith.constant 0 : i32
    %c0_i32_0 = arith.constant 0 : i32
    return %c0_i32, %arg0 : i32, i32
  }
}

</mosaic_0001>

<llo_original>
// kernel: pinn_forward_t.1
$region0: #{pinn_forward_t.1}
  #allocation0 [shape = 'u32[]', space=smem, size = 0x4, offset = 0x4, fixed_abs, tag = 'smem constant byte address 0x4 - core index']
  #allocation1 [shape = 'u32[72,128]{1,0:T(1,128)}', space=vmem, size = 0x9000, scoped, tag = 'internal scratch']
  %s0 = inlined_call_operand.hbm [shape: f32[2,8192], index: 0, kind: input, shape index: {}]
  %s1 = inlined_call_operand.vmem [shape: f32[50,2], index: 1, kind: input, shape index: {}]
  %s2 = inlined_call_operand.vmem [shape: f32[50,1], index: 2, kind: input, shape index: {}]
  %s3 = inlined_call_operand.vmem [shape: f32[6,50,50], index: 3, kind: input, shape index: {}]
  %s4 = inlined_call_operand.vmem [shape: f32[6,50,1], index: 4, kind: input, shape index: {}]
  %s5 = inlined_call_operand.vmem [shape: f32[8,50], index: 5, kind: input, shape index: {}]
  %s6 = inlined_call_operand.vmem [shape: f32[8,1], index: 6, kind: input, shape index: {}]
  %s7 = inlined_call_operand.vmem [shape: f32[8,8192], index: 7, kind: output, shape index: {}]
  %s8 = sld [smem:[#allocation0]]
  $region65: #{pinn_forward_t.1} parent=0
    _
  %s10 = ssub.s32 1, %s8
  %s11 = scalar_select 0, %s10, %s8
  $region1: #{pinn_forward_t.1} parent=0
    #allocation2 [shape = 'u8[32768]{0}', space=vmem, size = 0x8000, scoped, tag = 'input window, operand 0']
    #allocation3 [shape = 's32[2]{0}', space=sflag, size = 0x8, scoped, tag = 'scoped memory for pinn_forward_t.1']
    %12 = vsyncpa [#allocation3], 0
    %s13 = scalar_lea.sflag [#allocation3], 1
    %14 = vsyncpa %s13, 0
    loop: start=0, step=1, limit=6
    $region2: #{pinn_forward_t.1} parent=1 // loop_pre_header
      _
    $region3: #{pinn_forward_t.1} parent=1 // loop_header
      %s16 = sphi 0, %s20
      %p17 = scmp.ge.s32.totalorder %s16, 6
      %s26 = sphi 0, %s28
      %s29 = sphi 0, %s26
      %s30 = sphi 0, %s29
      %s46 = sphi 0, %s30
      %s50 = sphi 0, %s50
      %s52 = sphi 0, %s50
      %s53 = sphi 0, %s52
      %s67 = sphi 0, %s53
      %s71 = sphi 0, %s71
      %s73 = sphi 0, %s71
      %s74 = sphi 0, %s73
      %s88 = sphi 0, %s74
      %s92 = sphi 0, %s92
      %s94 = sphi 0, %s92
      %s95 = sphi 0, %s94
      %s109 = sphi 0, %s95
      %s113 = sphi 0, %s113
      %s115 = sphi 0, %s113
      %s116 = sphi 0, %s115
      %s130 = sphi 0, %s116
      %s134 = sphi 0, %s134
      %s136 = sphi 0, %s134
      %s137 = sphi 0, %s136
      %s151 = sphi 0, %s137
      %s155 = sphi 0, %s155
      %s157 = sphi 0, %s155
      %s158 = sphi 0, %s157
      %s172 = sphi 0, %s158
      %s178 = sphi 0, %s180
      %s181 = sphi 0, %s178
      %s182 = sphi 0, %s181
      %s198 = sphi 0, %s182
    $region4: #{pinn_forward_t.1} parent=1 // loop_header_branch
      %19 = sbr.rel (%p17) target = $region8
    $region5: #{pinn_forward_t.1} parent=1 // loop_body
      %s21 = ssub.s32 %s16, 1
      %s22 = ssub.s32 %s16, 2
      %s23 = sadd.s32 %s16, 1
      %s24 = ssub.s32 %s16, %s23
      %p25 = scmp.eq.s32.totalorder %s24, 0
      %s27 = sadd.s32 %s26, 1
      %s28 = scalar_select %p25, %s26, %s27
      %p31 = pneg %p25
      %p32 = scmp.eq.s32.totalorder %s16, 3
      %p33 = por %p31, %p32
      %p34 = scmp.ne.s32.totalorder %s26, %s29
      %p35 = scmp.eq.s32.totalorder %s16, 0
      %p36 = por %p34, %p35
      %p37 = scmp.ne.s32.totalorder %s26, %s29
      %p38 = scmp.eq.s32.totalorder %s21, 3
      %p39 = por %p37, %p38
      %p40 = scmp.ne.s32.totalorder %s29, %s30
      %p41 = scmp.eq.s32.totalorder %s21, 0
      %p42 = por %p40, %p41
      %p43 = scmp.ne.s32.totalorder %s29, %s30
      %p44 = scmp.eq.s32.totalorder %s22, 3
      %p45 = por %p43, %p44
      %p47 = scmp.ne.s32.totalorder %s30, %s46
      %p48 = scmp.eq.s32.totalorder %s22, 0
      %p49 = por %p47, %p48
      %s51 = sadd.s32 %s50, 1
      %p54 = scmp.eq.s32.totalorder %s16, 3
      %p55 = scmp.ne.s32.totalorder %s50, %s52
      %p56 = scmp.eq.s32.totalorder %s16, 0
      %p57 = por %p55, %p56
      %p58 = scmp.ne.s32.totalorder %s50, %s52
      %p59 = scmp.eq.s32.totalorder %s21, 3
      %p60 = por %p58, %p59
      %p61 = scmp.ne.s32.totalorder %s52, %s53
      %p62 = scmp.eq.s32.totalorder %s21, 0
      %p63 = por %p61, %p62
      %p64 = scmp.ne.s32.totalorder %s52, %s53
      %p65 = scmp.eq.s32.totalorder %s22, 3
      %p66 = por %p64, %p65
      %p68 = scmp.ne.s32.totalorder %s53, %s67
      %p69 = scmp.eq.s32.totalorder %s22, 0
      %p70 = por %p68, %p69
      %s72 = sadd.s32 %s71, 1
      %p75 = scmp.eq.s32.totalorder %s16, 3
      %p76 = scmp.ne.s32.totalorder %s71, %s73
      %p77 = scmp.eq.s32.totalorder %s16, 0
      %p78 = por %p76, %p77
      %p79 = scmp.ne.s32.totalorder %s71, %s73
      %p80 = scmp.eq.s32.totalorder %s21, 3
      %p81 = por %p79, %p80
      %p82 = scmp.ne.s32.totalorder %s73, %s74
      %p83 = scmp.eq.s32.totalorder %s21, 0
      %p84 = por %p82, %p83
      %p85 = scmp.ne.s32.totalorder %s73, %s74
      %p86 = scmp.eq.s32.totalorder %s22, 3
      %p87 = por %p85, %p86
      %p89 = scmp.ne.s32.totalorder %s74, %s88
      %p90 = scmp.eq.s32.totalorder %s22, 0
      %p91 = por %p89, %p90
      %s93 = sadd.s32 %s92, 1
      %p96 = scmp.eq.s32.totalorder %s16, 3
      %p97 = scmp.ne.s32.totalorder %s92, %s94
      %p98 = scmp.eq.s32.totalorder %s16, 0
      %p99 = por %p97, %p98
      %p100 = scmp.ne.s32.totalorder %s92, %s94
      %p101 = scmp.eq.s32.totalorder %s21, 3
      %p102 = por %p100, %p101
      %p103 = scmp.ne.s32.totalorder %s94, %s95
      %p104 = scmp.eq.s32.totalorder %s21, 0
      %p105 = por %p103, %p104
      %p106 = scmp.ne.s32.totalorder %s94, %s95
      %p107 = scmp.eq.s32.totalorder %s22, 3
      %p108 = por %p106, %p107
      %p110 = scmp.ne.s32.totalorder %s95, %s109
      %p111 = scmp.eq.s32.totalorder %s22, 0
      %p112 = por %p110, %p111
      %s114 = sadd.s32 %s113, 1
      %p117 = scmp.eq.s32.totalorder %s16, 3
      %p118 = scmp.ne.s32.totalorder %s113, %s115
      %p119 = scmp.eq.s32.totalorder %s16, 0
      %p120 = por %p118, %p119
      %p121 = scmp.ne.s32.totalorder %s113, %s115
      %p122 = scmp.eq.s32.totalorder %s21, 3
      %p123 = por %p121, %p122
      %p124 = scmp.ne.s32.totalorder %s115, %s116
      %p125 = scmp.eq.s32.totalorder %s21, 0
      %p126 = por %p124, %p125
      %p127 = scmp.ne.s32.totalorder %s115, %s116
      %p128 = scmp.eq.s32.totalorder %s22, 3
      %p129 = por %p127, %p128
      %p131 = scmp.ne.s32.totalorder %s116, %s130
      %p132 = scmp.eq.s32.totalorder %s22, 0
      %p133 = por %p131, %p132
      %s135 = sadd.s32 %s134, 1
      %p138 = scmp.eq.s32.totalorder %s16, 3
      %p139 = scmp.ne.s32.totalorder %s134, %s136
      %p140 = scmp.eq.s32.totalorder %s16, 0
      %p141 = por %p139, %p140
      %p142 = scmp.ne.s32.totalorder %s134, %s136
      %p143 = scmp.eq.s32.totalorder %s21, 3
      %p144 = por %p142, %p143
      %p145 = scmp.ne.s32.totalorder %s136, %s137
      %p146 = scmp.eq.s32.totalorder %s21, 0
      %p147 = por %p145, %p146
      %p148 = scmp.ne.s32.totalorder %s136, %s137
      %p149 = scmp.eq.s32.totalorder %s22, 3
      %p150 = por %p148, %p149
      %p152 = scmp.ne.s32.totalorder %s137, %s151
      %p153 = scmp.eq.s32.totalorder %s22, 0
      %p154 = por %p152, %p153
      %s156 = sadd.s32 %s155, 1
      %p159 = scmp.eq.s32.totalorder %s16, 3
      %p160 = scmp.ne.s32.totalorder %s155, %s157
      %p161 = scmp.eq.s32.totalorder %s16, 0
      %p162 = por %p160, %p161
      %p163 = scmp.ne.s32.totalorder %s155, %s157
      %p164 = scmp.eq.s32.totalorder %s21, 3
      %p165 = por %p163, %p164
      %p166 = scmp.ne.s32.totalorder %s157, %s158
      %p167 = scmp.eq.s32.totalorder %s21, 0
      %p168 = por %p166, %p167
      %p169 = scmp.ne.s32.totalorder %s157, %s158
      %p170 = scmp.eq.s32.totalorder %s22, 3
      %p171 = por %p169, %p170
      %p173 = scmp.ne.s32.totalorder %s158, %s172
      %p174 = scmp.eq.s32.totalorder %s22, 0
      %p175 = por %p173, %p174
      %s176 = ssub.s32 %s16, %s23
      %p177 = scmp.eq.s32.totalorder %s176, 0
      %s179 = sadd.s32 %s178, 1
      %s180 = scalar_select %p177, %s178, %s179
      %p183 = pneg %p177
      %p184 = scmp.eq.s32.totalorder %s16, 3
      %p185 = por %p183, %p184
      %p186 = scmp.ne.s32.totalorder %s178, %s181
      %p187 = scmp.eq.s32.totalorder %s16, 0
      %p188 = por %p186, %p187
      %p189 = scmp.ne.s32.totalorder %s178, %s181
      %p190 = scmp.eq.s32.totalorder %s21, 3
      %p191 = por %p189, %p190
      %p192 = scmp.ne.s32.totalorder %s181, %s182
      %p193 = scmp.eq.s32.totalorder %s21, 0
      %p194 = por %p192, %p193
      %p195 = scmp.ne.s32.totalorder %s181, %s182
      %p196 = scmp.eq.s32.totalorder %s22, 3
      %p197 = por %p195, %p196
      %p199 = scmp.ne.s32.totalorder %s182, %s198
      %p200 = scmp.eq.s32.totalorder %s22, 0
      %p201 = por %p199, %p200
      %p202 = scmp.le.s32.totalorder 1, %s16
      %p203 = scmp.lt.s32.totalorder %s16, 5
      %p204 = pnand %p202, %p203
      %p205 = pneg %p204
      // Predicated region
      $region9: #{pinn_forward_t.1} parent=5 // pred_check
        _
      $region10: #{pinn_forward_t.1} parent=5 // pred_check_branch
        %207 = sbr.rel (%p204) target = $region12
      $region11: #{pinn_forward_t.1} parent=5 // pred_region
        %s208 = ssub.s32 %s16, 1
        // Predicated region
        $region13: #{pinn_forward_t.1} parent=11 // pred_check
          %p209 = pneg %p63
        $region14: #{pinn_forward_t.1} parent=11 // pred_check_branch
          %211 = sbr.rel (%p209) target = $region16
        $region15: #{pinn_forward_t.1} parent=11 // pred_region
          _
        $region16: #{pinn_forward_t.1} parent=11 // pred_fallthru
          _
        // Predicated region
        $region17: #{pinn_forward_t.1} parent=11 // pred_check
          %p212 = pneg %p84
        $region18: #{pinn_forward_t.1} parent=11 // pred_check_branch
          %214 = sbr.rel (%p212) target = $region20
        $region19: #{pinn_forward_t.1} parent=11 // pred_region
          _
        $region20: #{pinn_forward_t.1} parent=11 // pred_fallthru
          _
        // Predicated region
        $region21: #{pinn_forward_t.1} parent=11 // pred_check
          %p215 = pneg %p105
        $region22: #{pinn_forward_t.1} parent=11 // pred_check_branch
          %217 = sbr.rel (%p215) target = $region24
        $region23: #{pinn_forward_t.1} parent=11 // pred_region
          _
        $region24: #{pinn_forward_t.1} parent=11 // pred_fallthru
          _
        // Predicated region
        $region25: #{pinn_forward_t.1} parent=11 // pred_check
          %p218 = pneg %p126
        $region26: #{pinn_forward_t.1} parent=11 // pred_check_branch
          %220 = sbr.rel (%p218) target = $region28
        $region27: #{pinn_forward_t.1} parent=11 // pred_region
          _
        $region28: #{pinn_forward_t.1} parent=11 // pred_fallthru
          _
        // Predicated region
        $region29: #{pinn_forward_t.1} parent=11 // pred_check
          %p221 = pneg %p147
        $region30: #{pinn_forward_t.1} parent=11 // pred_check_branch
          %223 = sbr.rel (%p221) target = $region32
        $region31: #{pinn_forward_t.1} parent=11 // pred_region
          _
        $region32: #{pinn_forward_t.1} parent=11 // pred_fallthru
          _
        // Predicated region
        $region33: #{pinn_forward_t.1} parent=11 // pred_check
          %p224 = pneg %p168
        $region34: #{pinn_forward_t.1} parent=11 // pred_check_branch
          %226 = sbr.rel (%p224) target = $region36
        $region35: #{pinn_forward_t.1} parent=11 // pred_region
          _
        $region36: #{pinn_forward_t.1} parent=11 // pred_fallthru
          _
      $region12: #{pinn_forward_t.1} parent=5 // pred_fallthru
        _
      %p227 = scmp.lt.s32.totalorder %s16, 4
      // Predicated region
      $region37: #{pinn_forward_t.1} parent=5 // pred_check
        %p228 = pneg %p227
      $region38: #{pinn_forward_t.1} parent=5 // pred_check_branch
        %230 = sbr.rel (%p228) target = $region40
      $region39: #{pinn_forward_t.1} parent=5 // pred_region
        // Predicated region
        $region41: #{pinn_forward_t.1} parent=39 // pred_check
          %p231 = pneg %p36
        $region42: #{pinn_forward_t.1} parent=39 // pred_check_branch
          %233 = sbr.rel (%p231) target = $region44
        $region43: #{pinn_forward_t.1} parent=39 // pred_region
          %s234 = sand.u32 %s26, 1
          %s235 = scalar_lea.sflag [#allocation3], %s234
          %s236 = sand.u32 %s26, 1
          %s237 = smul.addr %s236, 32
          %s238 = scalar_lea.vmem [#allocation2], %s237
          %s239 = smul.u32 16, %s16
          %241 = vsyncadd %s235, 0
          %s242 = smul.addr %s239, 2
          %s243 = scalar_lea.hbm %s0, %s242
          %s245 = sshll.u32 %s243, 4
          %s246 = int_to_ptr.hbm [resolvable:$true] %s245
          %s247 = sshll.u32 %s238, 4
          %s248 = int_to_ptr.vmem [resolvable:$true] %s247
          %250 = dma.hbm_to_vmem [thread:$0]  %s246, 512, %s248, %s235
        $region44: #{pinn_forward_t.1} parent=39 // pred_fallthru
          _
      $region40: #{pinn_forward_t.1} parent=5 // pred_fallthru
        _
      %p251 = scmp.le.s32.totalorder 1, %s16
      %p252 = scmp.lt.s32.totalorder %s16, 5
      %p253 = pnand %p251, %p252
      %p254 = pneg %p253
      // Predicated region
      $region45: #{pinn_forward_t.1} parent=5 // pred_check
        _
      $region46: #{pinn_forward_t.1} parent=5 // pred_check_branch
        %256 = sbr.rel (%p253) target = $region48
      $region47: #{pinn_forward_t.1} parent=5 // pred_region
        %s257 = ssub.s32 %s16, 1
        %s258 = sand.u32 %s29, 1
        %s259 = scalar_lea.sflag [#allocation3], %s258
        %s260 = sand.u32 %s29, 1
        %s261 = smul.addr %s260, 32
        %s262 = scalar_lea.vmem [#allocation2], %s261
        // Predicated region
        $region49: #{pinn_forward_t.1} parent=47 // pred_check
          %p263 = pneg %p42
        $region50: #{pinn_forward_t.1} parent=47 // pred_check_branch
          %265 = sbr.rel (%p263) target = $region52
        $region51: #{pinn_forward_t.1} parent=47 // pred_region
          %267 = dma.done %s259, 512
        $region52: #{pinn_forward_t.1} parent=47 // pred_fallthru
          _
        %s268 = sand.u32 %s29, 1
        %s269 = scalar_lea.sflag [#allocation3], %s268
        %s270 = sand.u32 %s29, 1
        %s271 = smul.addr %s270, 32
        %s272 = scalar_lea.vmem [#allocation2], %s271
        %p273 = pneg %p42
        %p274 = pneg %p39
        %p275 = pneg %p63
        %p276 = pneg %p60
        %p277 = pneg %p84
        %p278 = pneg %p81
        %p279 = pneg %p105
        %p280 = pneg %p102
        %p281 = pneg %p126
        %p282 = pneg %p123
        %p283 = pneg %p147
        %p284 = pneg %p144
        %p285 = pneg %p168
        %p286 = pneg %p165
        %p287 = pneg %p194
        %p288 = pneg %p191
        %s289 = smul.u32 16, %s21
        %p290 = scmp.lt.s32.totalorder %s289, 63
        %s291 = scalar_select %p290, %s289, 63
        %s292 = smul.addr %s291, 8
        %s293 = scalar_lea.vmem %s7, %s292
        %s294 = smul.u32 16, %s21
        %s295 = smul.u32 16, %s21
        %p296 = scmp.lt.s32.totalorder %s295, 63
        %s297 = scalar_select %p296, %s295, 63
        %s298 = smul.addr %s297, 8
        %s299 = scalar_lea.vmem %s7, %s298
        %s300 = smul.u32 16, %s21
        %v301 = vld [vmem:[%s262] sm:$0xff]
        %v302 = vld [vmem:[%s262 + $0x8] sm:$0xff]
        %v303 = vld [vmem:[%s262 + $0x10] sm:$0xff]
        %v304 = vld [vmem:[%s262 + $0x18] sm:$0xff]
        %v305 = vld [vmem:[%s1] sm:$0xff]
        %v306 = vld [vmem:[%s1 + $0x8] sm:$0xff]
        %v307 = vld [vmem:[%s1 + $0x10] sm:$0xff]
        %v308 = vld [vmem:[%s1 + $0x18] sm:$0xff]
        %v309 = vld [vmem:[%s1 + $0x20] sm:$0xff]
        %v310 = vld [vmem:[%s1 + $0x28] sm:$0xff]
        %v311 = vld [vmem:[%s1 + $0x30] sm:$0x3]
        %313 = vset.pattern.permute.xlu0 0
        %314 = vperm.xlu0 %313, %v305
        %v315 = vpop.permute.xlu0 %314
        %318 = vset.pattern.permute.xlu0 0
        %319 = vperm.xlu0 %318, %v306
        %v320 = vpop.permute.xlu0 %319
        %323 = vset.pattern.permute.xlu0 0
        %324 = vperm.xlu0 %323, %v307
        %v325 = vpop.permute.xlu0 %324
        %328 = vset.pattern.permute.xlu0 0
        %329 = vperm.xlu0 %328, %v308
        %v330 = vpop.permute.xlu0 %329
        %333 = vset.pattern.permute.xlu0 0
        %334 = vperm.xlu0 %333, %v309
        %v335 = vpop.permute.xlu0 %334
        %338 = vset.pattern.permute.xlu0 0
        %339 = vperm.xlu0 %338, %v310
        %v340 = vpop.permute.xlu0 %339
        %343 = vset.pattern.permute.xlu0 0
        %344 = vperm.xlu0 %343, %v311
        %v345 = vpop.permute.xlu0 %344
        %v351 = vperm.slane %v301, 0
        %v352 = vperm.slane %v301, 2
        %v353 = vperm.slane %v301, 4
        %v354 = vperm.slane %v301, 6
        %v355 = vperm.slane %v302, 0
        %v356 = vperm.slane %v302, 2
        %v357 = vperm.slane %v302, 4
        %v358 = vperm.slane %v302, 6
        %v359 = vperm.slane %v303, 0
        %v360 = vperm.slane %v303, 2
        %v361 = vperm.slane %v303, 4
        %v362 = vperm.slane %v303, 6
        %v363 = vperm.slane %v304, 0
        %v364 = vperm.slane %v304, 2
        %v365 = vperm.slane %v304, 4
        %v366 = vperm.slane %v304, 6
        %v383 = vperm.slane %v351, 0
        %v384 = vperm.slane %v352, 0
        %v385 = vperm.slane %v353, 0
        %v386 = vperm.slane %v354, 0
        %v387 = vperm.slane %v355, 0
        %v388 = vperm.slane %v356, 0
        %v389 = vperm.slane %v357, 0
        %v390 = vperm.slane %v358, 0
        %v391 = vperm.slane %v359, 0
        %v392 = vperm.slane %v360, 0
        %v393 = vperm.slane %v361, 0
        %v394 = vperm.slane %v362, 0
        %v395 = vperm.slane %v363, 0
        %v396 = vperm.slane %v364, 0
        %v397 = vperm.slane %v365, 0
        %v398 = vperm.slane %v366, 0
        %v399 = vmul.f32 %v315, %v383
        %v400 = vmul.f32 %v315, %v384
        %v401 = vmul.f32 %v315, %v385
        %v402 = vmul.f32 %v315, %v386
        %v403 = vmul.f32 %v315, %v387
        %v404 = vmul.f32 %v315, %v388
        %v405 = vmul.f32 %v315, %v389
        %v406 = vmul.f32 %v315, %v390
        %v407 = vmul.f32 %v315, %v391
        %v408 = vmul.f32 %v315, %v392
        %v409 = vmul.f32 %v315, %v393
        %v410 = vmul.f32 %v315, %v394
        %v411 = vmul.f32 %v315, %v395
        %v412 = vmul.f32 %v315, %v396
        %v413 = vmul.f32 %v315, %v397
        %v414 = vmul.f32 %v315, %v398
        %v415 = vmul.f32 %v320, %v383
        %v416 = vmul.f32 %v320, %v384
        %v417 = vmul.f32 %v320, %v385
        %v418 = vmul.f32 %v320, %v386
        %v419 = vmul.f32 %v320, %v387
        %v420 = vmul.f32 %v320, %v388
        %v421 = vmul.f32 %v320, %v389
        %v422 = vmul.f32 %v320, %v390
        %v423 = vmul.f32 %v320, %v391
        %v424 = vmul.f32 %v320, %v392
        %v425 = vmul.f32 %v320, %v393
        %v426 = vmul.f32 %v320, %v394
        %v427 = vmul.f32 %v320, %v395
        %v428 = vmul.f32 %v320, %v396
        %v429 = vmul.f32 %v320, %v397
        %v430 = vmul.f32 %v320, %v398
        %v431 = vmul.f32 %v325, %v383
        %v432 = vmul.f32 %v325, %v384
        %v433 = vmul.f32 %v325, %v385
        %v434 = vmul.f32 %v325, %v386
        %v435 = vmul.f32 %v325, %v387
        %v436 = vmul.f32 %v325, %v388
        %v437 = vmul.f32 %v325, %v389
        %v438 = vmul.f32 %v325, %v390
        %v439 = vmul.f32 %v325, %v391
        %v440 = vmul.f32 %v325, %v392
        %v441 = vmul.f32 %v325, %v393
        %v442 = vmul.f32 %v325, %v394
        %v443 = vmul.f32 %v325, %v395
        %v444 = vmul.f32 %v325, %v396
        %v445 = vmul.f32 %v325, %v397
        %v446 = vmul.f32 %v325, %v398
        %v447 = vmul.f32 %v330, %v383
        %v448 = vmul.f32 %v330, %v384
        %v449 = vmul.f32 %v330, %v385
        %v450 = vmul.f32 %v330, %v386
        %v451 = vmul.f32 %v330, %v387
        %v452 = vmul.f32 %v330, %v388
        %v453 = vmul.f32 %v330, %v389
        %v454 = vmul.f32 %v330, %v390
        %v455 = vmul.f32 %v330, %v391
        %v456 = vmul.f32 %v330, %v392
        %v457 = vmul.f32 %v330, %v393
        %v458 = vmul.f32 %v330, %v394
        %v459 = vmul.f32 %v330, %v395
        %v460 = vmul.f32 %v330, %v396
        %v461 = vmul.f32 %v330, %v397
        %v462 = vmul.f32 %v330, %v398
        %v463 = vmul.f32 %v335, %v383
        %v464 = vmul.f32 %v335, %v384
        %v465 = vmul.f32 %v335, %v385
        %v466 = vmul.f32 %v335, %v386
        %v467 = vmul.f32 %v335, %v387
        %v468 = vmul.f32 %v335, %v388
        %v469 = vmul.f32 %v335, %v389
        %v470 = vmul.f32 %v335, %v390
        %v471 = vmul.f32 %v335, %v391
        %v472 = vmul.f32 %v335, %v392
        %v473 = vmul.f32 %v335, %v393
        %v474 = vmul.f32 %v335, %v394
        %v475 = vmul.f32 %v335, %v395
        %v476 = vmul.f32 %v335, %v396
        %v477 = vmul.f32 %v335, %v397
        %v478 = vmul.f32 %v335, %v398
        %v479 = vmul.f32 %v340, %v383
        %v480 = vmul.f32 %v340, %v384
        %v481 = vmul.f32 %v340, %v385
        %v482 = vmul.f32 %v340, %v386
        %v483 = vmul.f32 %v340, %v387
        %v484 = vmul.f32 %v340, %v388
        %v485 = vmul.f32 %v340, %v389
        %v486 = vmul.f32 %v340, %v390
        %v487 = vmul.f32 %v340, %v391
        %v488 = vmul.f32 %v340, %v392
        %v489 = vmul.f32 %v340, %v393
        %v490 = vmul.f32 %v340, %v394
        %v491 = vmul.f32 %v340, %v395
        %v492 = vmul.f32 %v340, %v396
        %v493 = vmul.f32 %v340, %v397
        %v494 = vmul.f32 %v340, %v398
        %v495 = vmul.f32 %v345, %v383
        %v496 = vmul.f32 %v345, %v384
        %v497 = vmul.f32 %v345, %v385
        %v498 = vmul.f32 %v345, %v386
        %v499 = vmul.f32 %v345, %v387
        %v500 = vmul.f32 %v345, %v388
        %v501 = vmul.f32 %v345, %v389
        %v502 = vmul.f32 %v345, %v390
        %v503 = vmul.f32 %v345, %v391
        %v504 = vmul.f32 %v345, %v392
        %v505 = vmul.f32 %v345, %v393
        %v506 = vmul.f32 %v345, %v394
        %v507 = vmul.f32 %v345, %v395
        %v508 = vmul.f32 %v345, %v396
        %v509 = vmul.f32 %v345, %v397
        %v510 = vmul.f32 %v345, %v398
        %511 = vset.pattern.permute.xlu0 1
        %512 = vperm.xlu0 %511, %v305
        %v513 = vpop.permute.xlu0 %512
        %515 = vset.pattern.permute.xlu0 1
        %516 = vperm.xlu0 %515, %v306
        %v517 = vpop.permute.xlu0 %516
        %519 = vset.pattern.permute.xlu0 1
        %520 = vperm.xlu0 %519, %v307
        %v521 = vpop.permute.xlu0 %520
        %523 = vset.pattern.permute.xlu0 1
        %524 = vperm.xlu0 %523, %v308
        %v525 = vpop.permute.xlu0 %524
        %527 = vset.pattern.permute.xlu0 1
        %528 = vperm.xlu0 %527, %v309
        %v529 = vpop.permute.xlu0 %528
        %531 = vset.pattern.permute.xlu0 1
        %532 = vperm.xlu0 %531, %v310
        %v533 = vpop.permute.xlu0 %532
        %535 = vset.pattern.permute.xlu0 1
        %536 = vperm.xlu0 %535, %v311
        %v537 = vpop.permute.xlu0 %536
        %v539 = vperm.slane %v301, 1
        %v540 = vperm.slane %v301, 3
        %v541 = vperm.slane %v301, 5
        %v542 = vperm.slane %v301, 7
        %v543 = vperm.slane %v302, 1
        %v544 = vperm.slane %v302, 3
        %v545 = vperm.slane %v302, 5
        %v546 = vperm.slane %v302, 7
        %v547 = vperm.slane %v303, 1
        %v548 = vperm.slane %v303, 3
        %v549 = vperm.slane %v303, 5
        %v550 = vperm.slane %v303, 7
        %v551 = vperm.slane %v304, 1
        %v552 = vperm.slane %v304, 3
        %v553 = vperm.slane %v304, 5
        %v554 = vperm.slane %v304, 7
        %v571 = vperm.slane %v539, 1
        %v572 = vperm.slane %v540, 1
        %v573 = vperm.slane %v541, 1
        %v574 = vperm.slane %v542, 1
        %v575 = vperm.slane %v543, 1
        %v576 = vperm.slane %v544, 1
        %v577 = vperm.slane %v545, 1
        %v578 = vperm.slane %v546, 1
        %v579 = vperm.slane %v547, 1
        %v580 = vperm.slane %v548, 1
        %v581 = vperm.slane %v549, 1
        %v582 = vperm.slane %v550, 1
        %v583 = vperm.slane %v551, 1
        %v584 = vperm.slane %v552, 1
        %v585 = vperm.slane %v553, 1
        %v586 = vperm.slane %v554, 1
        %v587 = vmul.f32 %v513, %v571
        %v588 = vmul.f32 %v513, %v572
        %v589 = vmul.f32 %v513, %v573
        %v590 = vmul.f32 %v513, %v574
        %v591 = vmul.f32 %v513, %v575
        %v592 = vmul.f32 %v513, %v576
        %v593 = vmul.f32 %v513, %v577
        %v594 = vmul.f32 %v513, %v578
        %v595 = vmul.f32 %v513, %v579
        %v596 = vmul.f32 %v513, %v580
        %v597 = vmul.f32 %v513, %v581
        %v598 = vmul.f32 %v513, %v582
        %v599 = vmul.f32 %v513, %v583
        %v600 = vmul.f32 %v513, %v584
        %v601 = vmul.f32 %v513, %v585
        %v602 = vmul.f32 %v513, %v586
        %v603 = vmul.f32 %v517, %v571
        %v604 = vmul.f32 %v517, %v572
        %v605 = vmul.f32 %v517, %v573
        %v606 = vmul.f32 %v517, %v574
        %v607 = vmul.f32 %v517, %v575
        %v608 = vmul.f32 %v517, %v576
        %v609 = vmul.f32 %v517, %v577
        %v610 = vmul.f32 %v517, %v578
        %v611 = vmul.f32 %v517, %v579
        %v612 = vmul.f32 %v517, %v580
        %v613 = vmul.f32 %v517, %v581
        %v614 = vmul.f32 %v517, %v582
        %v615 = vmul.f32 %v517, %v583
        %v616 = vmul.f32 %v517, %v584
        %v617 = vmul.f32 %v517, %v585
        %v618 = vmul.f32 %v517, %v586
        %v619 = vmul.f32 %v521, %v571
        %v620 = vmul.f32 %v521, %v572
        %v621 = vmul.f32 %v521, %v573
        %v622 = vmul.f32 %v521, %v574
        %v623 = vmul.f32 %v521, %v575
        %v624 = vmul.f32 %v521, %v576
        %v625 = vmul.f32 %v521, %v577
        %v626 = vmul.f32 %v521, %v578
        %v627 = vmul.f32 %v521, %v579
        %v628 = vmul.f32 %v521, %v580
        %v629 = vmul.f32 %v521, %v581
        %v630 = vmul.f32 %v521, %v582
        %v631 = vmul.f32 %v521, %v583
        %v632 = vmul.f32 %v521, %v584
        %v633 = vmul.f32 %v521, %v585
        %v634 = vmul.f32 %v521, %v586
        %v635 = vmul.f32 %v525, %v571
        %v636 = vmul.f32 %v525, %v572
        %v637 = vmul.f32 %v525, %v573
        %v638 = vmul.f32 %v525, %v574
        %v639 = vmul.f32 %v525, %v575
        %v640 = vmul.f32 %v525, %v576
        %v641 = vmul.f32 %v525, %v577
        %v642 = vmul.f32 %v525, %v578
        %v643 = vmul.f32 %v525, %v579
        %v644 = vmul.f32 %v525, %v580
        %v645 = vmul.f32 %v525, %v581
        %v646 = vmul.f32 %v525, %v582
        %v647 = vmul.f32 %v525, %v583
        %v648 = vmul.f32 %v525, %v584
        %v649 = vmul.f32 %v525, %v585
        %v650 = vmul.f32 %v525, %v586
        %v651 = vmul.f32 %v529, %v571
        %v652 = vmul.f32 %v529, %v572
        %v653 = vmul.f32 %v529, %v573
        %v654 = vmul.f32 %v529, %v574
        %v655 = vmul.f32 %v529, %v575
        %v656 = vmul.f32 %v529, %v576
        %v657 = vmul.f32 %v529, %v577
        %v658 = vmul.f32 %v529, %v578
        %v659 = vmul.f32 %v529, %v579
        %v660 = vmul.f32 %v529, %v580
        %v661 = vmul.f32 %v529, %v581
        %v662 = vmul.f32 %v529, %v582
        %v663 = vmul.f32 %v529, %v583
        %v664 = vmul.f32 %v529, %v584
        %v665 = vmul.f32 %v529, %v585
        %v666 = vmul.f32 %v529, %v586
        %v667 = vmul.f32 %v533, %v571
        %v668 = vmul.f32 %v533, %v572
        %v669 = vmul.f32 %v533, %v573
        %v670 = vmul.f32 %v533, %v574
        %v671 = vmul.f32 %v533, %v575
        %v672 = vmul.f32 %v533, %v576
        %v673 = vmul.f32 %v533, %v577
        %v674 = vmul.f32 %v533, %v578
        %v675 = vmul.f32 %v533, %v579
        %v676 = vmul.f32 %v533, %v580
        %v677 = vmul.f32 %v533, %v581
        %v678 = vmul.f32 %v533, %v582
        %v679 = vmul.f32 %v533, %v583
        %v680 = vmul.f32 %v533, %v584
        %v681 = vmul.f32 %v533, %v585
        %v682 = vmul.f32 %v533, %v586
        %v683 = vmul.f32 %v537, %v571
        %v684 = vmul.f32 %v537, %v572
        %v685 = vmul.f32 %v537, %v573
        %v686 = vmul.f32 %v537, %v574
        %v687 = vmul.f32 %v537, %v575
        %v688 = vmul.f32 %v537, %v576
        %v689 = vmul.f32 %v537, %v577
        %v690 = vmul.f32 %v537, %v578
        %v691 = vmul.f32 %v537, %v579
        %v692 = vmul.f32 %v537, %v580
        %v693 = vmul.f32 %v537, %v581
        %v694 = vmul.f32 %v537, %v582
        %v695 = vmul.f32 %v537, %v583
        %v696 = vmul.f32 %v537, %v584
        %v697 = vmul.f32 %v537, %v585
        %v698 = vmul.f32 %v537, %v586
        %v699 = vadd.f32 %v399, %v587
        %v700 = vadd.f32 %v400, %v588
        %v701 = vadd.f32 %v401, %v589
        %v702 = vadd.f32 %v402, %v590
        %v703 = vadd.f32 %v403, %v591
        %v704 = vadd.f32 %v404, %v592
        %v705 = vadd.f32 %v405, %v593
        %v706 = vadd.f32 %v406, %v594
        %v707 = vadd.f32 %v407, %v595
        %v708 = vadd.f32 %v408, %v596
        %v709 = vadd.f32 %v409, %v597
        %v710 = vadd.f32 %v410, %v598
        %v711 = vadd.f32 %v411, %v599
        %v712 = vadd.f32 %v412, %v600
        %v713 = vadd.f32 %v413, %v601
        %v714 = vadd.f32 %v414, %v602
        %v715 = vadd.f32 %v415, %v603
        %v716 = vadd.f32 %v416, %v604
        %v717 = vadd.f32 %v417, %v605
        %v718 = vadd.f32 %v418, %v606
        %v719 = vadd.f32 %v419, %v607
        %v720 = vadd.f32 %v420, %v608
        %v721 = vadd.f32 %v421, %v609
        %v722 = vadd.f32 %v422, %v610
        %v723 = vadd.f32 %v423, %v611
        %v724 = vadd.f32 %v424, %v612
        %v725 = vadd.f32 %v425, %v613
        %v726 = vadd.f32 %v426, %v614
        %v727 = vadd.f32 %v427, %v615
        %v728 = vadd.f32 %v428, %v616
        %v729 = vadd.f32 %v429, %v617
        %v730 = vadd.f32 %v430, %v618
        %v731 = vadd.f32 %v431, %v619
        %v732 = vadd.f32 %v432, %v620
        %v733 = vadd.f32 %v433, %v621
        %v734 = vadd.f32 %v434, %v622
        %v735 = vadd.f32 %v435, %v623
        %v736 = vadd.f32 %v436, %v624
        %v737 = vadd.f32 %v437, %v625
        %v738 = vadd.f32 %v438, %v626
        %v739 = vadd.f32 %v439, %v627
        %v740 = vadd.f32 %v440, %v628
        %v741 = vadd.f32 %v441, %v629
        %v742 = vadd.f32 %v442, %v630
        %v743 = vadd.f32 %v443, %v631
        %v744 = vadd.f32 %v444, %v632
        %v745 = vadd.f32 %v445, %v633
        %v746 = vadd.f32 %v446, %v634
        %v747 = vadd.f32 %v447, %v635
        %v748 = vadd.f32 %v448, %v636
        %v749 = vadd.f32 %v449, %v637
        %v750 = vadd.f32 %v450, %v638
        %v751 = vadd.f32 %v451, %v639
        %v752 = vadd.f32 %v452, %v640
        %v753 = vadd.f32 %v453, %v641
        %v754 = vadd.f32 %v454, %v642
        %v755 = vadd.f32 %v455, %v643
        %v756 = vadd.f32 %v456, %v644
        %v757 = vadd.f32 %v457, %v645
        %v758 = vadd.f32 %v458, %v646
        %v759 = vadd.f32 %v459, %v647
        %v760 = vadd.f32 %v460, %v648
        %v761 = vadd.f32 %v461, %v649
        %v762 = vadd.f32 %v462, %v650
        %v763 = vadd.f32 %v463, %v651
        %v764 = vadd.f32 %v464, %v652
        %v765 = vadd.f32 %v465, %v653
        %v766 = vadd.f32 %v466, %v654
        %v767 = vadd.f32 %v467, %v655
        %v768 = vadd.f32 %v468, %v656
        %v769 = vadd.f32 %v469, %v657
        %v770 = vadd.f32 %v470, %v658
        %v771 = vadd.f32 %v471, %v659
        %v772 = vadd.f32 %v472, %v660
        %v773 = vadd.f32 %v473, %v661
        %v774 = vadd.f32 %v474, %v662
        %v775 = vadd.f32 %v475, %v663
        %v776 = vadd.f32 %v476, %v664
        %v777 = vadd.f32 %v477, %v665
        %v778 = vadd.f32 %v478, %v666
        %v779 = vadd.f32 %v479, %v667
        %v780 = vadd.f32 %v480, %v668
        %v781 = vadd.f32 %v481, %v669
        %v782 = vadd.f32 %v482, %v670
        %v783 = vadd.f32 %v483, %v671
        %v784 = vadd.f32 %v484, %v672
        %v785 = vadd.f32 %v485, %v673
        %v786 = vadd.f32 %v486, %v674
        %v787 = vadd.f32 %v487, %v675
        %v788 = vadd.f32 %v488, %v676
        %v789 = vadd.f32 %v489, %v677
        %v790 = vadd.f32 %v490, %v678
        %v791 = vadd.f32 %v491, %v679
        %v792 = vadd.f32 %v492, %v680
        %v793 = vadd.f32 %v493, %v681
        %v794 = vadd.f32 %v494, %v682
        %v795 = vadd.f32 %v495, %v683
        %v796 = vadd.f32 %v496, %v684
        %v797 = vadd.f32 %v497, %v685
        %v798 = vadd.f32 %v498, %v686
        %v799 = vadd.f32 %v499, %v687
        %v800 = vadd.f32 %v500, %v688
        %v801 = vadd.f32 %v501, %v689
        %v802 = vadd.f32 %v502, %v690
        %v803 = vadd.f32 %v503, %v691
        %v804 = vadd.f32 %v504, %v692
        %v805 = vadd.f32 %v505, %v693
        %v806 = vadd.f32 %v506, %v694
        %v807 = vadd.f32 %v507, %v695
        %v808 = vadd.f32 %v508, %v696
        %v809 = vadd.f32 %v509, %v697
        %v810 = vadd.f32 %v510, %v698
        %v811 = vld [vmem:[%s2] sm:$0xff]
        %v812 = vld [vmem:[%s2 + $0x8] sm:$0xff]
        %v813 = vld [vmem:[%s2 + $0x10] sm:$0xff]
        %v814 = vld [vmem:[%s2 + $0x18] sm:$0xff]
        %v815 = vld [vmem:[%s2 + $0x20] sm:$0xff]
        %v816 = vld [vmem:[%s2 + $0x28] sm:$0xff]
        %v817 = vld [vmem:[%s2 + $0x30] sm:$0x3]
        %819 = vset.pattern.permute.xlu0 0
        %820 = vperm.xlu0 %819, %v811
        %v821 = vpop.permute.xlu0 %820
        %824 = vset.pattern.permute.xlu0 0
        %825 = vperm.xlu0 %824, %v812
        %v826 = vpop.permute.xlu0 %825
        %829 = vset.pattern.permute.xlu0 0
        %830 = vperm.xlu0 %829, %v813
        %v831 = vpop.permute.xlu0 %830
        %834 = vset.pattern.permute.xlu0 0
        %835 = vperm.xlu0 %834, %v814
        %v836 = vpop.permute.xlu0 %835
        %839 = vset.pattern.permute.xlu0 0
        %840 = vperm.xlu0 %839, %v815
        %v841 = vpop.permute.xlu0 %840
        %844 = vset.pattern.permute.xlu0 0
        %845 = vperm.xlu0 %844, %v816
        %v846 = vpop.permute.xlu0 %845
        %849 = vset.pattern.permute.xlu0 0
        %850 = vperm.xlu0 %849, %v817
        %v851 = vpop.permute.xlu0 %850
        %v853 = vadd.f32 %v699, %v821
        %v854 = vadd.f32 %v700, %v821
        %v855 = vadd.f32 %v701, %v821
        %v856 = vadd.f32 %v702, %v821
        %v857 = vadd.f32 %v703, %v821
        %v858 = vadd.f32 %v704, %v821
        %v859 = vadd.f32 %v705, %v821
        %v860 = vadd.f32 %v706, %v821
        %v861 = vadd.f32 %v707, %v821
        %v862 = vadd.f32 %v708, %v821
        %v863 = vadd.f32 %v709, %v821
        %v864 = vadd.f32 %v710, %v821
        %v865 = vadd.f32 %v711, %v821
        %v866 = vadd.f32 %v712, %v821
        %v867 = vadd.f32 %v713, %v821
        %v868 = vadd.f32 %v714, %v821
        %v869 = vadd.f32 %v715, %v826
        %v870 = vadd.f32 %v716, %v826
        %v871 = vadd.f32 %v717, %v826
        %v872 = vadd.f32 %v718, %v826
        %v873 = vadd.f32 %v719, %v826
        %v874 = vadd.f32 %v720, %v826
        %v875 = vadd.f32 %v721, %v826
        %v876 = vadd.f32 %v722, %v826
        %v877 = vadd.f32 %v723, %v826
        %v878 = vadd.f32 %v724, %v826
        %v879 = vadd.f32 %v725, %v826
        %v880 = vadd.f32 %v726, %v826
        %v881 = vadd.f32 %v727, %v826
        %v882 = vadd.f32 %v728, %v826
        %v883 = vadd.f32 %v729, %v826
        %v884 = vadd.f32 %v730, %v826
        %v885 = vadd.f32 %v731, %v831
        %v886 = vadd.f32 %v732, %v831
        %v887 = vadd.f32 %v733, %v831
        %v888 = vadd.f32 %v734, %v831
        %v889 = vadd.f32 %v735, %v831
        %v890 = vadd.f32 %v736, %v831
        %v891 = vadd.f32 %v737, %v831
        %v892 = vadd.f32 %v738, %v831
        %v893 = vadd.f32 %v739, %v831
        %v894 = vadd.f32 %v740, %v831
        %v895 = vadd.f32 %v741, %v831
        %v896 = vadd.f32 %v742, %v831
        %v897 = vadd.f32 %v743, %v831
        %v898 = vadd.f32 %v744, %v831
        %v899 = vadd.f32 %v745, %v831
        %v900 = vadd.f32 %v746, %v831
        %v901 = vadd.f32 %v747, %v836
        %v902 = vadd.f32 %v748, %v836
        %v903 = vadd.f32 %v749, %v836
        %v904 = vadd.f32 %v750, %v836
        %v905 = vadd.f32 %v751, %v836
        %v906 = vadd.f32 %v752, %v836
        %v907 = vadd.f32 %v753, %v836
        %v908 = vadd.f32 %v754, %v836
        %v909 = vadd.f32 %v755, %v836
        %v910 = vadd.f32 %v756, %v836
        %v911 = vadd.f32 %v757, %v836
        %v912 = vadd.f32 %v758, %v836
        %v913 = vadd.f32 %v759, %v836
        %v914 = vadd.f32 %v760, %v836
        %v915 = vadd.f32 %v761, %v836
        %v916 = vadd.f32 %v762, %v836
        %v917 = vadd.f32 %v763, %v841
        %v918 = vadd.f32 %v764, %v841
        %v919 = vadd.f32 %v765, %v841
        %v920 = vadd.f32 %v766, %v841
        %v921 = vadd.f32 %v767, %v841
        %v922 = vadd.f32 %v768, %v841
        %v923 = vadd.f32 %v769, %v841
        %v924 = vadd.f32 %v770, %v841
        %v925 = vadd.f32 %v771, %v841
        %v926 = vadd.f32 %v772, %v841
        %v927 = vadd.f32 %v773, %v841
        %v928 = vadd.f32 %v774, %v841
        %v929 = vadd.f32 %v775, %v841
        %v930 = vadd.f32 %v776, %v841
        %v931 = vadd.f32 %v777, %v841
        %v932 = vadd.f32 %v778, %v841
        %v933 = vadd.f32 %v779, %v846
        %v934 = vadd.f32 %v780, %v846
        %v935 = vadd.f32 %v781, %v846
        %v936 = vadd.f32 %v782, %v846
        %v937 = vadd.f32 %v783, %v846
        %v938 = vadd.f32 %v784, %v846
        %v939 = vadd.f32 %v785, %v846
        %v940 = vadd.f32 %v786, %v846
        %v941 = vadd.f32 %v787, %v846
        %v942 = vadd.f32 %v788, %v846
        %v943 = vadd.f32 %v789, %v846
        %v944 = vadd.f32 %v790, %v846
        %v945 = vadd.f32 %v791, %v846
        %v946 = vadd.f32 %v792, %v846
        %v947 = vadd.f32 %v793, %v846
        %v948 = vadd.f32 %v794, %v846
        %v949 = vadd.f32 %v795, %v851
        %v950 = vadd.f32 %v796, %v851
        %v951 = vadd.f32 %v797, %v851
        %v952 = vadd.f32 %v798, %v851
        %v953 = vadd.f32 %v799, %v851
        %v954 = vadd.f32 %v800, %v851
        %v955 = vadd.f32 %v801, %v851
        %v956 = vadd.f32 %v802, %v851
        %v957 = vadd.f32 %v803, %v851
        %v958 = vadd.f32 %v804, %v851
        %v959 = vadd.f32 %v805, %v851
        %v960 = vadd.f32 %v806, %v851
        %v961 = vadd.f32 %v807, %v851
        %v962 = vadd.f32 %v808, %v851
        %v963 = vadd.f32 %v809, %v851
        %v964 = vadd.f32 %v810, %v851
        %v965 = vtanh.pop %v853
        %v966 = vtanh.pop %v854
        %v967 = vtanh.pop %v855
        %v968 = vtanh.pop %v856
        %v969 = vtanh.pop %v857
        %v970 = vtanh.pop %v858
        %v971 = vtanh.pop %v859
        %v972 = vtanh.pop %v860
        %v973 = vtanh.pop %v861
        %v974 = vtanh.pop %v862
        %v975 = vtanh.pop %v863
        %v976 = vtanh.pop %v864
        %v977 = vtanh.pop %v865
        %v978 = vtanh.pop %v866
        %v979 = vtanh.pop %v867
        %v980 = vtanh.pop %v868
        %v981 = vtanh.pop %v869
        %v982 = vtanh.pop %v870
        %v983 = vtanh.pop %v871
        %v984 = vtanh.pop %v872
        %v985 = vtanh.pop %v873
        %v986 = vtanh.pop %v874
        %v987 = vtanh.pop %v875
        %v988 = vtanh.pop %v876
        %v989 = vtanh.pop %v877
        %v990 = vtanh.pop %v878
        %v991 = vtanh.pop %v879
        %v992 = vtanh.pop %v880
        %v993 = vtanh.pop %v881
        %v994 = vtanh.pop %v882
        %v995 = vtanh.pop %v883
        %v996 = vtanh.pop %v884
        %v997 = vtanh.pop %v885
        %v998 = vtanh.pop %v886
        %v999 = vtanh.pop %v887
        %v1000 = vtanh.pop %v888
        %v1001 = vtanh.pop %v889
        %v1002 = vtanh.pop %v890
        %v1003 = vtanh.pop %v891
        %v1004 = vtanh.pop %v892
        %v1005 = vtanh.pop %v893
        %v1006 = vtanh.pop %v894
        %v1007 = vtanh.pop %v895
        %v1008 = vtanh.pop %v896
        %v1009 = vtanh.pop %v897
        %v1010 = vtanh.pop %v898
        %v1011 = vtanh.pop %v899
        %v1012 = vtanh.pop %v900
        %v1013 = vtanh.pop %v901
        %v1014 = vtanh.pop %v902
        %v1015 = vtanh.pop %v903
        %v1016 = vtanh.pop %v904
        %v1017 = vtanh.pop %v905
        %v1018 = vtanh.pop %v906
        %v1019 = vtanh.pop %v907
        %v1020 = vtanh.pop %v908
        %v1021 = vtanh.pop %v909
        %v1022 = vtanh.pop %v910
        %v1023 = vtanh.pop %v911
        %v1024 = vtanh.pop %v912
        %v1025 = vtanh.pop %v913
        %v1026 = vtanh.pop %v914
        %v1027 = vtanh.pop %v915
        %v1028 = vtanh.pop %v916
        %v1029 = vtanh.pop %v917
        %v1030 = vtanh.pop %v918
        %v1031 = vtanh.pop %v919
        %v1032 = vtanh.pop %v920
        %v1033 = vtanh.pop %v921
        %v1034 = vtanh.pop %v922
        %v1035 = vtanh.pop %v923
        %v1036 = vtanh.pop %v924
        %v1037 = vtanh.pop %v925
        %v1038 = vtanh.pop %v926
        %v1039 = vtanh.pop %v927
        %v1040 = vtanh.pop %v928
        %v1041 = vtanh.pop %v929
        %v1042 = vtanh.pop %v930
        %v1043 = vtanh.pop %v931
        %v1044 = vtanh.pop %v932
        %v1045 = vtanh.pop %v933
        %v1046 = vtanh.pop %v934
        %v1047 = vtanh.pop %v935
        %v1048 = vtanh.pop %v936
        %v1049 = vtanh.pop %v937
        %v1050 = vtanh.pop %v938
        %v1051 = vtanh.pop %v939
        %v1052 = vtanh.pop %v940
        %v1053 = vtanh.pop %v941
        %v1054 = vtanh.pop %v942
        %v1055 = vtanh.pop %v943
        %v1056 = vtanh.pop %v944
        %v1057 = vtanh.pop %v945
        %v1058 = vtanh.pop %v946
        %v1059 = vtanh.pop %v947
        %v1060 = vtanh.pop %v948
        %v1061 = vtanh.pop %v949
        %v1062 = vtanh.pop %v950
        %v1063 = vtanh.pop %v951
        %v1064 = vtanh.pop %v952
        %v1065 = vtanh.pop %v953
        %v1066 = vtanh.pop %v954
        %v1067 = vtanh.pop %v955
        %v1068 = vtanh.pop %v956
        %v1069 = vtanh.pop %v957
        %v1070 = vtanh.pop %v958
        %v1071 = vtanh.pop %v959
        %v1072 = vtanh.pop %v960
        %v1073 = vtanh.pop %v961
        %v1074 = vtanh.pop %v962
        %v1075 = vtanh.pop %v963
        %v1076 = vtanh.pop %v964
        %v1077 = vld [vmem:[%s3] sm:$0xff]
        %v1078 = vld [vmem:[%s3 + $0x8] sm:$0xff]
        %v1079 = vld [vmem:[%s3 + $0x10] sm:$0xff]
        %v1080 = vld [vmem:[%s3 + $0x18] sm:$0xff]
        %v1081 = vld [vmem:[%s3 + $0x20] sm:$0xff]
        %v1082 = vld [vmem:[%s3 + $0x28] sm:$0xff]
        %v1083 = vld [vmem:[%s3 + $0x30] sm:$0x3]
        %v1084 = vld [vmem:[%s4] sm:$0xff]
        %v1085 = vld [vmem:[%s4 + $0x8] sm:$0xff]
        %v1086 = vld [vmem:[%s4 + $0x10] sm:$0xff]
        %v1087 = vld [vmem:[%s4 + $0x18] sm:$0xff]
        %v1088 = vld [vmem:[%s4 + $0x20] sm:$0xff]
        %v1089 = vld [vmem:[%s4 + $0x28] sm:$0xff]
        %v1090 = vld [vmem:[%s4 + $0x30] sm:$0x3]
        %1092 = vset.pattern.permute.xlu0 0
        %1093 = vperm.xlu0 %1092, %v1084
        %v1094 = vpop.permute.xlu0 %1093
        %1097 = vset.pattern.permute.xlu0 0
        %1098 = vperm.xlu0 %1097, %v1085
        %v1099 = vpop.permute.xlu0 %1098
        %1102 = vset.pattern.permute.xlu0 0
        %1103 = vperm.xlu0 %1102, %v1086
        %v1104 = vpop.permute.xlu0 %1103
        %1107 = vset.pattern.permute.xlu0 0
        %1108 = vperm.xlu0 %1107, %v1087
        %v1109 = vpop.permute.xlu0 %1108
        %1112 = vset.pattern.permute.xlu0 0
        %1113 = vperm.xlu0 %1112, %v1088
        %v1114 = vpop.permute.xlu0 %1113
        %1117 = vset.pattern.permute.xlu0 0
        %1118 = vperm.xlu0 %1117, %v1089
        %v1119 = vpop.permute.xlu0 %1118
        %1122 = vset.pattern.permute.xlu0 0
        %1123 = vperm.xlu0 %1122, %v1090
        %v1124 = vpop.permute.xlu0 %1123
        %vm1126 = vcmask 408576
        %v1128 = vsel %vm1126, %v1077, 0
        %v1131 = vsel %vm1126, %v1078, 0
        %v1134 = vsel %vm1126, %v1079, 0
        %v1137 = vsel %vm1126, %v1080, 0
        %v1140 = vsel %vm1126, %v1081, 0
        %v1143 = vsel %vm1126, %v1082, 0
        %v1146 = vsel %vm1126, %v1083, 0
        %vm1148 = vcmask 1041408
        %v1150 = vsel %vm1148, %v1061, 0
        %v1153 = vsel %vm1148, %v1062, 0
        %v1156 = vsel %vm1148, %v1063, 0
        %v1159 = vsel %vm1148, %v1064, 0
        %v1162 = vsel %vm1148, %v1065, 0
        %v1165 = vsel %vm1148, %v1066, 0
        %v1168 = vsel %vm1148, %v1067, 0
        %v1171 = vsel %vm1148, %v1068, 0
        %v1174 = vsel %vm1148, %v1069, 0
        %v1177 = vsel %vm1148, %v1070, 0
        %v1180 = vsel %vm1148, %v1071, 0
        %v1183 = vsel %vm1148, %v1072, 0
        %v1186 = vsel %vm1148, %v1073, 0
        %v1189 = vsel %vm1148, %v1074, 0
        %v1192 = vsel %vm1148, %v1075, 0
        %v1195 = vsel %vm1148, %v1076, 0
        %1197 = vmatpush.msra.mxu0 0.0
        %1198 = vmatpush.msra.mxu0 0.0
        %1199 = vmatpush.msra.mxu0 0.0
        %1200 = vmatpush.msra.mxu0 0.0
        %1201 = vmatpush.msra.mxu0 0.0
        %1202 = vmatpush.msra.mxu0 0.0
        %1203 = vmatpush.msra.mxu0 0.0
        %1204 = vmatpush.msra.mxu0 0.0
        %1205 = vmatpush.msra.mxu0 0.0
        %1206 = vmatpush.msra.mxu0 %v1150
        %1207 = vmatpush.msra.mxu0 %v1045
        %1208 = vmatpush.msra.mxu0 %v1029
        %1209 = vmatpush.msra.mxu0 %v1013
        %1210 = vmatpush.msra.mxu0 %v997
        %1211 = vmatpush.msra.mxu0 %v981
        %1212 = vmatpush.msra.mxu0 %v965
        %1213 = vmatmul.f32.gmra.mxu0 %v1128
        %v1214 = vpop.f32.mrf.mxu0
        %v1215 = vadd.f32 %v1094, %v1214
        %1216 = vmatmul.f32.gmra.mxu0 %v1131
        %v1217 = vpop.f32.mrf.mxu0
        %v1218 = vadd.f32 %v1099, %v1217
        %1219 = vmatmul.f32.gmra.mxu0 %v1134
        %v1220 = vpop.f32.mrf.mxu0
        %v1221 = vadd.f32 %v1104, %v1220
        %1222 = vmatmul.f32.gmra.mxu0 %v1137
        %v1223 = vpop.f32.mrf.mxu0
        %v1224 = vadd.f32 %v1109, %v1223
        %1225 = vmatmul.f32.gmra.mxu0 %v1140
        %v1226 = vpop.f32.mrf.mxu0
        %v1227 = vadd.f32 %v1114, %v1226
        %1228 = vmatmul.f32.gmra.mxu0 %v1143
        %v1229 = vpop.f32.mrf.mxu0
        %v1230 = vadd.f32 %v1119, %v1229
        %1231 = vmatmul.f32.gmra.mxu0 %v1146
        %v1232 = vpop.f32.mrf.mxu0
        %v1233 = vadd.f32 %v1124, %v1232
        %1234 = vdwg.mxu0
        %1235 = vmatpush.msra.mxu0 0.0
        %1236 = vmatpush.msra.mxu0 0.0
        %1237 = vmatpush.msra.mxu0 0.0
        %1238 = vmatpush.msra.mxu0 0.0
        %1239 = vmatpush.msra.mxu0 0.0
        %1240 = vmatpush.msra.mxu0 0.0
        %1241 = vmatpush.msra.mxu0 0.0
        %1242 = vmatpush.msra.mxu0 0.0
        %1243 = vmatpush.msra.mxu0 0.0
        %1244 = vmatpush.msra.mxu0 %v1153
        %1245 = vmatpush.msra.mxu0 %v1046
        %1246 = vmatpush.msra.mxu0 %v1030
        %1247 = vmatpush.msra.mxu0 %v1014
        %1248 = vmatpush.msra.mxu0 %v998
        %1249 = vmatpush.msra.mxu0 %v982
        %1250 = vmatpush.msra.mxu0 %v966
        %1251 = vmatmul.f32.gmra.mxu0 %v1128
        %v1252 = vpop.f32.mrf.mxu0
        %v1253 = vadd.f32 %v1094, %v1252
        %1254 = vmatmul.f32.gmra.mxu0 %v1131
        %v1255 = vpop.f32.mrf.mxu0
        %v1256 = vadd.f32 %v1099, %v1255
        %1257 = vmatmul.f32.gmra.mxu0 %v1134
        %v1258 = vpop.f32.mrf.mxu0
        %v1259 = vadd.f32 %v1104, %v1258
        %1260 = vmatmul.f32.gmra.mxu0 %v1137
        %v1261 = vpop.f32.mrf.mxu0
        %v1262 = vadd.f32 %v1109, %v1261
        %1263 = vmatmul.f32.gmra.mxu0 %v1140
        %v1264 = vpop.f32.mrf.mxu0
        %v1265 = vadd.f32 %v1114, %v1264
        %1266 = vmatmul.f32.gmra.mxu0 %v1143
        %v1267 = vpop.f32.mrf.mxu0
        %v1268 = vadd.f32 %v1119, %v1267
        %1269 = vmatmul.f32.gmra.mxu0 %v1146
        %v1270 = vpop.f32.mrf.mxu0
        %v1271 = vadd.f32 %v1124, %v1270
        %1272 = vdwg.mxu0
        %1273 = vmatpush.msra.mxu0 0.0
        %1274 = vmatpush.msra.mxu0 0.0
        %1275 = vmatpush.msra.mxu0 0.0
        %1276 = vmatpush.msra.mxu0 0.0
        %1277 = vmatpush.msra.mxu0 0.0
        %1278 = vmatpush.msra.mxu0 0.0
        %1279 = vmatpush.msra.mxu0 0.0
        %1280 = vmatpush.msra.mxu0 0.0
        %1281 = vmatpush.msra.mxu0 0.0
        %1282 = vmatpush.msra.mxu0 %v1156
        %1283 = vmatpush.msra.mxu0 %v1047
        %1284 = vmatpush.msra.mxu0 %v1031
        %1285 = vmatpush.msra.mxu0 %v1015
        %1286 = vmatpush.msra.mxu0 %v999
        %1287 = vmatpush.msra.mxu0 %v983
        %1288 = vmatpush.msra.mxu0 %v967
        %1289 = vmatmul.f32.gmra.mxu0 %v1128
        %v1290 = vpop.f32.mrf.mxu0
        %v1291 = vadd.f32 %v1094, %v1290
        %1292 = vmatmul.f32.gmra.mxu0 %v1131
        %v1293 = vpop.f32.mrf.mxu0
        %v1294 = vadd.f32 %v1099, %v1293
        %1295 = vmatmul.f32.gmra.mxu0 %v1134
        %v1296 = vpop.f32.mrf.mxu0
        %v1297 = vadd.f32 %v1104, %v1296
        %1298 = vmatmul.f32.gmra.mxu0 %v1137
        %v1299 = vpop.f32.mrf.mxu0
        %v1300 = vadd.f32 %v1109, %v1299
        %1301 = vmatmul.f32.gmra.mxu0 %v1140
        %v1302 = vpop.f32.mrf.mxu0
        %v1303 = vadd.f32 %v1114, %v1302
        %1304 = vmatmul.f32.gmra.mxu0 %v1143
        %v1305 = vpop.f32.mrf.mxu0
        %v1306 = vadd.f32 %v1119, %v1305
        %1307 = vmatmul.f32.gmra.mxu0 %v1146
        %v1308 = vpop.f32.mrf.mxu0
        %v1309 = vadd.f32 %v1124, %v1308
        %1310 = vdwg.mxu0
        %1311 = vmatpush.msra.mxu0 0.0
        %1312 = vmatpush.msra.mxu0 0.0
        %1313 = vmatpush.msra.mxu0 0.0
        %1314 = vmatpush.msra.mxu0 0.0
        %1315 = vmatpush.msra.mxu0 0.0
        %1316 = vmatpush.msra.mxu0 0.0
        %1317 = vmatpush.msra.mxu0 0.0
        %1318 = vmatpush.msra.mxu0 0.0
        %1319 = vmatpush.msra.mxu0 0.0
        %1320 = vmatpush.msra.mxu0 %v1159
        %1321 = vmatpush.msra.mxu0 %v1048
        %1322 = vmatpush.msra.mxu0 %v1032
        %1323 = vmatpush.msra.mxu0 %v1016
        %1324 = vmatpush.msra.mxu0 %v1000
        %1325 = vmatpush.msra.mxu0 %v984
        %1326 = vmatpush.msra.mxu0 %v968
        %1327 = vmatmul.f32.gmra.mxu0 %v1128
        %v1328 = vpop.f32.mrf.mxu0
        %v1329 = vadd.f32 %v1094, %v1328
        %1330 = vmatmul.f32.gmra.mxu0 %v1131
        %v1331 = vpop.f32.mrf.mxu0
        %v1332 = vadd.f32 %v1099, %v1331
        %1333 = vmatmul.f32.gmra.mxu0 %v1134
        %v1334 = vpop.f32.mrf.mxu0
        %v1335 = vadd.f32 %v1104, %v1334
        %1336 = vmatmul.f32.gmra.mxu0 %v1137
        %v1337 = vpop.f32.mrf.mxu0
        %v1338 = vadd.f32 %v1109, %v1337
        %1339 = vmatmul.f32.gmra.mxu0 %v1140
        %v1340 = vpop.f32.mrf.mxu0
        %v1341 = vadd.f32 %v1114, %v1340
        %1342 = vmatmul.f32.gmra.mxu0 %v1143
        %v1343 = vpop.f32.mrf.mxu0
        %v1344 = vadd.f32 %v1119, %v1343
        %1345 = vmatmul.f32.gmra.mxu0 %v1146
        %v1346 = vpop.f32.mrf.mxu0
        %v1347 = vadd.f32 %v1124, %v1346
        %1348 = vdwg.mxu0
        %1349 = vmatpush.msra.mxu0 0.0
        %1350 = vmatpush.msra.mxu0 0.0
        %1351 = vmatpush.msra.mxu0 0.0
        %1352 = vmatpush.msra.mxu0 0.0
        %1353 = vmatpush.msra.mxu0 0.0
        %1354 = vmatpush.msra.mxu0 0.0
        %1355 = vmatpush.msra.mxu0 0.0
        %1356 = vmatpush.msra.mxu0 0.0
        %1357 = vmatpush.msra.mxu0 0.0
        %1358 = vmatpush.msra.mxu0 %v1162
        %1359 = vmatpush.msra.mxu0 %v1049
        %1360 = vmatpush.msra.mxu0 %v1033
        %1361 = vmatpush.msra.mxu0 %v1017
        %1362 = vmatpush.msra.mxu0 %v1001
        %1363 = vmatpush.msra.mxu0 %v985
        %1364 = vmatpush.msra.mxu0 %v969
        %1365 = vmatmul.f32.gmra.mxu0 %v1128
        %v1366 = vpop.f32.mrf.mxu0
        %v1367 = vadd.f32 %v1094, %v1366
        %1368 = vmatmul.f32.gmra.mxu0 %v1131
        %v1369 = vpop.f32.mrf.mxu0
        %v1370 = vadd.f32 %v1099, %v1369
        %1371 = vmatmul.f32.gmra.mxu0 %v1134
        %v1372 = vpop.f32.mrf.mxu0
        %v1373 = vadd.f32 %v1104, %v1372
        %1374 = vmatmul.f32.gmra.mxu0 %v1137
        %v1375 = vpop.f32.mrf.mxu0
        %v1376 = vadd.f32 %v1109, %v1375
        %1377 = vmatmul.f32.gmra.mxu0 %v1140
        %v1378 = vpop.f32.mrf.mxu0
        %v1379 = vadd.f32 %v1114, %v1378
        %1380 = vmatmul.f32.gmra.mxu0 %v1143
        %v1381 = vpop.f32.mrf.mxu0
        %v1382 = vadd.f32 %v1119, %v1381
        %1383 = vmatmul.f32.gmra.mxu0 %v1146
        %v1384 = vpop.f32.mrf.mxu0
        %v1385 = vadd.f32 %v1124, %v1384
        %1386 = vdwg.mxu0
        %1387 = vmatpush.msra.mxu0 0.0
        %1388 = vmatpush.msra.mxu0 0.0
        %1389 = vmatpush.msra.mxu0 0.0
        %1390 = vmatpush.msra.mxu0 0.0
        %1391 = vmatpush.msra.mxu0 0.0
        %1392 = vmatpush.msra.mxu0 0.0
        %1393 = vmatpush.msra.mxu0 0.0
        %1394 = vmatpush.msra.mxu0 0.0
        %1395 = vmatpush.msra.mxu0 0.0
        %1396 = vmatpush.msra.mxu0 %v1165
        %1397 = vmatpush.msra.mxu0 %v1050
        %1398 = vmatpush.msra.mxu0 %v1034
        %1399 = vmatpush.msra.mxu0 %v1018
        %1400 = vmatpush.msra.mxu0 %v1002
        %1401 = vmatpush.msra.mxu0 %v986
        %1402 = vmatpush.msra.mxu0 %v970
        %1403 = vmatmul.f32.gmra.mxu0 %v1128
        %v1404 = vpop.f32.mrf.mxu0
        %v1405 = vadd.f32 %v1094, %v1404
        %1406 = vmatmul.f32.gmra.mxu0 %v1131
        %v1407 = vpop.f32.mrf.mxu0
        %v1408 = vadd.f32 %v1099, %v1407
        %1409 = vmatmul.f32.gmra.mxu0 %v1134
        %v1410 = vpop.f32.mrf.mxu0
        %v1411 = vadd.f32 %v1104, %v1410
        %1412 = vmatmul.f32.gmra.mxu0 %v1137
        %v1413 = vpop.f32.mrf.mxu0
        %v1414 = vadd.f32 %v1109, %v1413
        %1415 = vmatmul.f32.gmra.mxu0 %v1140
        %v1416 = vpop.f32.mrf.mxu0
        %v1417 = vadd.f32 %v1114, %v1416
        %1418 = vmatmul.f32.gmra.mxu0 %v1143
        %v1419 = vpop.f32.mrf.mxu0
        %v1420 = vadd.f32 %v1119, %v1419
        %1421 = vmatmul.f32.gmra.mxu0 %v1146
        %v1422 = vpop.f32.mrf.mxu0
        %v1423 = vadd.f32 %v1124, %v1422
        %1424 = vdwg.mxu0
        %1425 = vmatpush.msra.mxu0 0.0
        %1426 = vmatpush.msra.mxu0 0.0
        %1427 = vmatpush.msra.mxu0 0.0
        %1428 = vmatpush.msra.mxu0 0.0
        %1429 = vmatpush.msra.mxu0 0.0
        %1430 = vmatpush.msra.mxu0 0.0
        %1431 = vmatpush.msra.mxu0 0.0
        %1432 = vmatpush.msra.mxu0 0.0
        %1433 = vmatpush.msra.mxu0 0.0
        %1434 = vmatpush.msra.mxu0 %v1168
        %1435 = vmatpush.msra.mxu0 %v1051
        %1436 = vmatpush.msra.mxu0 %v1035
        %1437 = vmatpush.msra.mxu0 %v1019
        %1438 = vmatpush.msra.mxu0 %v1003
        %1439 = vmatpush.msra.mxu0 %v987
        %1440 = vmatpush.msra.mxu0 %v971
        %1441 = vmatmul.f32.gmra.mxu0 %v1128
        %v1442 = vpop.f32.mrf.mxu0
        %v1443 = vadd.f32 %v1094, %v1442
        %1444 = vmatmul.f32.gmra.mxu0 %v1131
        %v1445 = vpop.f32.mrf.mxu0
        %v1446 = vadd.f32 %v1099, %v1445
        %1447 = vmatmul.f32.gmra.mxu0 %v1134
        %v1448 = vpop.f32.mrf.mxu0
        %v1449 = vadd.f32 %v1104, %v1448
        %1450 = vmatmul.f32.gmra.mxu0 %v1137
        %v1451 = vpop.f32.mrf.mxu0
        %v1452 = vadd.f32 %v1109, %v1451
        %1453 = vmatmul.f32.gmra.mxu0 %v1140
        %v1454 = vpop.f32.mrf.mxu0
        %v1455 = vadd.f32 %v1114, %v1454
        %1456 = vmatmul.f32.gmra.mxu0 %v1143
        %v1457 = vpop.f32.mrf.mxu0
        %v1458 = vadd.f32 %v1119, %v1457
        %1459 = vmatmul.f32.gmra.mxu0 %v1146
        %v1460 = vpop.f32.mrf.mxu0
        %v1461 = vadd.f32 %v1124, %v1460
        %1462 = vdwg.mxu0
        %1463 = vmatpush.msra.mxu0 0.0
        %1464 = vmatpush.msra.mxu0 0.0
        %1465 = vmatpush.msra.mxu0 0.0
        %1466 = vmatpush.msra.mxu0 0.0
        %1467 = vmatpush.msra.mxu0 0.0
        %1468 = vmatpush.msra.mxu0 0.0
        %1469 = vmatpush.msra.mxu0 0.0
        %1470 = vmatpush.msra.mxu0 0.0
        %1471 = vmatpush.msra.mxu0 0.0
        %1472 = vmatpush.msra.mxu0 %v1171
        %1473 = vmatpush.msra.mxu0 %v1052
        %1474 = vmatpush.msra.mxu0 %v1036
        %1475 = vmatpush.msra.mxu0 %v1020
        %1476 = vmatpush.msra.mxu0 %v1004
        %1477 = vmatpush.msra.mxu0 %v988
        %1478 = vmatpush.msra.mxu0 %v972
        %1479 = vmatmul.f32.gmra.mxu0 %v1128
        %v1480 = vpop.f32.mrf.mxu0
        %v1481 = vadd.f32 %v1094, %v1480
        %1482 = vmatmul.f32.gmra.mxu0 %v1131
        %v1483 = vpop.f32.mrf.mxu0
        %v1484 = vadd.f32 %v1099, %v1483
        %1485 = vmatmul.f32.gmra.mxu0 %v1134
        %v1486 = vpop.f32.mrf.mxu0
        %v1487 = vadd.f32 %v1104, %v1486
        %1488 = vmatmul.f32.gmra.mxu0 %v1137
        %v1489 = vpop.f32.mrf.mxu0
        %v1490 = vadd.f32 %v1109, %v1489
        %1491 = vmatmul.f32.gmra.mxu0 %v1140
        %v1492 = vpop.f32.mrf.mxu0
        %v1493 = vadd.f32 %v1114, %v1492
        %1494 = vmatmul.f32.gmra.mxu0 %v1143
        %v1495 = vpop.f32.mrf.mxu0
        %v1496 = vadd.f32 %v1119, %v1495
        %1497 = vmatmul.f32.gmra.mxu0 %v1146
        %v1498 = vpop.f32.mrf.mxu0
        %v1499 = vadd.f32 %v1124, %v1498
        %1500 = vdwg.mxu0
        %1501 = vmatpush.msra.mxu0 0.0
        %1502 = vmatpush.msra.mxu0 0.0
        %1503 = vmatpush.msra.mxu0 0.0
        %1504 = vmatpush.msra.mxu0 0.0
        %1505 = vmatpush.msra.mxu0 0.0
        %1506 = vmatpush.msra.mxu0 0.0
        %1507 = vmatpush.msra.mxu0 0.0
        %1508 = vmatpush.msra.mxu0 0.0
        %1509 = vmatpush.msra.mxu0 0.0
        %1510 = vmatpush.msra.mxu0 %v1174
        %1511 = vmatpush.msra.mxu0 %v1053
        %1512 = vmatpush.msra.mxu0 %v1037
        %1513 = vmatpush.msra.mxu0 %v1021
        %1514 = vmatpush.msra.mxu0 %v1005
        %1515 = vmatpush.msra.mxu0 %v989
        %1516 = vmatpush.msra.mxu0 %v973
        %1517 = vmatmul.f32.gmra.mxu0 %v1128
        %v1518 = vpop.f32.mrf.mxu0
        %v1519 = vadd.f32 %v1094, %v1518
        %1520 = vmatmul.f32.gmra.mxu0 %v1131
        %v1521 = vpop.f32.mrf.mxu0
        %v1522 = vadd.f32 %v1099, %v1521
        %1523 = vmatmul.f32.gmra.mxu0 %v1134
        %v1524 = vpop.f32.mrf.mxu0
        %v1525 = vadd.f32 %v1104, %v1524
        %1526 = vmatmul.f32.gmra.mxu0 %v1137
        %v1527 = vpop.f32.mrf.mxu0
        %v1528 = vadd.f32 %v1109, %v1527
        %1529 = vmatmul.f32.gmra.mxu0 %v1140
        %v1530 = vpop.f32.mrf.mxu0
        %v1531 = vadd.f32 %v1114, %v1530
        %1532 = vmatmul.f32.gmra.mxu0 %v1143
        %v1533 = vpop.f32.mrf.mxu0
        %v1534 = vadd.f32 %v1119, %v1533
        %1535 = vmatmul.f32.gmra.mxu0 %v1146
        %v1536 = vpop.f32.mrf.mxu0
        %v1537 = vadd.f32 %v1124, %v1536
        %1538 = vdwg.mxu0
        %1539 = vmatpush.msra.mxu0 0.0
        %1540 = vmatpush.msra.mxu0 0.0
        %1541 = vmatpush.msra.mxu0 0.0
        %1542 = vmatpush.msra.mxu0 0.0
        %1543 = vmatpush.msra.mxu0 0.0
        %1544 = vmatpush.msra.mxu0 0.0
        %1545 = vmatpush.msra.mxu0 0.0
        %1546 = vmatpush.msra.mxu0 0.0
        %1547 = vmatpush.msra.mxu0 0.0
        %1548 = vmatpush.msra.mxu0 %v1177
        %1549 = vmatpush.msra.mxu0 %v1054
        %1550 = vmatpush.msra.mxu0 %v1038
        %1551 = vmatpush.msra.mxu0 %v1022
        %1552 = vmatpush.msra.mxu0 %v1006
        %1553 = vmatpush.msra.mxu0 %v990
        %1554 = vmatpush.msra.mxu0 %v974
        %1555 = vmatmul.f32.gmra.mxu0 %v1128
        %v1556 = vpop.f32.mrf.mxu0
        %v1557 = vadd.f32 %v1094, %v1556
        %1558 = vmatmul.f32.gmra.mxu0 %v1131
        %v1559 = vpop.f32.mrf.mxu0
        %v1560 = vadd.f32 %v1099, %v1559
        %1561 = vmatmul.f32.gmra.mxu0 %v1134
        %v1562 = vpop.f32.mrf.mxu0
        %v1563 = vadd.f32 %v1104, %v1562
        %1564 = vmatmul.f32.gmra.mxu0 %v1137
        %v1565 = vpop.f32.mrf.mxu0
        %v1566 = vadd.f32 %v1109, %v1565
        %1567 = vmatmul.f32.gmra.mxu0 %v1140
        %v1568 = vpop.f32.mrf.mxu0
        %v1569 = vadd.f32 %v1114, %v1568
        %1570 = vmatmul.f32.gmra.mxu0 %v1143
        %v1571 = vpop.f32.mrf.mxu0
        %v1572 = vadd.f32 %v1119, %v1571
        %1573 = vmatmul.f32.gmra.mxu0 %v1146
        %v1574 = vpop.f32.mrf.mxu0
        %v1575 = vadd.f32 %v1124, %v1574
        %1576 = vdwg.mxu0
        %1577 = vmatpush.msra.mxu0 0.0
        %1578 = vmatpush.msra.mxu0 0.0
        %1579 = vmatpush.msra.mxu0 0.0
        %1580 = vmatpush.msra.mxu0 0.0
        %1581 = vmatpush.msra.mxu0 0.0
        %1582 = vmatpush.msra.mxu0 0.0
        %1583 = vmatpush.msra.mxu0 0.0
        %1584 = vmatpush.msra.mxu0 0.0
        %1585 = vmatpush.msra.mxu0 0.0
        %1586 = vmatpush.msra.mxu0 %v1180
        %1587 = vmatpush.msra.mxu0 %v1055
        %1588 = vmatpush.msra.mxu0 %v1039
        %1589 = vmatpush.msra.mxu0 %v1023
        %1590 = vmatpush.msra.mxu0 %v1007
        %1591 = vmatpush.msra.mxu0 %v991
        %1592 = vmatpush.msra.mxu0 %v975
        %1593 = vmatmul.f32.gmra.mxu0 %v1128
        %v1594 = vpop.f32.mrf.mxu0
        %v1595 = vadd.f32 %v1094, %v1594
        %1596 = vmatmul.f32.gmra.mxu0 %v1131
        %v1597 = vpop.f32.mrf.mxu0
        %v1598 = vadd.f32 %v1099, %v1597
        %1599 = vmatmul.f32.gmra.mxu0 %v1134
        %v1600 = vpop.f32.mrf.mxu0
        %v1601 = vadd.f32 %v1104, %v1600
        %1602 = vmatmul.f32.gmra.mxu0 %v1137
        %v1603 = vpop.f32.mrf.mxu0
        %v1604 = vadd.f32 %v1109, %v1603
        %1605 = vmatmul.f32.gmra.mxu0 %v1140
        %v1606 = vpop.f32.mrf.mxu0
        %v1607 = vadd.f32 %v1114, %v1606
        %1608 = vmatmul.f32.gmra.mxu0 %v1143
        %v1609 = vpop.f32.mrf.mxu0
        %v1610 = vadd.f32 %v1119, %v1609
        %1611 = vmatmul.f32.gmra.mxu0 %v1146
        %v1612 = vpop.f32.mrf.mxu0
        %v1613 = vadd.f32 %v1124, %v1612
        %1614 = vdwg.mxu0
        %1615 = vmatpush.msra.mxu0 0.0
        %1616 = vmatpush.msra.mxu0 0.0
        %1617 = vmatpush.msra.mxu0 0.0
        %1618 = vmatpush.msra.mxu0 0.0
        %1619 = vmatpush.msra.mxu0 0.0
        %1620 = vmatpush.msra.mxu0 0.0
        %1621 = vmatpush.msra.mxu0 0.0
        %1622 = vmatpush.msra.mxu0 0.0
        %1623 = vmatpush.msra.mxu0 0.0
        %1624 = vmatpush.msra.mxu0 %v1183
        %1625 = vmatpush.msra.mxu0 %v1056
        %1626 = vmatpush.msra.mxu0 %v1040
        %1627 = vmatpush.msra.mxu0 %v1024
        %1628 = vmatpush.msra.mxu0 %v1008
        %1629 = vmatpush.msra.mxu0 %v992
        %1630 = vmatpush.msra.mxu0 %v976
        %1631 = vmatmul.f32.gmra.mxu0 %v1128
        %v1632 = vpop.f32.mrf.mxu0
        %v1633 = vadd.f32 %v1094, %v1632
        %1634 = vmatmul.f32.gmra.mxu0 %v1131
        %v1635 = vpop.f32.mrf.mxu0
        %v1636 = vadd.f32 %v1099, %v1635
        %1637 = vmatmul.f32.gmra.mxu0 %v1134
        %v1638 = vpop.f32.mrf.mxu0
        %v1639 = vadd.f32 %v1104, %v1638
        %1640 = vmatmul.f32.gmra.mxu0 %v1137
        %v1641 = vpop.f32.mrf.mxu0
        %v1642 = vadd.f32 %v1109, %v1641
        %1643 = vmatmul.f32.gmra.mxu0 %v1140
        %v1644 = vpop.f32.mrf.mxu0
        %v1645 = vadd.f32 %v1114, %v1644
        %1646 = vmatmul.f32.gmra.mxu0 %v1143
        %v1647 = vpop.f32.mrf.mxu0
        %v1648 = vadd.f32 %v1119, %v1647
        %1649 = vmatmul.f32.gmra.mxu0 %v1146
        %v1650 = vpop.f32.mrf.mxu0
        %v1651 = vadd.f32 %v1124, %v1650
        %1652 = vdwg.mxu0
        %1653 = vmatpush.msra.mxu0 0.0
        %1654 = vmatpush.msra.mxu0 0.0
        %1655 = vmatpush.msra.mxu0 0.0
        %1656 = vmatpush.msra.mxu0 0.0
        %1657 = vmatpush.msra.mxu0 0.0
        %1658 = vmatpush.msra.mxu0 0.0
        %1659 = vmatpush.msra.mxu0 0.0
        %1660 = vmatpush.msra.mxu0 0.0
        %1661 = vmatpush.msra.mxu0 0.0
        %1662 = vmatpush.msra.mxu0 %v1186
        %1663 = vmatpush.msra.mxu0 %v1057
        %1664 = vmatpush.msra.mxu0 %v1041
        %1665 = vmatpush.msra.mxu0 %v1025
        %1666 = vmatpush.msra.mxu0 %v1009
        %1667 = vmatpush.msra.mxu0 %v993
        %1668 = vmatpush.msra.mxu0 %v977
        %1669 = vmatmul.f32.gmra.mxu0 %v1128
        %v1670 = vpop.f32.mrf.mxu0
        %v1671 = vadd.f32 %v1094, %v1670
        %1672 = vmatmul.f32.gmra.mxu0 %v1131
        %v1673 = vpop.f32.mrf.mxu0
        %v1674 = vadd.f32 %v1099, %v1673
        %1675 = vmatmul.f32.gmra.mxu0 %v1134
        %v1676 = vpop.f32.mrf.mxu0
        %v1677 = vadd.f32 %v1104, %v1676
        %1678 = vmatmul.f32.gmra.mxu0 %v1137
        %v1679 = vpop.f32.mrf.mxu0
        %v1680 = vadd.f32 %v1109, %v1679
        %1681 = vmatmul.f32.gmra.mxu0 %v1140
        %v1682 = vpop.f32.mrf.mxu0
        %v1683 = vadd.f32 %v1114, %v1682
        %1684 = vmatmul.f32.gmra.mxu0 %v1143
        %v1685 = vpop.f32.mrf.mxu0
        %v1686 = vadd.f32 %v1119, %v1685
        %1687 = vmatmul.f32.gmra.mxu0 %v1146
        %v1688 = vpop.f32.mrf.mxu0
        %v1689 = vadd.f32 %v1124, %v1688
        %1690 = vdwg.mxu0
        %1691 = vmatpush.msra.mxu0 0.0
        %1692 = vmatpush.msra.mxu0 0.0
        %1693 = vmatpush.msra.mxu0 0.0
        %1694 = vmatpush.msra.mxu0 0.0
        %1695 = vmatpush.msra.mxu0 0.0
        %1696 = vmatpush.msra.mxu0 0.0
        %1697 = vmatpush.msra.mxu0 0.0
        %1698 = vmatpush.msra.mxu0 0.0
        %1699 = vmatpush.msra.mxu0 0.0
        %1700 = vmatpush.msra.mxu0 %v1189
        %1701 = vmatpush.msra.mxu0 %v1058
        %1702 = vmatpush.msra.mxu0 %v1042
        %1703 = vmatpush.msra.mxu0 %v1026
        %1704 = vmatpush.msra.mxu0 %v1010
        %1705 = vmatpush.msra.mxu0 %v994
        %1706 = vmatpush.msra.mxu0 %v978
        %1707 = vmatmul.f32.gmra.mxu0 %v1128
        %v1708 = vpop.f32.mrf.mxu0
        %v1709 = vadd.f32 %v1094, %v1708
        %1710 = vmatmul.f32.gmra.mxu0 %v1131
        %v1711 = vpop.f32.mrf.mxu0
        %v1712 = vadd.f32 %v1099, %v1711
        %1713 = vmatmul.f32.gmra.mxu0 %v1134
        %v1714 = vpop.f32.mrf.mxu0
        %v1715 = vadd.f32 %v1104, %v1714
        %1716 = vmatmul.f32.gmra.mxu0 %v1137
        %v1717 = vpop.f32.mrf.mxu0
        %v1718 = vadd.f32 %v1109, %v1717
        %1719 = vmatmul.f32.gmra.mxu0 %v1140
        %v1720 = vpop.f32.mrf.mxu0
        %v1721 = vadd.f32 %v1114, %v1720
        %1722 = vmatmul.f32.gmra.mxu0 %v1143
        %v1723 = vpop.f32.mrf.mxu0
        %v1724 = vadd.f32 %v1119, %v1723
        %1725 = vmatmul.f32.gmra.mxu0 %v1146
        %v1726 = vpop.f32.mrf.mxu0
        %v1727 = vadd.f32 %v1124, %v1726
        %1728 = vdwg.mxu0
        %1729 = vmatpush.msra.mxu0 0.0
        %1730 = vmatpush.msra.mxu0 0.0
        %1731 = vmatpush.msra.mxu0 0.0
        %1732 = vmatpush.msra.mxu0 0.0
        %1733 = vmatpush.msra.mxu0 0.0
        %1734 = vmatpush.msra.mxu0 0.0
        %1735 = vmatpush.msra.mxu0 0.0
        %1736 = vmatpush.msra.mxu0 0.0
        %1737 = vmatpush.msra.mxu0 0.0
        %1738 = vmatpush.msra.mxu0 %v1192
        %1739 = vmatpush.msra.mxu0 %v1059
        %1740 = vmatpush.msra.mxu0 %v1043
        %1741 = vmatpush.msra.mxu0 %v1027
        %1742 = vmatpush.msra.mxu0 %v1011
        %1743 = vmatpush.msra.mxu0 %v995
        %1744 = vmatpush.msra.mxu0 %v979
        %1745 = vmatmul.f32.gmra.mxu0 %v1128
        %v1746 = vpop.f32.mrf.mxu0
        %v1747 = vadd.f32 %v1094, %v1746
        %1748 = vmatmul.f32.gmra.mxu0 %v1131
        %v1749 = vpop.f32.mrf.mxu0
        %v1750 = vadd.f32 %v1099, %v1749
        %1751 = vmatmul.f32.gmra.mxu0 %v1134
        %v1752 = vpop.f32.mrf.mxu0
        %v1753 = vadd.f32 %v1104, %v1752
        %1754 = vmatmul.f32.gmra.mxu0 %v1137
        %v1755 = vpop.f32.mrf.mxu0
        %v1756 = vadd.f32 %v1109, %v1755
        %1757 = vmatmul.f32.gmra.mxu0 %v1140
        %v1758 = vpop.f32.mrf.mxu0
        %v1759 = vadd.f32 %v1114, %v1758
        %1760 = vmatmul.f32.gmra.mxu0 %v1143
        %v1761 = vpop.f32.mrf.mxu0
        %v1762 = vadd.f32 %v1119, %v1761
        %1763 = vmatmul.f32.gmra.mxu0 %v1146
        %v1764 = vpop.f32.mrf.mxu0
        %v1765 = vadd.f32 %v1124, %v1764
        %1766 = vdwg.mxu0
        %1767 = vmatpush.msra.mxu0 0.0
        %1768 = vmatpush.msra.mxu0 0.0
        %1769 = vmatpush.msra.mxu0 0.0
        %1770 = vmatpush.msra.mxu0 0.0
        %1771 = vmatpush.msra.mxu0 0.0
        %1772 = vmatpush.msra.mxu0 0.0
        %1773 = vmatpush.msra.mxu0 0.0
        %1774 = vmatpush.msra.mxu0 0.0
        %1775 = vmatpush.msra.mxu0 0.0
        %1776 = vmatpush.msra.mxu0 %v1195
        %1777 = vmatpush.msra.mxu0 %v1060
        %1778 = vmatpush.msra.mxu0 %v1044
        %1779 = vmatpush.msra.mxu0 %v1028
        %1780 = vmatpush.msra.mxu0 %v1012
        %1781 = vmatpush.msra.mxu0 %v996
        %1782 = vmatpush.msra.mxu0 %v980
        %1783 = vmatmul.f32.gmra.mxu0 %v1128
        %v1784 = vpop.f32.mrf.mxu0
        %v1785 = vadd.f32 %v1094, %v1784
        %1786 = vmatmul.f32.gmra.mxu0 %v1131
        %v1787 = vpop.f32.mrf.mxu0
        %v1788 = vadd.f32 %v1099, %v1787
        %1789 = vmatmul.f32.gmra.mxu0 %v1134
        %v1790 = vpop.f32.mrf.mxu0
        %v1791 = vadd.f32 %v1104, %v1790
        %1792 = vmatmul.f32.gmra.mxu0 %v1137
        %v1793 = vpop.f32.mrf.mxu0
        %v1794 = vadd.f32 %v1109, %v1793
        %1795 = vmatmul.f32.gmra.mxu0 %v1140
        %v1796 = vpop.f32.mrf.mxu0
        %v1797 = vadd.f32 %v1114, %v1796
        %1798 = vmatmul.f32.gmra.mxu0 %v1143
        %v1799 = vpop.f32.mrf.mxu0
        %v1800 = vadd.f32 %v1119, %v1799
        %1801 = vmatmul.f32.gmra.mxu0 %v1146
        %v1802 = vpop.f32.mrf.mxu0
        %v1803 = vadd.f32 %v1124, %v1802
        %1804 = vdwg.mxu0
        %v1805 = vtanh.pop %v1215
        %v1806 = vtanh.pop %v1253
        %v1807 = vtanh.pop %v1291
        %v1808 = vtanh.pop %v1329
        %v1809 = vtanh.pop %v1367
        %v1810 = vtanh.pop %v1405
        %v1811 = vtanh.pop %v1443
        %v1812 = vtanh.pop %v1481
        %v1813 = vtanh.pop %v1519
        %v1814 = vtanh.pop %v1557
        %v1815 = vtanh.pop %v1595
        %v1816 = vtanh.pop %v1633
        %v1817 = vtanh.pop %v1671
        %v1818 = vtanh.pop %v1709
        %v1819 = vtanh.pop %v1747
        %v1820 = vtanh.pop %v1785
        %v1821 = vtanh.pop %v1218
        %v1822 = vtanh.pop %v1256
        %v1823 = vtanh.pop %v1294
        %v1824 = vtanh.pop %v1332
        %v1825 = vtanh.pop %v1370
        %v1826 = vtanh.pop %v1408
        %v1827 = vtanh.pop %v1446
        %v1828 = vtanh.pop %v1484
        %v1829 = vtanh.pop %v1522
        %v1830 = vtanh.pop %v1560
        %v1831 = vtanh.pop %v1598
        %v1832 = vtanh.pop %v1636
        %v1833 = vtanh.pop %v1674
        %v1834 = vtanh.pop %v1712
        %v1835 = vtanh.pop %v1750
        %v1836 = vtanh.pop %v1788
        %v1837 = vtanh.pop %v1221
        %v1838 = vtanh.pop %v1259
        %v1839 = vtanh.pop %v1297
        %v1840 = vtanh.pop %v1335
        %v1841 = vtanh.pop %v1373
        %v1842 = vtanh.pop %v1411
        %v1843 = vtanh.pop %v1449
        %v1844 = vtanh.pop %v1487
        %v1845 = vtanh.pop %v1525
        %v1846 = vtanh.pop %v1563
        %v1847 = vtanh.pop %v1601
        %v1848 = vtanh.pop %v1639
        %v1849 = vtanh.pop %v1677
        %v1850 = vtanh.pop %v1715
        %v1851 = vtanh.pop %v1753
        %v1852 = vtanh.pop %v1791
        %v1853 = vtanh.pop %v1224
        %v1854 = vtanh.pop %v1262
        %v1855 = vtanh.pop %v1300
        %v1856 = vtanh.pop %v1338
        %v1857 = vtanh.pop %v1376
        %v1858 = vtanh.pop %v1414
        %v1859 = vtanh.pop %v1452
        %v1860 = vtanh.pop %v1490
        %v1861 = vtanh.pop %v1528
        %v1862 = vtanh.pop %v1566
        %v1863 = vtanh.pop %v1604
        %v1864 = vtanh.pop %v1642
        %v1865 = vtanh.pop %v1680
        %v1866 = vtanh.pop %v1718
        %v1867 = vtanh.pop %v1756
        %v1868 = vtanh.pop %v1794
        %v1869 = vtanh.pop %v1227
        %v1870 = vtanh.pop %v1265
        %v1871 = vtanh.pop %v1303
        %v1872 = vtanh.pop %v1341
        %v1873 = vtanh.pop %v1379
        %v1874 = vtanh.pop %v1417
        %v1875 = vtanh.pop %v1455
        %v1876 = vtanh.pop %v1493
        %v1877 = vtanh.pop %v1531
        %v1878 = vtanh.pop %v1569
        %v1879 = vtanh.pop %v1607
        %v1880 = vtanh.pop %v1645
        %v1881 = vtanh.pop %v1683
        %v1882 = vtanh.pop %v1721
        %v1883 = vtanh.pop %v1759
        %v1884 = vtanh.pop %v1797
        %v1885 = vtanh.pop %v1230
        %v1886 = vtanh.pop %v1268
        %v1887 = vtanh.pop %v1306
        %v1888 = vtanh.pop %v1344
        %v1889 = vtanh.pop %v1382
        %v1890 = vtanh.pop %v1420
        %v1891 = vtanh.pop %v1458
        %v1892 = vtanh.pop %v1496
        %v1893 = vtanh.pop %v1534
        %v1894 = vtanh.pop %v1572
        %v1895 = vtanh.pop %v1610
        %v1896 = vtanh.pop %v1648
        %v1897 = vtanh.pop %v1686
        %v1898 = vtanh.pop %v1724
        %v1899 = vtanh.pop %v1762
        %v1900 = vtanh.pop %v1800
        %v1901 = vtanh.pop %v1233
        %v1902 = vtanh.pop %v1271
        %v1903 = vtanh.pop %v1309
        %v1904 = vtanh.pop %v1347
        %v1905 = vtanh.pop %v1385
        %v1906 = vtanh.pop %v1423
        %v1907 = vtanh.pop %v1461
        %v1908 = vtanh.pop %v1499
        %v1909 = vtanh.pop %v1537
        %v1910 = vtanh.pop %v1575
        %v1911 = vtanh.pop %v1613
        %v1912 = vtanh.pop %v1651
        %v1913 = vtanh.pop %v1689
        %v1914 = vtanh.pop %v1727
        %v1915 = vtanh.pop %v1765
        %v1916 = vtanh.pop %v1803
        %s1917 = scalar_lea.vmem %s3, 56
        %v1918 = vld [vmem:[%s1917] sm:$0xff]
        %v1919 = vld [vmem:[%s1917 + $0x8] sm:$0xff]
        %v1920 = vld [vmem:[%s1917 + $0x10] sm:$0xff]
        %v1921 = vld [vmem:[%s1917 + $0x18] sm:$0xff]
        %v1922 = vld [vmem:[%s1917 + $0x20] sm:$0xff]
        %v1923 = vld [vmem:[%s1917 + $0x28] sm:$0xff]
        %v1924 = vld [vmem:[%s1917 + $0x30] sm:$0x3]
        %s1925 = scalar_lea.vmem %s4, 56
        %v1926 = vld [vmem:[%s1925] sm:$0xff]
        %v1927 = vld [vmem:[%s1925 + $0x8] sm:$0xff]
        %v1928 = vld [vmem:[%s1925 + $0x10] sm:$0xff]
        %v1929 = vld [vmem:[%s1925 + $0x18] sm:$0xff]
        %v1930 = vld [vmem:[%s1925 + $0x20] sm:$0xff]
        %v1931 = vld [vmem:[%s1925 + $0x28] sm:$0xff]
        %v1932 = vld [vmem:[%s1925 + $0x30] sm:$0x3]
        %1934 = vset.pattern.permute.xlu0 0
        %1935 = vperm.xlu0 %1934, %v1926
        %v1936 = vpop.permute.xlu0 %1935
        %1939 = vset.pattern.permute.xlu0 0
        %1940 = vperm.xlu0 %1939, %v1927
        %v1941 = vpop.permute.xlu0 %1940
        %1944 = vset.pattern.permute.xlu0 0
        %1945 = vperm.xlu0 %1944, %v1928
        %v1946 = vpop.permute.xlu0 %1945
        %1949 = vset.pattern.permute.xlu0 0
        %1950 = vperm.xlu0 %1949, %v1929
        %v1951 = vpop.permute.xlu0 %1950
        %1954 = vset.pattern.permute.xlu0 0
        %1955 = vperm.xlu0 %1954, %v1930
        %v1956 = vpop.permute.xlu0 %1955
        %1959 = vset.pattern.permute.xlu0 0
        %1960 = vperm.xlu0 %1959, %v1931
        %v1961 = vpop.permute.xlu0 %1960
        %1964 = vset.pattern.permute.xlu0 0
        %1965 = vperm.xlu0 %1964, %v1932
        %v1966 = vpop.permute.xlu0 %1965
        %v1969 = vsel %vm1126, %v1918, 0
        %v1972 = vsel %vm1126, %v1919, 0
        %v1975 = vsel %vm1126, %v1920, 0
        %v1978 = vsel %vm1126, %v1921, 0
        %v1981 = vsel %vm1126, %v1922, 0
        %v1984 = vsel %vm1126, %v1923, 0
        %v1987 = vsel %vm1126, %v1924, 0
        %v1990 = vsel %vm1148, %v1901, 0
        %v1993 = vsel %vm1148, %v1902, 0
        %v1996 = vsel %vm1148, %v1903, 0
        %v1999 = vsel %vm1148, %v1904, 0
        %v2002 = vsel %vm1148, %v1905, 0
        %v2005 = vsel %vm1148, %v1906, 0
        %v2008 = vsel %vm1148, %v1907, 0
        %v2011 = vsel %vm1148, %v1908, 0
        %v2014 = vsel %vm1148, %v1909, 0
        %v2017 = vsel %vm1148, %v1910, 0
        %v2020 = vsel %vm1148, %v1911, 0
        %v2023 = vsel %vm1148, %v1912, 0
        %v2026 = vsel %vm1148, %v1913, 0
        %v2029 = vsel %vm1148, %v1914, 0
        %v2032 = vsel %vm1148, %v1915, 0
        %v2035 = vsel %vm1148, %v1916, 0
        %2037 = vmatpush.msra.mxu0 0.0
        %2038 = vmatpush.msra.mxu0 0.0
        %2039 = vmatpush.msra.mxu0 0.0
        %2040 = vmatpush.msra.mxu0 0.0
        %2041 = vmatpush.msra.mxu0 0.0
        %2042 = vmatpush.msra.mxu0 0.0
        %2043 = vmatpush.msra.mxu0 0.0
        %2044 = vmatpush.msra.mxu0 0.0
        %2045 = vmatpush.msra.mxu0 0.0
        %2046 = vmatpush.msra.mxu0 %v1990
        %2047 = vmatpush.msra.mxu0 %v1885
        %2048 = vmatpush.msra.mxu0 %v1869
        %2049 = vmatpush.msra.mxu0 %v1853
        %2050 = vmatpush.msra.mxu0 %v1837
        %2051 = vmatpush.msra.mxu0 %v1821
        %2052 = vmatpush.msra.mxu0 %v1805
        %2053 = vmatmul.f32.gmra.mxu0 %v1969
        %v2054 = vpop.f32.mrf.mxu0
        %v2055 = vadd.f32 %v1936, %v2054
        %2056 = vmatmul.f32.gmra.mxu0 %v1972
        %v2057 = vpop.f32.mrf.mxu0
        %v2058 = vadd.f32 %v1941, %v2057
        %2059 = vmatmul.f32.gmra.mxu0 %v1975
        %v2060 = vpop.f32.mrf.mxu0
        %v2061 = vadd.f32 %v1946, %v2060
        %2062 = vmatmul.f32.gmra.mxu0 %v1978
        %v2063 = vpop.f32.mrf.mxu0
        %v2064 = vadd.f32 %v1951, %v2063
        %2065 = vmatmul.f32.gmra.mxu0 %v1981
        %v2066 = vpop.f32.mrf.mxu0
        %v2067 = vadd.f32 %v1956, %v2066
        %2068 = vmatmul.f32.gmra.mxu0 %v1984
        %v2069 = vpop.f32.mrf.mxu0
        %v2070 = vadd.f32 %v1961, %v2069
        %2071 = vmatmul.f32.gmra.mxu0 %v1987
        %v2072 = vpop.f32.mrf.mxu0
        %v2073 = vadd.f32 %v1966, %v2072
        %2074 = vdwg.mxu0
        %2075 = vmatpush.msra.mxu0 0.0
        %2076 = vmatpush.msra.mxu0 0.0
        %2077 = vmatpush.msra.mxu0 0.0
        %2078 = vmatpush.msra.mxu0 0.0
        %2079 = vmatpush.msra.mxu0 0.0
        %2080 = vmatpush.msra.mxu0 0.0
        %2081 = vmatpush.msra.mxu0 0.0
        %2082 = vmatpush.msra.mxu0 0.0
        %2083 = vmatpush.msra.mxu0 0.0
        %2084 = vmatpush.msra.mxu0 %v1993
        %2085 = vmatpush.msra.mxu0 %v1886
        %2086 = vmatpush.msra.mxu0 %v1870
        %2087 = vmatpush.msra.mxu0 %v1854
        %2088 = vmatpush.msra.mxu0 %v1838
        %2089 = vmatpush.msra.mxu0 %v1822
        %2090 = vmatpush.msra.mxu0 %v1806
        %2091 = vmatmul.f32.gmra.mxu0 %v1969
        %v2092 = vpop.f32.mrf.mxu0
        %v2093 = vadd.f32 %v1936, %v2092
        %2094 = vmatmul.f32.gmra.mxu0 %v1972
        %v2095 = vpop.f32.mrf.mxu0
        %v2096 = vadd.f32 %v1941, %v2095
        %2097 = vmatmul.f32.gmra.mxu0 %v1975
        %v2098 = vpop.f32.mrf.mxu0
        %v2099 = vadd.f32 %v1946, %v2098
        %2100 = vmatmul.f32.gmra.mxu0 %v1978
        %v2101 = vpop.f32.mrf.mxu0
        %v2102 = vadd.f32 %v1951, %v2101
        %2103 = vmatmul.f32.gmra.mxu0 %v1981
        %v2104 = vpop.f32.mrf.mxu0
        %v2105 = vadd.f32 %v1956, %v2104
        %2106 = vmatmul.f32.gmra.mxu0 %v1984
        %v2107 = vpop.f32.mrf.mxu0
        %v2108 = vadd.f32 %v1961, %v2107
        %2109 = vmatmul.f32.gmra.mxu0 %v1987
        %v2110 = vpop.f32.mrf.mxu0
        %v2111 = vadd.f32 %v1966, %v2110
        %2112 = vdwg.mxu0
        %2113 = vmatpush.msra.mxu0 0.0
        %2114 = vmatpush.msra.mxu0 0.0
        %2115 = vmatpush.msra.mxu0 0.0
        %2116 = vmatpush.msra.mxu0 0.0
        %2117 = vmatpush.msra.mxu0 0.0
        %2118 = vmatpush.msra.mxu0 0.0
        %2119 = vmatpush.msra.mxu0 0.0
        %2120 = vmatpush.msra.mxu0 0.0
        %2121 = vmatpush.msra.mxu0 0.0
        %2122 = vmatpush.msra.mxu0 %v1996
        %2123 = vmatpush.msra.mxu0 %v1887
        %2124 = vmatpush.msra.mxu0 %v1871
        %2125 = vmatpush.msra.mxu0 %v1855
        %2126 = vmatpush.msra.mxu0 %v1839
        %2127 = vmatpush.msra.mxu0 %v1823
        %2128 = vmatpush.msra.mxu0 %v1807
        %2129 = vmatmul.f32.gmra.mxu0 %v1969
        %v2130 = vpop.f32.mrf.mxu0
        %v2131 = vadd.f32 %v1936, %v2130
        %2132 = vmatmul.f32.gmra.mxu0 %v1972
        %v2133 = vpop.f32.mrf.mxu0
        %v2134 = vadd.f32 %v1941, %v2133
        %2135 = vmatmul.f32.gmra.mxu0 %v1975
        %v2136 = vpop.f32.mrf.mxu0
        %v2137 = vadd.f32 %v1946, %v2136
        %2138 = vmatmul.f32.gmra.mxu0 %v1978
        %v2139 = vpop.f32.mrf.mxu0
        %v2140 = vadd.f32 %v1951, %v2139
        %2141 = vmatmul.f32.gmra.mxu0 %v1981
        %v2142 = vpop.f32.mrf.mxu0
        %v2143 = vadd.f32 %v1956, %v2142
        %2144 = vmatmul.f32.gmra.mxu0 %v1984
        %v2145 = vpop.f32.mrf.mxu0
        %v2146 = vadd.f32 %v1961, %v2145
        %2147 = vmatmul.f32.gmra.mxu0 %v1987
        %v2148 = vpop.f32.mrf.mxu0
        %v2149 = vadd.f32 %v1966, %v2148
        %2150 = vdwg.mxu0
        %2151 = vmatpush.msra.mxu0 0.0
        %2152 = vmatpush.msra.mxu0 0.0
        %2153 = vmatpush.msra.mxu0 0.0
        %2154 = vmatpush.msra.mxu0 0.0
        %2155 = vmatpush.msra.mxu0 0.0
        %2156 = vmatpush.msra.mxu0 0.0
        %2157 = vmatpush.msra.mxu0 0.0
        %2158 = vmatpush.msra.mxu0 0.0
        %2159 = vmatpush.msra.mxu0 0.0
        %2160 = vmatpush.msra.mxu0 %v1999
        %2161 = vmatpush.msra.mxu0 %v1888
        %2162 = vmatpush.msra.mxu0 %v1872
        %2163 = vmatpush.msra.mxu0 %v1856
        %2164 = vmatpush.msra.mxu0 %v1840
        %2165 = vmatpush.msra.mxu0 %v1824
        %2166 = vmatpush.msra.mxu0 %v1808
        %2167 = vmatmul.f32.gmra.mxu0 %v1969
        %v2168 = vpop.f32.mrf.mxu0
        %v2169 = vadd.f32 %v1936, %v2168
        %2170 = vmatmul.f32.gmra.mxu0 %v1972
        %v2171 = vpop.f32.mrf.mxu0
        %v2172 = vadd.f32 %v1941, %v2171
        %2173 = vmatmul.f32.gmra.mxu0 %v1975
        %v2174 = vpop.f32.mrf.mxu0
        %v2175 = vadd.f32 %v1946, %v2174
        %2176 = vmatmul.f32.gmra.mxu0 %v1978
        %v2177 = vpop.f32.mrf.mxu0
        %v2178 = vadd.f32 %v1951, %v2177
        %2179 = vmatmul.f32.gmra.mxu0 %v1981
        %v2180 = vpop.f32.mrf.mxu0
        %v2181 = vadd.f32 %v1956, %v2180
        %2182 = vmatmul.f32.gmra.mxu0 %v1984
        %v2183 = vpop.f32.mrf.mxu0
        %v2184 = vadd.f32 %v1961, %v2183
        %2185 = vmatmul.f32.gmra.mxu0 %v1987
        %v2186 = vpop.f32.mrf.mxu0
        %v2187 = vadd.f32 %v1966, %v2186
        %2188 = vdwg.mxu0
        %2189 = vmatpush.msra.mxu0 0.0
        %2190 = vmatpush.msra.mxu0 0.0
        %2191 = vmatpush.msra.mxu0 0.0
        %2192 = vmatpush.msra.mxu0 0.0
        %2193 = vmatpush.msra.mxu0 0.0
        %2194 = vmatpush.msra.mxu0 0.0
        %2195 = vmatpush.msra.mxu0 0.0
        %2196 = vmatpush.msra.mxu0 0.0
        %2197 = vmatpush.msra.mxu0 0.0
        %2198 = vmatpush.msra.mxu0 %v2002
        %2199 = vmatpush.msra.mxu0 %v1889
        %2200 = vmatpush.msra.mxu0 %v1873
        %2201 = vmatpush.msra.mxu0 %v1857
        %2202 = vmatpush.msra.mxu0 %v1841
        %2203 = vmatpush.msra.mxu0 %v1825
        %2204 = vmatpush.msra.mxu0 %v1809
        %2205 = vmatmul.f32.gmra.mxu0 %v1969
        %v2206 = vpop.f32.mrf.mxu0
        %v2207 = vadd.f32 %v1936, %v2206
        %2208 = vmatmul.f32.gmra.mxu0 %v1972
        %v2209 = vpop.f32.mrf.mxu0
        %v2210 = vadd.f32 %v1941, %v2209
        %2211 = vmatmul.f32.gmra.mxu0 %v1975
        %v2212 = vpop.f32.mrf.mxu0
        %v2213 = vadd.f32 %v1946, %v2212
        %2214 = vmatmul.f32.gmra.mxu0 %v1978
        %v2215 = vpop.f32.mrf.mxu0
        %v2216 = vadd.f32 %v1951, %v2215
        %2217 = vmatmul.f32.gmra.mxu0 %v1981
        %v2218 = vpop.f32.mrf.mxu0
        %v2219 = vadd.f32 %v1956, %v2218
        %2220 = vmatmul.f32.gmra.mxu0 %v1984
        %v2221 = vpop.f32.mrf.mxu0
        %v2222 = vadd.f32 %v1961, %v2221
        %2223 = vmatmul.f32.gmra.mxu0 %v1987
        %v2224 = vpop.f32.mrf.mxu0
        %v2225 = vadd.f32 %v1966, %v2224
        %2226 = vdwg.mxu0
        %2227 = vmatpush.msra.mxu0 0.0
        %2228 = vmatpush.msra.mxu0 0.0
        %2229 = vmatpush.msra.mxu0 0.0
        %2230 = vmatpush.msra.mxu0 0.0
        %2231 = vmatpush.msra.mxu0 0.0
        %2232 = vmatpush.msra.mxu0 0.0
        %2233 = vmatpush.msra.mxu0 0.0
        %2234 = vmatpush.msra.mxu0 0.0
        %2235 = vmatpush.msra.mxu0 0.0
        %2236 = vmatpush.msra.mxu0 %v2005
        %2237 = vmatpush.msra.mxu0 %v1890
        %2238 = vmatpush.msra.mxu0 %v1874
        %2239 = vmatpush.msra.mxu0 %v1858
        %2240 = vmatpush.msra.mxu0 %v1842
        %2241 = vmatpush.msra.mxu0 %v1826
        %2242 = vmatpush.msra.mxu0 %v1810
        %2243 = vmatmul.f32.gmra.mxu0 %v1969
        %v2244 = vpop.f32.mrf.mxu0
        %v2245 = vadd.f32 %v1936, %v2244
        %2246 = vmatmul.f32.gmra.mxu0 %v1972
        %v2247 = vpop.f32.mrf.mxu0
        %v2248 = vadd.f32 %v1941, %v2247
        %2249 = vmatmul.f32.gmra.mxu0 %v1975
        %v2250 = vpop.f32.mrf.mxu0
        %v2251 = vadd.f32 %v1946, %v2250
        %2252 = vmatmul.f32.gmra.mxu0 %v1978
        %v2253 = vpop.f32.mrf.mxu0
        %v2254 = vadd.f32 %v1951, %v2253
        %2255 = vmatmul.f32.gmra.mxu0 %v1981
        %v2256 = vpop.f32.mrf.mxu0
        %v2257 = vadd.f32 %v1956, %v2256
        %2258 = vmatmul.f32.gmra.mxu0 %v1984
        %v2259 = vpop.f32.mrf.mxu0
        %v2260 = vadd.f32 %v1961, %v2259
        %2261 = vmatmul.f32.gmra.mxu0 %v1987
        %v2262 = vpop.f32.mrf.mxu0
        %v2263 = vadd.f32 %v1966, %v2262
        %2264 = vdwg.mxu0
        %2265 = vmatpush.msra.mxu0 0.0
        %2266 = vmatpush.msra.mxu0 0.0
        %2267 = vmatpush.msra.mxu0 0.0
        %2268 = vmatpush.msra.mxu0 0.0
        %2269 = vmatpush.msra.mxu0 0.0
        %2270 = vmatpush.msra.mxu0 0.0
        %2271 = vmatpush.msra.mxu0 0.0
        %2272 = vmatpush.msra.mxu0 0.0
        %2273 = vmatpush.msra.mxu0 0.0
        %2274 = vmatpush.msra.mxu0 %v2008
        %2275 = vmatpush.msra.mxu0 %v1891
        %2276 = vmatpush.msra.mxu0 %v1875
        %2277 = vmatpush.msra.mxu0 %v1859
        %2278 = vmatpush.msra.mxu0 %v1843
        %2279 = vmatpush.msra.mxu0 %v1827
        %2280 = vmatpush.msra.mxu0 %v1811
        %2281 = vmatmul.f32.gmra.mxu0 %v1969
        %v2282 = vpop.f32.mrf.mxu0
        %v2283 = vadd.f32 %v1936, %v2282
        %2284 = vmatmul.f32.gmra.mxu0 %v1972
        %v2285 = vpop.f32.mrf.mxu0
        %v2286 = vadd.f32 %v1941, %v2285
        %2287 = vmatmul.f32.gmra.mxu0 %v1975
        %v2288 = vpop.f32.mrf.mxu0
        %v2289 = vadd.f32 %v1946, %v2288
        %2290 = vmatmul.f32.gmra.mxu0 %v1978
        %v2291 = vpop.f32.mrf.mxu0
        %v2292 = vadd.f32 %v1951, %v2291
        %2293 = vmatmul.f32.gmra.mxu0 %v1981
        %v2294 = vpop.f32.mrf.mxu0
        %v2295 = vadd.f32 %v1956, %v2294
        %2296 = vmatmul.f32.gmra.mxu0 %v1984
        %v2297 = vpop.f32.mrf.mxu0
        %v2298 = vadd.f32 %v1961, %v2297
        %2299 = vmatmul.f32.gmra.mxu0 %v1987
        %v2300 = vpop.f32.mrf.mxu0
        %v2301 = vadd.f32 %v1966, %v2300
        %2302 = vdwg.mxu0
        %2303 = vmatpush.msra.mxu0 0.0
        %2304 = vmatpush.msra.mxu0 0.0
        %2305 = vmatpush.msra.mxu0 0.0
        %2306 = vmatpush.msra.mxu0 0.0
        %2307 = vmatpush.msra.mxu0 0.0
        %2308 = vmatpush.msra.mxu0 0.0
        %2309 = vmatpush.msra.mxu0 0.0
        %2310 = vmatpush.msra.mxu0 0.0
        %2311 = vmatpush.msra.mxu0 0.0
        %2312 = vmatpush.msra.mxu0 %v2011
        %2313 = vmatpush.msra.mxu0 %v1892
        %2314 = vmatpush.msra.mxu0 %v1876
        %2315 = vmatpush.msra.mxu0 %v1860
        %2316 = vmatpush.msra.mxu0 %v1844
        %2317 = vmatpush.msra.mxu0 %v1828
        %2318 = vmatpush.msra.mxu0 %v1812
        %2319 = vmatmul.f32.gmra.mxu0 %v1969
        %v2320 = vpop.f32.mrf.mxu0
        %v2321 = vadd.f32 %v1936, %v2320
        %2322 = vmatmul.f32.gmra.mxu0 %v1972
        %v2323 = vpop.f32.mrf.mxu0
        %v2324 = vadd.f32 %v1941, %v2323
        %2325 = vmatmul.f32.gmra.mxu0 %v1975
        %v2326 = vpop.f32.mrf.mxu0
        %v2327 = vadd.f32 %v1946, %v2326
        %2328 = vmatmul.f32.gmra.mxu0 %v1978
        %v2329 = vpop.f32.mrf.mxu0
        %v2330 = vadd.f32 %v1951, %v2329
        %2331 = vmatmul.f32.gmra.mxu0 %v1981
        %v2332 = vpop.f32.mrf.mxu0
        %v2333 = vadd.f32 %v1956, %v2332
        %2334 = vmatmul.f32.gmra.mxu0 %v1984
        %v2335 = vpop.f32.mrf.mxu0
        %v2336 = vadd.f32 %v1961, %v2335
        %2337 = vmatmul.f32.gmra.mxu0 %v1987
        %v2338 = vpop.f32.mrf.mxu0
        %v2339 = vadd.f32 %v1966, %v2338
        %2340 = vdwg.mxu0
        %2341 = vmatpush.msra.mxu0 0.0
        %2342 = vmatpush.msra.mxu0 0.0
        %2343 = vmatpush.msra.mxu0 0.0
        %2344 = vmatpush.msra.mxu0 0.0
        %2345 = vmatpush.msra.mxu0 0.0
        %2346 = vmatpush.msra.mxu0 0.0
        %2347 = vmatpush.msra.mxu0 0.0
        %2348 = vmatpush.msra.mxu0 0.0
        %2349 = vmatpush.msra.mxu0 0.0
        %2350 = vmatpush.msra.mxu0 %v2014
        %2351 = vmatpush.msra.mxu0 %v1893
        %2352 = vmatpush.msra.mxu0 %v1877
        %2353 = vmatpush.msra.mxu0 %v1861
        %2354 = vmatpush.msra.mxu0 %v1845
        %2355 = vmatpush.msra.mxu0 %v1829
        %2356 = vmatpush.msra.mxu0 %v1813
        %2357 = vmatmul.f32.gmra.mxu0 %v1969
        %v2358 = vpop.f32.mrf.mxu0
        %v2359 = vadd.f32 %v1936, %v2358
        %2360 = vmatmul.f32.gmra.mxu0 %v1972
        %v2361 = vpop.f32.mrf.mxu0
        %v2362 = vadd.f32 %v1941, %v2361
        %2363 = vmatmul.f32.gmra.mxu0 %v1975
        %v2364 = vpop.f32.mrf.mxu0
        %v2365 = vadd.f32 %v1946, %v2364
        %2366 = vmatmul.f32.gmra.mxu0 %v1978
        %v2367 = vpop.f32.mrf.mxu0
        %v2368 = vadd.f32 %v1951, %v2367
        %2369 = vmatmul.f32.gmra.mxu0 %v1981
        %v2370 = vpop.f32.mrf.mxu0
        %v2371 = vadd.f32 %v1956, %v2370
        %2372 = vmatmul.f32.gmra.mxu0 %v1984
        %v2373 = vpop.f32.mrf.mxu0
        %v2374 = vadd.f32 %v1961, %v2373
        %2375 = vmatmul.f32.gmra.mxu0 %v1987
        %v2376 = vpop.f32.mrf.mxu0
        %v2377 = vadd.f32 %v1966, %v2376
        %2378 = vdwg.mxu0
        %2379 = vmatpush.msra.mxu0 0.0
        %2380 = vmatpush.msra.mxu0 0.0
        %2381 = vmatpush.msra.mxu0 0.0
        %2382 = vmatpush.msra.mxu0 0.0
        %2383 = vmatpush.msra.mxu0 0.0
        %2384 = vmatpush.msra.mxu0 0.0
        %2385 = vmatpush.msra.mxu0 0.0
        %2386 = vmatpush.msra.mxu0 0.0
        %2387 = vmatpush.msra.mxu0 0.0
        %2388 = vmatpush.msra.mxu0 %v2017
        %2389 = vmatpush.msra.mxu0 %v1894
        %2390 = vmatpush.msra.mxu0 %v1878
        %2391 = vmatpush.msra.mxu0 %v1862
        %2392 = vmatpush.msra.mxu0 %v1846
        %2393 = vmatpush.msra.mxu0 %v1830
        %2394 = vmatpush.msra.mxu0 %v1814
        %2395 = vmatmul.f32.gmra.mxu0 %v1969
        %v2396 = vpop.f32.mrf.mxu0
        %v2397 = vadd.f32 %v1936, %v2396
        %2398 = vmatmul.f32.gmra.mxu0 %v1972
        %v2399 = vpop.f32.mrf.mxu0
        %v2400 = vadd.f32 %v1941, %v2399
        %2401 = vmatmul.f32.gmra.mxu0 %v1975
        %v2402 = vpop.f32.mrf.mxu0
        %v2403 = vadd.f32 %v1946, %v2402
        %2404 = vmatmul.f32.gmra.mxu0 %v1978
        %v2405 = vpop.f32.mrf.mxu0
        %v2406 = vadd.f32 %v1951, %v2405
        %2407 = vmatmul.f32.gmra.mxu0 %v1981
        %v2408 = vpop.f32.mrf.mxu0
        %v2409 = vadd.f32 %v1956, %v2408
        %2410 = vmatmul.f32.gmra.mxu0 %v1984
        %v2411 = vpop.f32.mrf.mxu0
        %v2412 = vadd.f32 %v1961, %v2411
        %2413 = vmatmul.f32.gmra.mxu0 %v1987
        %v2414 = vpop.f32.mrf.mxu0
        %v2415 = vadd.f32 %v1966, %v2414
        %2416 = vdwg.mxu0
        %2417 = vmatpush.msra.mxu0 0.0
        %2418 = vmatpush.msra.mxu0 0.0
        %2419 = vmatpush.msra.mxu0 0.0
        %2420 = vmatpush.msra.mxu0 0.0
        %2421 = vmatpush.msra.mxu0 0.0
        %2422 = vmatpush.msra.mxu0 0.0
        %2423 = vmatpush.msra.mxu0 0.0
        %2424 = vmatpush.msra.mxu0 0.0
        %2425 = vmatpush.msra.mxu0 0.0
        %2426 = vmatpush.msra.mxu0 %v2020
        %2427 = vmatpush.msra.mxu0 %v1895
        %2428 = vmatpush.msra.mxu0 %v1879
        %2429 = vmatpush.msra.mxu0 %v1863
        %2430 = vmatpush.msra.mxu0 %v1847
        %2431 = vmatpush.msra.mxu0 %v1831
        %2432 = vmatpush.msra.mxu0 %v1815
        %2433 = vmatmul.f32.gmra.mxu0 %v1969
        %v2434 = vpop.f32.mrf.mxu0
        %v2435 = vadd.f32 %v1936, %v2434
        %2436 = vmatmul.f32.gmra.mxu0 %v1972
        %v2437 = vpop.f32.mrf.mxu0
        %v2438 = vadd.f32 %v1941, %v2437
        %2439 = vmatmul.f32.gmra.mxu0 %v1975
        %v2440 = vpop.f32.mrf.mxu0
        %v2441 = vadd.f32 %v1946, %v2440
        %2442 = vmatmul.f32.gmra.mxu0 %v1978
        %v2443 = vpop.f32.mrf.mxu0
        %v2444 = vadd.f32 %v1951, %v2443
        %2445 = vmatmul.f32.gmra.mxu0 %v1981
        %v2446 = vpop.f32.mrf.mxu0
        %v2447 = vadd.f32 %v1956, %v2446
        %2448 = vmatmul.f32.gmra.mxu0 %v1984
        %v2449 = vpop.f32.mrf.mxu0
        %v2450 = vadd.f32 %v1961, %v2449
        %2451 = vmatmul.f32.gmra.mxu0 %v1987
        %v2452 = vpop.f32.mrf.mxu0
        %v2453 = vadd.f32 %v1966, %v2452
        %2454 = vdwg.mxu0
        %2455 = vmatpush.msra.mxu0 0.0
        %2456 = vmatpush.msra.mxu0 0.0
        %2457 = vmatpush.msra.mxu0 0.0
        %2458 = vmatpush.msra.mxu0 0.0
        %2459 = vmatpush.msra.mxu0 0.0
        %2460 = vmatpush.msra.mxu0 0.0
        %2461 = vmatpush.msra.mxu0 0.0
        %2462 = vmatpush.msra.mxu0 0.0
        %2463 = vmatpush.msra.mxu0 0.0
        %2464 = vmatpush.msra.mxu0 %v2023
        %2465 = vmatpush.msra.mxu0 %v1896
        %2466 = vmatpush.msra.mxu0 %v1880
        %2467 = vmatpush.msra.mxu0 %v1864
        %2468 = vmatpush.msra.mxu0 %v1848
        %2469 = vmatpush.msra.mxu0 %v1832
        %2470 = vmatpush.msra.mxu0 %v1816
        %2471 = vmatmul.f32.gmra.mxu0 %v1969
        %v2472 = vpop.f32.mrf.mxu0
        %v2473 = vadd.f32 %v1936, %v2472
        %2474 = vmatmul.f32.gmra.mxu0 %v1972
        %v2475 = vpop.f32.mrf.mxu0
        %v2476 = vadd.f32 %v1941, %v2475
        %2477 = vmatmul.f32.gmra.mxu0 %v1975
        %v2478 = vpop.f32.mrf.mxu0
        %v2479 = vadd.f32 %v1946, %v2478
        %2480 = vmatmul.f32.gmra.mxu0 %v1978
        %v2481 = vpop.f32.mrf.mxu0
        %v2482 = vadd.f32 %v1951, %v2481
        %2483 = vmatmul.f32.gmra.mxu0 %v1981
        %v2484 = vpop.f32.mrf.mxu0
        %v2485 = vadd.f32 %v1956, %v2484
        %2486 = vmatmul.f32.gmra.mxu0 %v1984
        %v2487 = vpop.f32.mrf.mxu0
        %v2488 = vadd.f32 %v1961, %v2487
        %2489 = vmatmul.f32.gmra.mxu0 %v1987
        %v2490 = vpop.f32.mrf.mxu0
        %v2491 = vadd.f32 %v1966, %v2490
        %2492 = vdwg.mxu0
        %2493 = vmatpush.msra.mxu0 0.0
        %2494 = vmatpush.msra.mxu0 0.0
        %2495 = vmatpush.msra.mxu0 0.0
        %2496 = vmatpush.msra.mxu0 0.0
        %2497 = vmatpush.msra.mxu0 0.0
        %2498 = vmatpush.msra.mxu0 0.0
        %2499 = vmatpush.msra.mxu0 0.0
        %2500 = vmatpush.msra.mxu0 0.0
        %2501 = vmatpush.msra.mxu0 0.0
        %2502 = vmatpush.msra.mxu0 %v2026
        %2503 = vmatpush.msra.mxu0 %v1897
        %2504 = vmatpush.msra.mxu0 %v1881
        %2505 = vmatpush.msra.mxu0 %v1865
        %2506 = vmatpush.msra.mxu0 %v1849
        %2507 = vmatpush.msra.mxu0 %v1833
        %2508 = vmatpush.msra.mxu0 %v1817
        %2509 = vmatmul.f32.gmra.mxu0 %v1969
        %v2510 = vpop.f32.mrf.mxu0
        %v2511 = vadd.f32 %v1936, %v2510
        %2512 = vmatmul.f32.gmra.mxu0 %v1972
        %v2513 = vpop.f32.mrf.mxu0
        %v2514 = vadd.f32 %v1941, %v2513
        %2515 = vmatmul.f32.gmra.mxu0 %v1975
        %v2516 = vpop.f32.mrf.mxu0
        %v2517 = vadd.f32 %v1946, %v2516
        %2518 = vmatmul.f32.gmra.mxu0 %v1978
        %v2519 = vpop.f32.mrf.mxu0
        %v2520 = vadd.f32 %v1951, %v2519
        %2521 = vmatmul.f32.gmra.mxu0 %v1981
        %v2522 = vpop.f32.mrf.mxu0
        %v2523 = vadd.f32 %v1956, %v2522
        %2524 = vmatmul.f32.gmra.mxu0 %v1984
        %v2525 = vpop.f32.mrf.mxu0
        %v2526 = vadd.f32 %v1961, %v2525
        %2527 = vmatmul.f32.gmra.mxu0 %v1987
        %v2528 = vpop.f32.mrf.mxu0
        %v2529 = vadd.f32 %v1966, %v2528
        %2530 = vdwg.mxu0
        %2531 = vmatpush.msra.mxu0 0.0
        %2532 = vmatpush.msra.mxu0 0.0
        %2533 = vmatpush.msra.mxu0 0.0
        %2534 = vmatpush.msra.mxu0 0.0
        %2535 = vmatpush.msra.mxu0 0.0
        %2536 = vmatpush.msra.mxu0 0.0
        %2537 = vmatpush.msra.mxu0 0.0
        %2538 = vmatpush.msra.mxu0 0.0
        %2539 = vmatpush.msra.mxu0 0.0
        %2540 = vmatpush.msra.mxu0 %v2029
        %2541 = vmatpush.msra.mxu0 %v1898
        %2542 = vmatpush.msra.mxu0 %v1882
        %2543 = vmatpush.msra.mxu0 %v1866
        %2544 = vmatpush.msra.mxu0 %v1850
        %2545 = vmatpush.msra.mxu0 %v1834
        %2546 = vmatpush.msra.mxu0 %v1818
        %2547 = vmatmul.f32.gmra.mxu0 %v1969
        %v2548 = vpop.f32.mrf.mxu0
        %v2549 = vadd.f32 %v1936, %v2548
        %2550 = vmatmul.f32.gmra.mxu0 %v1972
        %v2551 = vpop.f32.mrf.mxu0
        %v2552 = vadd.f32 %v1941, %v2551
        %2553 = vmatmul.f32.gmra.mxu0 %v1975
        %v2554 = vpop.f32.mrf.mxu0
        %v2555 = vadd.f32 %v1946, %v2554
        %2556 = vmatmul.f32.gmra.mxu0 %v1978
        %v2557 = vpop.f32.mrf.mxu0
        %v2558 = vadd.f32 %v1951, %v2557
        %2559 = vmatmul.f32.gmra.mxu0 %v1981
        %v2560 = vpop.f32.mrf.mxu0
        %v2561 = vadd.f32 %v1956, %v2560
        %2562 = vmatmul.f32.gmra.mxu0 %v1984
        %v2563 = vpop.f32.mrf.mxu0
        %v2564 = vadd.f32 %v1961, %v2563
        %2565 = vmatmul.f32.gmra.mxu0 %v1987
        %v2566 = vpop.f32.mrf.mxu0
        %v2567 = vadd.f32 %v1966, %v2566
        %2568 = vdwg.mxu0
        %2569 = vmatpush.msra.mxu0 0.0
        %2570 = vmatpush.msra.mxu0 0.0
        %2571 = vmatpush.msra.mxu0 0.0
        %2572 = vmatpush.msra.mxu0 0.0
        %2573 = vmatpush.msra.mxu0 0.0
        %2574 = vmatpush.msra.mxu0 0.0
        %2575 = vmatpush.msra.mxu0 0.0
        %2576 = vmatpush.msra.mxu0 0.0
        %2577 = vmatpush.msra.mxu0 0.0
        %2578 = vmatpush.msra.mxu0 %v2032
        %2579 = vmatpush.msra.mxu0 %v1899
        %2580 = vmatpush.msra.mxu0 %v1883
        %2581 = vmatpush.msra.mxu0 %v1867
        %2582 = vmatpush.msra.mxu0 %v1851
        %2583 = vmatpush.msra.mxu0 %v1835
        %2584 = vmatpush.msra.mxu0 %v1819
        %2585 = vmatmul.f32.gmra.mxu0 %v1969
        %v2586 = vpop.f32.mrf.mxu0
        %v2587 = vadd.f32 %v1936, %v2586
        %2588 = vmatmul.f32.gmra.mxu0 %v1972
        %v2589 = vpop.f32.mrf.mxu0
        %v2590 = vadd.f32 %v1941, %v2589
        %2591 = vmatmul.f32.gmra.mxu0 %v1975
        %v2592 = vpop.f32.mrf.mxu0
        %v2593 = vadd.f32 %v1946, %v2592
        %2594 = vmatmul.f32.gmra.mxu0 %v1978
        %v2595 = vpop.f32.mrf.mxu0
        %v2596 = vadd.f32 %v1951, %v2595
        %2597 = vmatmul.f32.gmra.mxu0 %v1981
        %v2598 = vpop.f32.mrf.mxu0
        %v2599 = vadd.f32 %v1956, %v2598
        %2600 = vmatmul.f32.gmra.mxu0 %v1984
        %v2601 = vpop.f32.mrf.mxu0
        %v2602 = vadd.f32 %v1961, %v2601
        %2603 = vmatmul.f32.gmra.mxu0 %v1987
        %v2604 = vpop.f32.mrf.mxu0
        %v2605 = vadd.f32 %v1966, %v2604
        %2606 = vdwg.mxu0
        %2607 = vmatpush.msra.mxu0 0.0
        %2608 = vmatpush.msra.mxu0 0.0
        %2609 = vmatpush.msra.mxu0 0.0
        %2610 = vmatpush.msra.mxu0 0.0
        %2611 = vmatpush.msra.mxu0 0.0
        %2612 = vmatpush.msra.mxu0 0.0
        %2613 = vmatpush.msra.mxu0 0.0
        %2614 = vmatpush.msra.mxu0 0.0
        %2615 = vmatpush.msra.mxu0 0.0
        %2616 = vmatpush.msra.mxu0 %v2035
        %2617 = vmatpush.msra.mxu0 %v1900
        %2618 = vmatpush.msra.mxu0 %v1884
        %2619 = vmatpush.msra.mxu0 %v1868
        %2620 = vmatpush.msra.mxu0 %v1852
        %2621 = vmatpush.msra.mxu0 %v1836
        %2622 = vmatpush.msra.mxu0 %v1820
        %2623 = vmatmul.f32.gmra.mxu0 %v1969
        %v2624 = vpop.f32.mrf.mxu0
        %v2625 = vadd.f32 %v1936, %v2624
        %2626 = vmatmul.f32.gmra.mxu0 %v1972
        %v2627 = vpop.f32.mrf.mxu0
        %v2628 = vadd.f32 %v1941, %v2627
        %2629 = vmatmul.f32.gmra.mxu0 %v1975
        %v2630 = vpop.f32.mrf.mxu0
        %v2631 = vadd.f32 %v1946, %v2630
        %2632 = vmatmul.f32.gmra.mxu0 %v1978
        %v2633 = vpop.f32.mrf.mxu0
        %v2634 = vadd.f32 %v1951, %v2633
        %2635 = vmatmul.f32.gmra.mxu0 %v1981
        %v2636 = vpop.f32.mrf.mxu0
        %v2637 = vadd.f32 %v1956, %v2636
        %2638 = vmatmul.f32.gmra.mxu0 %v1984
        %v2639 = vpop.f32.mrf.mxu0
        %v2640 = vadd.f32 %v1961, %v2639
        %2641 = vmatmul.f32.gmra.mxu0 %v1987
        %v2642 = vpop.f32.mrf.mxu0
        %v2643 = vadd.f32 %v1966, %v2642
        %2644 = vdwg.mxu0
        %v2645 = vtanh.pop %v2055
        %v2646 = vtanh.pop %v2093
        %v2647 = vtanh.pop %v2131
        %v2648 = vtanh.pop %v2169
        %v2649 = vtanh.pop %v2207
        %v2650 = vtanh.pop %v2245
        %v2651 = vtanh.pop %v2283
        %v2652 = vtanh.pop %v2321
        %v2653 = vtanh.pop %v2359
        %v2654 = vtanh.pop %v2397
        %v2655 = vtanh.pop %v2435
        %v2656 = vtanh.pop %v2473
        %v2657 = vtanh.pop %v2511
        %v2658 = vtanh.pop %v2549
        %v2659 = vtanh.pop %v2587
        %v2660 = vtanh.pop %v2625
        %v2661 = vtanh.pop %v2058
        %v2662 = vtanh.pop %v2096
        %v2663 = vtanh.pop %v2134
        %v2664 = vtanh.pop %v2172
        %v2665 = vtanh.pop %v2210
        %v2666 = vtanh.pop %v2248
        %v2667 = vtanh.pop %v2286
        %v2668 = vtanh.pop %v2324
        %v2669 = vtanh.pop %v2362
        %v2670 = vtanh.pop %v2400
        %v2671 = vtanh.pop %v2438
        %v2672 = vtanh.pop %v2476
        %v2673 = vtanh.pop %v2514
        %v2674 = vtanh.pop %v2552
        %v2675 = vtanh.pop %v2590
        %v2676 = vtanh.pop %v2628
        %v2677 = vtanh.pop %v2061
        %v2678 = vtanh.pop %v2099
        %v2679 = vtanh.pop %v2137
        %v2680 = vtanh.pop %v2175
        %v2681 = vtanh.pop %v2213
        %v2682 = vtanh.pop %v2251
        %v2683 = vtanh.pop %v2289
        %v2684 = vtanh.pop %v2327
        %v2685 = vtanh.pop %v2365
        %v2686 = vtanh.pop %v2403
        %v2687 = vtanh.pop %v2441
        %v2688 = vtanh.pop %v2479
        %v2689 = vtanh.pop %v2517
        %v2690 = vtanh.pop %v2555
        %v2691 = vtanh.pop %v2593
        %v2692 = vtanh.pop %v2631
        %v2693 = vtanh.pop %v2064
        %v2694 = vtanh.pop %v2102
        %v2695 = vtanh.pop %v2140
        %v2696 = vtanh.pop %v2178
        %v2697 = vtanh.pop %v2216
        %v2698 = vtanh.pop %v2254
        %v2699 = vtanh.pop %v2292
        %v2700 = vtanh.pop %v2330
        %v2701 = vtanh.pop %v2368
        %v2702 = vtanh.pop %v2406
        %v2703 = vtanh.pop %v2444
        %v2704 = vtanh.pop %v2482
        %v2705 = vtanh.pop %v2520
        %v2706 = vtanh.pop %v2558
        %v2707 = vtanh.pop %v2596
        %v2708 = vtanh.pop %v2634
        %v2709 = vtanh.pop %v2067
        %v2710 = vtanh.pop %v2105
        %v2711 = vtanh.pop %v2143
        %v2712 = vtanh.pop %v2181
        %v2713 = vtanh.pop %v2219
        %v2714 = vtanh.pop %v2257
        %v2715 = vtanh.pop %v2295
        %v2716 = vtanh.pop %v2333
        %v2717 = vtanh.pop %v2371
        %v2718 = vtanh.pop %v2409
        %v2719 = vtanh.pop %v2447
        %v2720 = vtanh.pop %v2485
        %v2721 = vtanh.pop %v2523
        %v2722 = vtanh.pop %v2561
        %v2723 = vtanh.pop %v2599
        %v2724 = vtanh.pop %v2637
        %v2725 = vtanh.pop %v2070
        %v2726 = vtanh.pop %v2108
        %v2727 = vtanh.pop %v2146
        %v2728 = vtanh.pop %v2184
        %v2729 = vtanh.pop %v2222
        %v2730 = vtanh.pop %v2260
        %v2731 = vtanh.pop %v2298
        %v2732 = vtanh.pop %v2336
        %v2733 = vtanh.pop %v2374
        %v2734 = vtanh.pop %v2412
        %v2735 = vtanh.pop %v2450
        %v2736 = vtanh.pop %v2488
        %v2737 = vtanh.pop %v2526
        %v2738 = vtanh.pop %v2564
        %v2739 = vtanh.pop %v2602
        %v2740 = vtanh.pop %v2640
        %v2741 = vtanh.pop %v2073
        %v2742 = vtanh.pop %v2111
        %v2743 = vtanh.pop %v2149
        %v2744 = vtanh.pop %v2187
        %v2745 = vtanh.pop %v2225
        %v2746 = vtanh.pop %v2263
        %v2747 = vtanh.pop %v2301
        %v2748 = vtanh.pop %v2339
        %v2749 = vtanh.pop %v2377
        %v2750 = vtanh.pop %v2415
        %v2751 = vtanh.pop %v2453
        %v2752 = vtanh.pop %v2491
        %v2753 = vtanh.pop %v2529
        %v2754 = vtanh.pop %v2567
        %v2755 = vtanh.pop %v2605
        %v2756 = vtanh.pop %v2643
        %s2757 = scalar_lea.vmem %s3, 112
        %v2758 = vld [vmem:[%s2757] sm:$0xff]
        %v2759 = vld [vmem:[%s2757 + $0x8] sm:$0xff]
        %v2760 = vld [vmem:[%s2757 + $0x10] sm:$0xff]
        %v2761 = vld [vmem:[%s2757 + $0x18] sm:$0xff]
        %v2762 = vld [vmem:[%s2757 + $0x20] sm:$0xff]
        %v2763 = vld [vmem:[%s2757 + $0x28] sm:$0xff]
        %v2764 = vld [vmem:[%s2757 + $0x30] sm:$0x3]
        %s2765 = scalar_lea.vmem %s4, 112
        %v2766 = vld [vmem:[%s2765] sm:$0xff]
        %v2767 = vld [vmem:[%s2765 + $0x8] sm:$0xff]
        %v2768 = vld [vmem:[%s2765 + $0x10] sm:$0xff]
        %v2769 = vld [vmem:[%s2765 + $0x18] sm:$0xff]
        %v2770 = vld [vmem:[%s2765 + $0x20] sm:$0xff]
        %v2771 = vld [vmem:[%s2765 + $0x28] sm:$0xff]
        %v2772 = vld [vmem:[%s2765 + $0x30] sm:$0x3]
        %2774 = vset.pattern.permute.xlu0 0
        %2775 = vperm.xlu0 %2774, %v2766
        %v2776 = vpop.permute.xlu0 %2775
        %2779 = vset.pattern.permute.xlu0 0
        %2780 = vperm.xlu0 %2779, %v2767
        %v2781 = vpop.permute.xlu0 %2780
        %2784 = vset.pattern.permute.xlu0 0
        %2785 = vperm.xlu0 %2784, %v2768
        %v2786 = vpop.permute.xlu0 %2785
        %2789 = vset.pattern.permute.xlu0 0
        %2790 = vperm.xlu0 %2789, %v2769
        %v2791 = vpop.permute.xlu0 %2790
        %2794 = vset.pattern.permute.xlu0 0
        %2795 = vperm.xlu0 %2794, %v2770
        %v2796 = vpop.permute.xlu0 %2795
        %2799 = vset.pattern.permute.xlu0 0
        %2800 = vperm.xlu0 %2799, %v2771
        %v2801 = vpop.permute.xlu0 %2800
        %2804 = vset.pattern.permute.xlu0 0
        %2805 = vperm.xlu0 %2804, %v2772
        %v2806 = vpop.permute.xlu0 %2805
        %v2809 = vsel %vm1126, %v2758, 0
        %v2812 = vsel %vm1126, %v2759, 0
        %v2815 = vsel %vm1126, %v2760, 0
        %v2818 = vsel %vm1126, %v2761, 0
        %v2821 = vsel %vm1126, %v2762, 0
        %v2824 = vsel %vm1126, %v2763, 0
        %v2827 = vsel %vm1126, %v2764, 0
        %v2830 = vsel %vm1148, %v2741, 0
        %v2833 = vsel %vm1148, %v2742, 0
        %v2836 = vsel %vm1148, %v2743, 0
        %v2839 = vsel %vm1148, %v2744, 0
        %v2842 = vsel %vm1148, %v2745, 0
        %v2845 = vsel %vm1148, %v2746, 0
        %v2848 = vsel %vm1148, %v2747, 0
        %v2851 = vsel %vm1148, %v2748, 0
        %v2854 = vsel %vm1148, %v2749, 0
        %v2857 = vsel %vm1148, %v2750, 0
        %v2860 = vsel %vm1148, %v2751, 0
        %v2863 = vsel %vm1148, %v2752, 0
        %v2866 = vsel %vm1148, %v2753, 0
        %v2869 = vsel %vm1148, %v2754, 0
        %v2872 = vsel %vm1148, %v2755, 0
        %v2875 = vsel %vm1148, %v2756, 0
        %2877 = vmatpush.msra.mxu0 0.0
        %2878 = vmatpush.msra.mxu0 0.0
        %2879 = vmatpush.msra.mxu0 0.0
        %2880 = vmatpush.msra.mxu0 0.0
        %2881 = vmatpush.msra.mxu0 0.0
        %2882 = vmatpush.msra.mxu0 0.0
        %2883 = vmatpush.msra.mxu0 0.0
        %2884 = vmatpush.msra.mxu0 0.0
        %2885 = vmatpush.msra.mxu0 0.0
        %2886 = vmatpush.msra.mxu0 %v2830
        %2887 = vmatpush.msra.mxu0 %v2725
        %2888 = vmatpush.msra.mxu0 %v2709
        %2889 = vmatpush.msra.mxu0 %v2693
        %2890 = vmatpush.msra.mxu0 %v2677
        %2891 = vmatpush.msra.mxu0 %v2661
        %2892 = vmatpush.msra.mxu0 %v2645
        %2893 = vmatmul.f32.gmra.mxu0 %v2809
        %v2894 = vpop.f32.mrf.mxu0
        %v2895 = vadd.f32 %v2776, %v2894
        %2896 = vmatmul.f32.gmra.mxu0 %v2812
        %v2897 = vpop.f32.mrf.mxu0
        %v2898 = vadd.f32 %v2781, %v2897
        %2899 = vmatmul.f32.gmra.mxu0 %v2815
        %v2900 = vpop.f32.mrf.mxu0
        %v2901 = vadd.f32 %v2786, %v2900
        %2902 = vmatmul.f32.gmra.mxu0 %v2818
        %v2903 = vpop.f32.mrf.mxu0
        %v2904 = vadd.f32 %v2791, %v2903
        %2905 = vmatmul.f32.gmra.mxu0 %v2821
        %v2906 = vpop.f32.mrf.mxu0
        %v2907 = vadd.f32 %v2796, %v2906
        %2908 = vmatmul.f32.gmra.mxu0 %v2824
        %v2909 = vpop.f32.mrf.mxu0
        %v2910 = vadd.f32 %v2801, %v2909
        %2911 = vmatmul.f32.gmra.mxu0 %v2827
        %v2912 = vpop.f32.mrf.mxu0
        %v2913 = vadd.f32 %v2806, %v2912
        %2914 = vdwg.mxu0
        %2915 = vmatpush.msra.mxu0 0.0
        %2916 = vmatpush.msra.mxu0 0.0
        %2917 = vmatpush.msra.mxu0 0.0
        %2918 = vmatpush.msra.mxu0 0.0
        %2919 = vmatpush.msra.mxu0 0.0
        %2920 = vmatpush.msra.mxu0 0.0
        %2921 = vmatpush.msra.mxu0 0.0
        %2922 = vmatpush.msra.mxu0 0.0
        %2923 = vmatpush.msra.mxu0 0.0
        %2924 = vmatpush.msra.mxu0 %v2833
        %2925 = vmatpush.msra.mxu0 %v2726
        %2926 = vmatpush.msra.mxu0 %v2710
        %2927 = vmatpush.msra.mxu0 %v2694
        %2928 = vmatpush.msra.mxu0 %v2678
        %2929 = vmatpush.msra.mxu0 %v2662
        %2930 = vmatpush.msra.mxu0 %v2646
        %2931 = vmatmul.f32.gmra.mxu0 %v2809
        %v2932 = vpop.f32.mrf.mxu0
        %v2933 = vadd.f32 %v2776, %v2932
        %2934 = vmatmul.f32.gmra.mxu0 %v2812
        %v2935 = vpop.f32.mrf.mxu0
        %v2936 = vadd.f32 %v2781, %v2935
        %2937 = vmatmul.f32.gmra.mxu0 %v2815
        %v2938 = vpop.f32.mrf.mxu0
        %v2939 = vadd.f32 %v2786, %v2938
        %2940 = vmatmul.f32.gmra.mxu0 %v2818
        %v2941 = vpop.f32.mrf.mxu0
        %v2942 = vadd.f32 %v2791, %v2941
        %2943 = vmatmul.f32.gmra.mxu0 %v2821
        %v2944 = vpop.f32.mrf.mxu0
        %v2945 = vadd.f32 %v2796, %v2944
        %2946 = vmatmul.f32.gmra.mxu0 %v2824
        %v2947 = vpop.f32.mrf.mxu0
        %v2948 = vadd.f32 %v2801, %v2947
        %2949 = vmatmul.f32.gmra.mxu0 %v2827
        %v2950 = vpop.f32.mrf.mxu0
        %v2951 = vadd.f32 %v2806, %v2950
        %2952 = vdwg.mxu0
        %2953 = vmatpush.msra.mxu0 0.0
        %2954 = vmatpush.msra.mxu0 0.0
        %2955 = vmatpush.msra.mxu0 0.0
        %2956 = vmatpush.msra.mxu0 0.0
        %2957 = vmatpush.msra.mxu0 0.0
        %2958 = vmatpush.msra.mxu0 0.0
        %2959 = vmatpush.msra.mxu0 0.0
        %2960 = vmatpush.msra.mxu0 0.0
        %2961 = vmatpush.msra.mxu0 0.0
        %2962 = vmatpush.msra.mxu0 %v2836
        %2963 = vmatpush.msra.mxu0 %v2727
        %2964 = vmatpush.msra.mxu0 %v2711
        %2965 = vmatpush.msra.mxu0 %v2695
        %2966 = vmatpush.msra.mxu0 %v2679
        %2967 = vmatpush.msra.mxu0 %v2663
        %2968 = vmatpush.msra.mxu0 %v2647
        %2969 = vmatmul.f32.gmra.mxu0 %v2809
        %v2970 = vpop.f32.mrf.mxu0
        %v2971 = vadd.f32 %v2776, %v2970
        %2972 = vmatmul.f32.gmra.mxu0 %v2812
        %v2973 = vpop.f32.mrf.mxu0
        %v2974 = vadd.f32 %v2781, %v2973
        %2975 = vmatmul.f32.gmra.mxu0 %v2815
        %v2976 = vpop.f32.mrf.mxu0
        %v2977 = vadd.f32 %v2786, %v2976
        %2978 = vmatmul.f32.gmra.mxu0 %v2818
        %v2979 = vpop.f32.mrf.mxu0
        %v2980 = vadd.f32 %v2791, %v2979
        %2981 = vmatmul.f32.gmra.mxu0 %v2821
        %v2982 = vpop.f32.mrf.mxu0
        %v2983 = vadd.f32 %v2796, %v2982
        %2984 = vmatmul.f32.gmra.mxu0 %v2824
        %v2985 = vpop.f32.mrf.mxu0
        %v2986 = vadd.f32 %v2801, %v2985
        %2987 = vmatmul.f32.gmra.mxu0 %v2827
        %v2988 = vpop.f32.mrf.mxu0
        %v2989 = vadd.f32 %v2806, %v2988
        %2990 = vdwg.mxu0
        %2991 = vmatpush.msra.mxu0 0.0
        %2992 = vmatpush.msra.mxu0 0.0
        %2993 = vmatpush.msra.mxu0 0.0
        %2994 = vmatpush.msra.mxu0 0.0
        %2995 = vmatpush.msra.mxu0 0.0
        %2996 = vmatpush.msra.mxu0 0.0
        %2997 = vmatpush.msra.mxu0 0.0
        %2998 = vmatpush.msra.mxu0 0.0
        %2999 = vmatpush.msra.mxu0 0.0
        %3000 = vmatpush.msra.mxu0 %v2839
        %3001 = vmatpush.msra.mxu0 %v2728
        %3002 = vmatpush.msra.mxu0 %v2712
        %3003 = vmatpush.msra.mxu0 %v2696
        %3004 = vmatpush.msra.mxu0 %v2680
        %3005 = vmatpush.msra.mxu0 %v2664
        %3006 = vmatpush.msra.mxu0 %v2648
        %3007 = vmatmul.f32.gmra.mxu0 %v2809
        %v3008 = vpop.f32.mrf.mxu0
        %v3009 = vadd.f32 %v2776, %v3008
        %3010 = vmatmul.f32.gmra.mxu0 %v2812
        %v3011 = vpop.f32.mrf.mxu0
        %v3012 = vadd.f32 %v2781, %v3011
        %3013 = vmatmul.f32.gmra.mxu0 %v2815
        %v3014 = vpop.f32.mrf.mxu0
        %v3015 = vadd.f32 %v2786, %v3014
        %3016 = vmatmul.f32.gmra.mxu0 %v2818
        %v3017 = vpop.f32.mrf.mxu0
        %v3018 = vadd.f32 %v2791, %v3017
        %3019 = vmatmul.f32.gmra.mxu0 %v2821
        %v3020 = vpop.f32.mrf.mxu0
        %v3021 = vadd.f32 %v2796, %v3020
        %3022 = vmatmul.f32.gmra.mxu0 %v2824
        %v3023 = vpop.f32.mrf.mxu0
        %v3024 = vadd.f32 %v2801, %v3023
        %3025 = vmatmul.f32.gmra.mxu0 %v2827
        %v3026 = vpop.f32.mrf.mxu0
        %v3027 = vadd.f32 %v2806, %v3026
        %3028 = vdwg.mxu0
        %3029 = vmatpush.msra.mxu0 0.0
        %3030 = vmatpush.msra.mxu0 0.0
        %3031 = vmatpush.msra.mxu0 0.0
        %3032 = vmatpush.msra.mxu0 0.0
        %3033 = vmatpush.msra.mxu0 0.0
        %3034 = vmatpush.msra.mxu0 0.0
        %3035 = vmatpush.msra.mxu0 0.0
        %3036 = vmatpush.msra.mxu0 0.0
        %3037 = vmatpush.msra.mxu0 0.0
        %3038 = vmatpush.msra.mxu0 %v2842
        %3039 = vmatpush.msra.mxu0 %v2729
        %3040 = vmatpush.msra.mxu0 %v2713
        %3041 = vmatpush.msra.mxu0 %v2697
        %3042 = vmatpush.msra.mxu0 %v2681
        %3043 = vmatpush.msra.mxu0 %v2665
        %3044 = vmatpush.msra.mxu0 %v2649
        %3045 = vmatmul.f32.gmra.mxu0 %v2809
        %v3046 = vpop.f32.mrf.mxu0
        %v3047 = vadd.f32 %v2776, %v3046
        %3048 = vmatmul.f32.gmra.mxu0 %v2812
        %v3049 = vpop.f32.mrf.mxu0
        %v3050 = vadd.f32 %v2781, %v3049
        %3051 = vmatmul.f32.gmra.mxu0 %v2815
        %v3052 = vpop.f32.mrf.mxu0
        %v3053 = vadd.f32 %v2786, %v3052
        %3054 = vmatmul.f32.gmra.mxu0 %v2818
        %v3055 = vpop.f32.mrf.mxu0
        %v3056 = vadd.f32 %v2791, %v3055
        %3057 = vmatmul.f32.gmra.mxu0 %v2821
        %v3058 = vpop.f32.mrf.mxu0
        %v3059 = vadd.f32 %v2796, %v3058
        %3060 = vmatmul.f32.gmra.mxu0 %v2824
        %v3061 = vpop.f32.mrf.mxu0
        %v3062 = vadd.f32 %v2801, %v3061
        %3063 = vmatmul.f32.gmra.mxu0 %v2827
        %v3064 = vpop.f32.mrf.mxu0
        %v3065 = vadd.f32 %v2806, %v3064
        %3066 = vdwg.mxu0
        %3067 = vmatpush.msra.mxu0 0.0
        %3068 = vmatpush.msra.mxu0 0.0
        %3069 = vmatpush.msra.mxu0 0.0
        %3070 = vmatpush.msra.mxu0 0.0
        %3071 = vmatpush.msra.mxu0 0.0
        %3072 = vmatpush.msra.mxu0 0.0
        %3073 = vmatpush.msra.mxu0 0.0
        %3074 = vmatpush.msra.mxu0 0.0
        %3075 = vmatpush.msra.mxu0 0.0
        %3076 = vmatpush.msra.mxu0 %v2845
        %3077 = vmatpush.msra.mxu0 %v2730
        %3078 = vmatpush.msra.mxu0 %v2714
        %3079 = vmatpush.msra.mxu0 %v2698
        %3080 = vmatpush.msra.mxu0 %v2682
        %3081 = vmatpush.msra.mxu0 %v2666
        %3082 = vmatpush.msra.mxu0 %v2650
        %3083 = vmatmul.f32.gmra.mxu0 %v2809
        %v3084 = vpop.f32.mrf.mxu0
        %v3085 = vadd.f32 %v2776, %v3084
        %3086 = vmatmul.f32.gmra.mxu0 %v2812
        %v3087 = vpop.f32.mrf.mxu0
        %v3088 = vadd.f32 %v2781, %v3087
        %3089 = vmatmul.f32.gmra.mxu0 %v2815
        %v3090 = vpop.f32.mrf.mxu0
        %v3091 = vadd.f32 %v2786, %v3090
        %3092 = vmatmul.f32.gmra.mxu0 %v2818
        %v3093 = vpop.f32.mrf.mxu0
        %v3094 = vadd.f32 %v2791, %v3093
        %3095 = vmatmul.f32.gmra.mxu0 %v2821
        %v3096 = vpop.f32.mrf.mxu0
        %v3097 = vadd.f32 %v2796, %v3096
        %3098 = vmatmul.f32.gmra.mxu0 %v2824
        %v3099 = vpop.f32.mrf.mxu0
        %v3100 = vadd.f32 %v2801, %v3099
        %3101 = vmatmul.f32.gmra.mxu0 %v2827
        %v3102 = vpop.f32.mrf.mxu0
        %v3103 = vadd.f32 %v2806, %v3102
        %3104 = vdwg.mxu0
        %3105 = vmatpush.msra.mxu0 0.0
        %3106 = vmatpush.msra.mxu0 0.0
        %3107 = vmatpush.msra.mxu0 0.0
        %3108 = vmatpush.msra.mxu0 0.0
        %3109 = vmatpush.msra.mxu0 0.0
        %3110 = vmatpush.msra.mxu0 0.0
        %3111 = vmatpush.msra.mxu0 0.0
        %3112 = vmatpush.msra.mxu0 0.0
        %3113 = vmatpush.msra.mxu0 0.0
        %3114 = vmatpush.msra.mxu0 %v2848
        %3115 = vmatpush.msra.mxu0 %v2731
        %3116 = vmatpush.msra.mxu0 %v2715
        %3117 = vmatpush.msra.mxu0 %v2699
        %3118 = vmatpush.msra.mxu0 %v2683
        %3119 = vmatpush.msra.mxu0 %v2667
        %3120 = vmatpush.msra.mxu0 %v2651
        %3121 = vmatmul.f32.gmra.mxu0 %v2809
        %v3122 = vpop.f32.mrf.mxu0
        %v3123 = vadd.f32 %v2776, %v3122
        %3124 = vmatmul.f32.gmra.mxu0 %v2812
        %v3125 = vpop.f32.mrf.mxu0
        %v3126 = vadd.f32 %v2781, %v3125
        %3127 = vmatmul.f32.gmra.mxu0 %v2815
        %v3128 = vpop.f32.mrf.mxu0
        %v3129 = vadd.f32 %v2786, %v3128
        %3130 = vmatmul.f32.gmra.mxu0 %v2818
        %v3131 = vpop.f32.mrf.mxu0
        %v3132 = vadd.f32 %v2791, %v3131
        %3133 = vmatmul.f32.gmra.mxu0 %v2821
        %v3134 = vpop.f32.mrf.mxu0
        %v3135 = vadd.f32 %v2796, %v3134
        %3136 = vmatmul.f32.gmra.mxu0 %v2824
        %v3137 = vpop.f32.mrf.mxu0
        %v3138 = vadd.f32 %v2801, %v3137
        %3139 = vmatmul.f32.gmra.mxu0 %v2827
        %v3140 = vpop.f32.mrf.mxu0
        %v3141 = vadd.f32 %v2806, %v3140
        %3142 = vdwg.mxu0
        %3143 = vmatpush.msra.mxu0 0.0
        %3144 = vmatpush.msra.mxu0 0.0
        %3145 = vmatpush.msra.mxu0 0.0
        %3146 = vmatpush.msra.mxu0 0.0
        %3147 = vmatpush.msra.mxu0 0.0
        %3148 = vmatpush.msra.mxu0 0.0
        %3149 = vmatpush.msra.mxu0 0.0
        %3150 = vmatpush.msra.mxu0 0.0
        %3151 = vmatpush.msra.mxu0 0.0
        %3152 = vmatpush.msra.mxu0 %v2851
        %3153 = vmatpush.msra.mxu0 %v2732
        %3154 = vmatpush.msra.mxu0 %v2716
        %3155 = vmatpush.msra.mxu0 %v2700
        %3156 = vmatpush.msra.mxu0 %v2684
        %3157 = vmatpush.msra.mxu0 %v2668
        %3158 = vmatpush.msra.mxu0 %v2652
        %3159 = vmatmul.f32.gmra.mxu0 %v2809
        %v3160 = vpop.f32.mrf.mxu0
        %v3161 = vadd.f32 %v2776, %v3160
        %3162 = vmatmul.f32.gmra.mxu0 %v2812
        %v3163 = vpop.f32.mrf.mxu0
        %v3164 = vadd.f32 %v2781, %v3163
        %3165 = vmatmul.f32.gmra.mxu0 %v2815
        %v3166 = vpop.f32.mrf.mxu0
        %v3167 = vadd.f32 %v2786, %v3166
        %3168 = vmatmul.f32.gmra.mxu0 %v2818
        %v3169 = vpop.f32.mrf.mxu0
        %v3170 = vadd.f32 %v2791, %v3169
        %3171 = vmatmul.f32.gmra.mxu0 %v2821
        %v3172 = vpop.f32.mrf.mxu0
        %v3173 = vadd.f32 %v2796, %v3172
        %3174 = vmatmul.f32.gmra.mxu0 %v2824
        %v3175 = vpop.f32.mrf.mxu0
        %v3176 = vadd.f32 %v2801, %v3175
        %3177 = vmatmul.f32.gmra.mxu0 %v2827
        %v3178 = vpop.f32.mrf.mxu0
        %v3179 = vadd.f32 %v2806, %v3178
        %3180 = vdwg.mxu0
        %3181 = vmatpush.msra.mxu0 0.0
        %3182 = vmatpush.msra.mxu0 0.0
        %3183 = vmatpush.msra.mxu0 0.0
        %3184 = vmatpush.msra.mxu0 0.0
        %3185 = vmatpush.msra.mxu0 0.0
        %3186 = vmatpush.msra.mxu0 0.0
        %3187 = vmatpush.msra.mxu0 0.0
        %3188 = vmatpush.msra.mxu0 0.0
        %3189 = vmatpush.msra.mxu0 0.0
        %3190 = vmatpush.msra.mxu0 %v2854
        %3191 = vmatpush.msra.mxu0 %v2733
        %3192 = vmatpush.msra.mxu0 %v2717
        %3193 = vmatpush.msra.mxu0 %v2701
        %3194 = vmatpush.msra.mxu0 %v2685
        %3195 = vmatpush.msra.mxu0 %v2669
        %3196 = vmatpush.msra.mxu0 %v2653
        %3197 = vmatmul.f32.gmra.mxu0 %v2809
        %v3198 = vpop.f32.mrf.mxu0
        %v3199 = vadd.f32 %v2776, %v3198
        %3200 = vmatmul.f32.gmra.mxu0 %v2812
        %v3201 = vpop.f32.mrf.mxu0
        %v3202 = vadd.f32 %v2781, %v3201
        %3203 = vmatmul.f32.gmra.mxu0 %v2815
        %v3204 = vpop.f32.mrf.mxu0
        %v3205 = vadd.f32 %v2786, %v3204
        %3206 = vmatmul.f32.gmra.mxu0 %v2818
        %v3207 = vpop.f32.mrf.mxu0
        %v3208 = vadd.f32 %v2791, %v3207
        %3209 = vmatmul.f32.gmra.mxu0 %v2821
        %v3210 = vpop.f32.mrf.mxu0
        %v3211 = vadd.f32 %v2796, %v3210
        %3212 = vmatmul.f32.gmra.mxu0 %v2824
        %v3213 = vpop.f32.mrf.mxu0
        %v3214 = vadd.f32 %v2801, %v3213
        %3215 = vmatmul.f32.gmra.mxu0 %v2827
        %v3216 = vpop.f32.mrf.mxu0
        %v3217 = vadd.f32 %v2806, %v3216
        %3218 = vdwg.mxu0
        %3219 = vmatpush.msra.mxu0 0.0
        %3220 = vmatpush.msra.mxu0 0.0
        %3221 = vmatpush.msra.mxu0 0.0
        %3222 = vmatpush.msra.mxu0 0.0
        %3223 = vmatpush.msra.mxu0 0.0
        %3224 = vmatpush.msra.mxu0 0.0
        %3225 = vmatpush.msra.mxu0 0.0
        %3226 = vmatpush.msra.mxu0 0.0
        %3227 = vmatpush.msra.mxu0 0.0
        %3228 = vmatpush.msra.mxu0 %v2857
        %3229 = vmatpush.msra.mxu0 %v2734
        %3230 = vmatpush.msra.mxu0 %v2718
        %3231 = vmatpush.msra.mxu0 %v2702
        %3232 = vmatpush.msra.mxu0 %v2686
        %3233 = vmatpush.msra.mxu0 %v2670
        %3234 = vmatpush.msra.mxu0 %v2654
        %3235 = vmatmul.f32.gmra.mxu0 %v2809
        %v3236 = vpop.f32.mrf.mxu0
        %v3237 = vadd.f32 %v2776, %v3236
        %3238 = vmatmul.f32.gmra.mxu0 %v2812
        %v3239 = vpop.f32.mrf.mxu0
        %v3240 = vadd.f32 %v2781, %v3239
        %3241 = vmatmul.f32.gmra.mxu0 %v2815
        %v3242 = vpop.f32.mrf.mxu0
        %v3243 = vadd.f32 %v2786, %v3242
        %3244 = vmatmul.f32.gmra.mxu0 %v2818
        %v3245 = vpop.f32.mrf.mxu0
        %v3246 = vadd.f32 %v2791, %v3245
        %3247 = vmatmul.f32.gmra.mxu0 %v2821
        %v3248 = vpop.f32.mrf.mxu0
        %v3249 = vadd.f32 %v2796, %v3248
        %3250 = vmatmul.f32.gmra.mxu0 %v2824
        %v3251 = vpop.f32.mrf.mxu0
        %v3252 = vadd.f32 %v2801, %v3251
        %3253 = vmatmul.f32.gmra.mxu0 %v2827
        %v3254 = vpop.f32.mrf.mxu0
        %v3255 = vadd.f32 %v2806, %v3254
        %3256 = vdwg.mxu0
        %3257 = vmatpush.msra.mxu0 0.0
        %3258 = vmatpush.msra.mxu0 0.0
        %3259 = vmatpush.msra.mxu0 0.0
        %3260 = vmatpush.msra.mxu0 0.0
        %3261 = vmatpush.msra.mxu0 0.0
        %3262 = vmatpush.msra.mxu0 0.0
        %3263 = vmatpush.msra.mxu0 0.0
        %3264 = vmatpush.msra.mxu0 0.0
        %3265 = vmatpush.msra.mxu0 0.0
        %3266 = vmatpush.msra.mxu0 %v2860
        %3267 = vmatpush.msra.mxu0 %v2735
        %3268 = vmatpush.msra.mxu0 %v2719
        %3269 = vmatpush.msra.mxu0 %v2703
        %3270 = vmatpush.msra.mxu0 %v2687
        %3271 = vmatpush.msra.mxu0 %v2671
        %3272 = vmatpush.msra.mxu0 %v2655
        %3273 = vmatmul.f32.gmra.mxu0 %v2809
        %v3274 = vpop.f32.mrf.mxu0
        %v3275 = vadd.f32 %v2776, %v3274
        %3276 = vmatmul.f32.gmra.mxu0 %v2812
        %v3277 = vpop.f32.mrf.mxu0
        %v3278 = vadd.f32 %v2781, %v3277
        %3279 = vmatmul.f32.gmra.mxu0 %v2815
        %v3280 = vpop.f32.mrf.mxu0
        %v3281 = vadd.f32 %v2786, %v3280
        %3282 = vmatmul.f32.gmra.mxu0 %v2818
        %v3283 = vpop.f32.mrf.mxu0
        %v3284 = vadd.f32 %v2791, %v3283
        %3285 = vmatmul.f32.gmra.mxu0 %v2821
        %v3286 = vpop.f32.mrf.mxu0
        %v3287 = vadd.f32 %v2796, %v3286
        %3288 = vmatmul.f32.gmra.mxu0 %v2824
        %v3289 = vpop.f32.mrf.mxu0
        %v3290 = vadd.f32 %v2801, %v3289
        %3291 = vmatmul.f32.gmra.mxu0 %v2827
        %v3292 = vpop.f32.mrf.mxu0
        %v3293 = vadd.f32 %v2806, %v3292
        %3294 = vdwg.mxu0
        %3295 = vmatpush.msra.mxu0 0.0
        %3296 = vmatpush.msra.mxu0 0.0
        %3297 = vmatpush.msra.mxu0 0.0
        %3298 = vmatpush.msra.mxu0 0.0
        %3299 = vmatpush.msra.mxu0 0.0
        %3300 = vmatpush.msra.mxu0 0.0
        %3301 = vmatpush.msra.mxu0 0.0
        %3302 = vmatpush.msra.mxu0 0.0
        %3303 = vmatpush.msra.mxu0 0.0
        %3304 = vmatpush.msra.mxu0 %v2863
        %3305 = vmatpush.msra.mxu0 %v2736
        %3306 = vmatpush.msra.mxu0 %v2720
        %3307 = vmatpush.msra.mxu0 %v2704
        %3308 = vmatpush.msra.mxu0 %v2688
        %3309 = vmatpush.msra.mxu0 %v2672
        %3310 = vmatpush.msra.mxu0 %v2656
        %3311 = vmatmul.f32.gmra.mxu0 %v2809
        %v3312 = vpop.f32.mrf.mxu0
        %v3313 = vadd.f32 %v2776, %v3312
        %3314 = vmatmul.f32.gmra.mxu0 %v2812
        %v3315 = vpop.f32.mrf.mxu0
        %v3316 = vadd.f32 %v2781, %v3315
        %3317 = vmatmul.f32.gmra.mxu0 %v2815
        %v3318 = vpop.f32.mrf.mxu0
        %v3319 = vadd.f32 %v2786, %v3318
        %3320 = vmatmul.f32.gmra.mxu0 %v2818
        %v3321 = vpop.f32.mrf.mxu0
        %v3322 = vadd.f32 %v2791, %v3321
        %3323 = vmatmul.f32.gmra.mxu0 %v2821
        %v3324 = vpop.f32.mrf.mxu0
        %v3325 = vadd.f32 %v2796, %v3324
        %3326 = vmatmul.f32.gmra.mxu0 %v2824
        %v3327 = vpop.f32.mrf.mxu0
        %v3328 = vadd.f32 %v2801, %v3327
        %3329 = vmatmul.f32.gmra.mxu0 %v2827
        %v3330 = vpop.f32.mrf.mxu0
        %v3331 = vadd.f32 %v2806, %v3330
        %3332 = vdwg.mxu0
        %3333 = vmatpush.msra.mxu0 0.0
        %3334 = vmatpush.msra.mxu0 0.0
        %3335 = vmatpush.msra.mxu0 0.0
        %3336 = vmatpush.msra.mxu0 0.0
        %3337 = vmatpush.msra.mxu0 0.0
        %3338 = vmatpush.msra.mxu0 0.0
        %3339 = vmatpush.msra.mxu0 0.0
        %3340 = vmatpush.msra.mxu0 0.0
        %3341 = vmatpush.msra.mxu0 0.0
        %3342 = vmatpush.msra.mxu0 %v2866
        %3343 = vmatpush.msra.mxu0 %v2737
        %3344 = vmatpush.msra.mxu0 %v2721
        %3345 = vmatpush.msra.mxu0 %v2705
        %3346 = vmatpush.msra.mxu0 %v2689
        %3347 = vmatpush.msra.mxu0 %v2673
        %3348 = vmatpush.msra.mxu0 %v2657
        %3349 = vmatmul.f32.gmra.mxu0 %v2809
        %v3350 = vpop.f32.mrf.mxu0
        %v3351 = vadd.f32 %v2776, %v3350
        %3352 = vmatmul.f32.gmra.mxu0 %v2812
        %v3353 = vpop.f32.mrf.mxu0
        %v3354 = vadd.f32 %v2781, %v3353
        %3355 = vmatmul.f32.gmra.mxu0 %v2815
        %v3356 = vpop.f32.mrf.mxu0
        %v3357 = vadd.f32 %v2786, %v3356
        %3358 = vmatmul.f32.gmra.mxu0 %v2818
        %v3359 = vpop.f32.mrf.mxu0
        %v3360 = vadd.f32 %v2791, %v3359
        %3361 = vmatmul.f32.gmra.mxu0 %v2821
        %v3362 = vpop.f32.mrf.mxu0
        %v3363 = vadd.f32 %v2796, %v3362
        %3364 = vmatmul.f32.gmra.mxu0 %v2824
        %v3365 = vpop.f32.mrf.mxu0
        %v3366 = vadd.f32 %v2801, %v3365
        %3367 = vmatmul.f32.gmra.mxu0 %v2827
        %v3368 = vpop.f32.mrf.mxu0
        %v3369 = vadd.f32 %v2806, %v3368
        %3370 = vdwg.mxu0
        %3371 = vmatpush.msra.mxu0 0.0
        %3372 = vmatpush.msra.mxu0 0.0
        %3373 = vmatpush.msra.mxu0 0.0
        %3374 = vmatpush.msra.mxu0 0.0
        %3375 = vmatpush.msra.mxu0 0.0
        %3376 = vmatpush.msra.mxu0 0.0
        %3377 = vmatpush.msra.mxu0 0.0
        %3378 = vmatpush.msra.mxu0 0.0
        %3379 = vmatpush.msra.mxu0 0.0
        %3380 = vmatpush.msra.mxu0 %v2869
        %3381 = vmatpush.msra.mxu0 %v2738
        %3382 = vmatpush.msra.mxu0 %v2722
        %3383 = vmatpush.msra.mxu0 %v2706
        %3384 = vmatpush.msra.mxu0 %v2690
        %3385 = vmatpush.msra.mxu0 %v2674
        %3386 = vmatpush.msra.mxu0 %v2658
        %3387 = vmatmul.f32.gmra.mxu0 %v2809
        %v3388 = vpop.f32.mrf.mxu0
        %v3389 = vadd.f32 %v2776, %v3388
        %3390 = vmatmul.f32.gmra.mxu0 %v2812
        %v3391 = vpop.f32.mrf.mxu0
        %v3392 = vadd.f32 %v2781, %v3391
        %3393 = vmatmul.f32.gmra.mxu0 %v2815
        %v3394 = vpop.f32.mrf.mxu0
        %v3395 = vadd.f32 %v2786, %v3394
        %3396 = vmatmul.f32.gmra.mxu0 %v2818
        %v3397 = vpop.f32.mrf.mxu0
        %v3398 = vadd.f32 %v2791, %v3397
        %3399 = vmatmul.f32.gmra.mxu0 %v2821
        %v3400 = vpop.f32.mrf.mxu0
        %v3401 = vadd.f32 %v2796, %v3400
        %3402 = vmatmul.f32.gmra.mxu0 %v2824
        %v3403 = vpop.f32.mrf.mxu0
        %v3404 = vadd.f32 %v2801, %v3403
        %3405 = vmatmul.f32.gmra.mxu0 %v2827
        %v3406 = vpop.f32.mrf.mxu0
        %v3407 = vadd.f32 %v2806, %v3406
        %3408 = vdwg.mxu0
        %3409 = vmatpush.msra.mxu0 0.0
        %3410 = vmatpush.msra.mxu0 0.0
        %3411 = vmatpush.msra.mxu0 0.0
        %3412 = vmatpush.msra.mxu0 0.0
        %3413 = vmatpush.msra.mxu0 0.0
        %3414 = vmatpush.msra.mxu0 0.0
        %3415 = vmatpush.msra.mxu0 0.0
        %3416 = vmatpush.msra.mxu0 0.0
        %3417 = vmatpush.msra.mxu0 0.0
        %3418 = vmatpush.msra.mxu0 %v2872
        %3419 = vmatpush.msra.mxu0 %v2739
        %3420 = vmatpush.msra.mxu0 %v2723
        %3421 = vmatpush.msra.mxu0 %v2707
        %3422 = vmatpush.msra.mxu0 %v2691
        %3423 = vmatpush.msra.mxu0 %v2675
        %3424 = vmatpush.msra.mxu0 %v2659
        %3425 = vmatmul.f32.gmra.mxu0 %v2809
        %v3426 = vpop.f32.mrf.mxu0
        %v3427 = vadd.f32 %v2776, %v3426
        %3428 = vmatmul.f32.gmra.mxu0 %v2812
        %v3429 = vpop.f32.mrf.mxu0
        %v3430 = vadd.f32 %v2781, %v3429
        %3431 = vmatmul.f32.gmra.mxu0 %v2815
        %v3432 = vpop.f32.mrf.mxu0
        %v3433 = vadd.f32 %v2786, %v3432
        %3434 = vmatmul.f32.gmra.mxu0 %v2818
        %v3435 = vpop.f32.mrf.mxu0
        %v3436 = vadd.f32 %v2791, %v3435
        %3437 = vmatmul.f32.gmra.mxu0 %v2821
        %v3438 = vpop.f32.mrf.mxu0
        %v3439 = vadd.f32 %v2796, %v3438
        %3440 = vmatmul.f32.gmra.mxu0 %v2824
        %v3441 = vpop.f32.mrf.mxu0
        %v3442 = vadd.f32 %v2801, %v3441
        %3443 = vmatmul.f32.gmra.mxu0 %v2827
        %v3444 = vpop.f32.mrf.mxu0
        %v3445 = vadd.f32 %v2806, %v3444
        %3446 = vdwg.mxu0
        %3447 = vmatpush.msra.mxu0 0.0
        %3448 = vmatpush.msra.mxu0 0.0
        %3449 = vmatpush.msra.mxu0 0.0
        %3450 = vmatpush.msra.mxu0 0.0
        %3451 = vmatpush.msra.mxu0 0.0
        %3452 = vmatpush.msra.mxu0 0.0
        %3453 = vmatpush.msra.mxu0 0.0
        %3454 = vmatpush.msra.mxu0 0.0
        %3455 = vmatpush.msra.mxu0 0.0
        %3456 = vmatpush.msra.mxu0 %v2875
        %3457 = vmatpush.msra.mxu0 %v2740
        %3458 = vmatpush.msra.mxu0 %v2724
        %3459 = vmatpush.msra.mxu0 %v2708
        %3460 = vmatpush.msra.mxu0 %v2692
        %3461 = vmatpush.msra.mxu0 %v2676
        %3462 = vmatpush.msra.mxu0 %v2660
        %3463 = vmatmul.f32.gmra.mxu0 %v2809
        %v3464 = vpop.f32.mrf.mxu0
        %v3465 = vadd.f32 %v2776, %v3464
        %3466 = vmatmul.f32.gmra.mxu0 %v2812
        %v3467 = vpop.f32.mrf.mxu0
        %v3468 = vadd.f32 %v2781, %v3467
        %3469 = vmatmul.f32.gmra.mxu0 %v2815
        %v3470 = vpop.f32.mrf.mxu0
        %v3471 = vadd.f32 %v2786, %v3470
        %3472 = vmatmul.f32.gmra.mxu0 %v2818
        %v3473 = vpop.f32.mrf.mxu0
        %v3474 = vadd.f32 %v2791, %v3473
        %3475 = vmatmul.f32.gmra.mxu0 %v2821
        %v3476 = vpop.f32.mrf.mxu0
        %v3477 = vadd.f32 %v2796, %v3476
        %3478 = vmatmul.f32.gmra.mxu0 %v2824
        %v3479 = vpop.f32.mrf.mxu0
        %v3480 = vadd.f32 %v2801, %v3479
        %3481 = vmatmul.f32.gmra.mxu0 %v2827
        %v3482 = vpop.f32.mrf.mxu0
        %v3483 = vadd.f32 %v2806, %v3482
        %3484 = vdwg.mxu0
        %v3485 = vtanh.pop %v2895
        %v3486 = vtanh.pop %v2933
        %v3487 = vtanh.pop %v2971
        %v3488 = vtanh.pop %v3009
        %v3489 = vtanh.pop %v3047
        %v3490 = vtanh.pop %v3085
        %v3491 = vtanh.pop %v3123
        %v3492 = vtanh.pop %v3161
        %v3493 = vtanh.pop %v3199
        %v3494 = vtanh.pop %v3237
        %v3495 = vtanh.pop %v3275
        %v3496 = vtanh.pop %v3313
        %v3497 = vtanh.pop %v3351
        %v3498 = vtanh.pop %v3389
        %v3499 = vtanh.pop %v3427
        %v3500 = vtanh.pop %v3465
        %v3501 = vtanh.pop %v2898
        %v3502 = vtanh.pop %v2936
        %v3503 = vtanh.pop %v2974
        %v3504 = vtanh.pop %v3012
        %v3505 = vtanh.pop %v3050
        %v3506 = vtanh.pop %v3088
        %v3507 = vtanh.pop %v3126
        %v3508 = vtanh.pop %v3164
        %v3509 = vtanh.pop %v3202
        %v3510 = vtanh.pop %v3240
        %v3511 = vtanh.pop %v3278
        %v3512 = vtanh.pop %v3316
        %v3513 = vtanh.pop %v3354
        %v3514 = vtanh.pop %v3392
        %v3515 = vtanh.pop %v3430
        %v3516 = vtanh.pop %v3468
        %v3517 = vtanh.pop %v2901
        %v3518 = vtanh.pop %v2939
        %v3519 = vtanh.pop %v2977
        %v3520 = vtanh.pop %v3015
        %v3521 = vtanh.pop %v3053
        %v3522 = vtanh.pop %v3091
        %v3523 = vtanh.pop %v3129
        %v3524 = vtanh.pop %v3167
        %v3525 = vtanh.pop %v3205
        %v3526 = vtanh.pop %v3243
        %v3527 = vtanh.pop %v3281
        %v3528 = vtanh.pop %v3319
        %v3529 = vtanh.pop %v3357
        %v3530 = vtanh.pop %v3395
        %v3531 = vtanh.pop %v3433
        %v3532 = vtanh.pop %v3471
        %v3533 = vtanh.pop %v2904
        %v3534 = vtanh.pop %v2942
        %v3535 = vtanh.pop %v2980
        %v3536 = vtanh.pop %v3018
        %v3537 = vtanh.pop %v3056
        %v3538 = vtanh.pop %v3094
        %v3539 = vtanh.pop %v3132
        %v3540 = vtanh.pop %v3170
        %v3541 = vtanh.pop %v3208
        %v3542 = vtanh.pop %v3246
        %v3543 = vtanh.pop %v3284
        %v3544 = vtanh.pop %v3322
        %v3545 = vtanh.pop %v3360
        %v3546 = vtanh.pop %v3398
        %v3547 = vtanh.pop %v3436
        %v3548 = vtanh.pop %v3474
        %v3549 = vtanh.pop %v2907
        %v3550 = vtanh.pop %v2945
        %v3551 = vtanh.pop %v2983
        %v3552 = vtanh.pop %v3021
        %v3553 = vtanh.pop %v3059
        %v3554 = vtanh.pop %v3097
        %v3555 = vtanh.pop %v3135
        %v3556 = vtanh.pop %v3173
        %v3557 = vtanh.pop %v3211
        %v3558 = vtanh.pop %v3249
        %v3559 = vtanh.pop %v3287
        %v3560 = vtanh.pop %v3325
        %v3561 = vtanh.pop %v3363
        %v3562 = vtanh.pop %v3401
        %v3563 = vtanh.pop %v3439
        %v3564 = vtanh.pop %v3477
        %v3565 = vtanh.pop %v2910
        %v3566 = vtanh.pop %v2948
        %v3567 = vtanh.pop %v2986
        %v3568 = vtanh.pop %v3024
        %v3569 = vtanh.pop %v3062
        %v3570 = vtanh.pop %v3100
        %v3571 = vtanh.pop %v3138
        %v3572 = vtanh.pop %v3176
        %v3573 = vtanh.pop %v3214
        %v3574 = vtanh.pop %v3252
        %v3575 = vtanh.pop %v3290
        %v3576 = vtanh.pop %v3328
        %v3577 = vtanh.pop %v3366
        %v3578 = vtanh.pop %v3404
        %v3579 = vtanh.pop %v3442
        %v3580 = vtanh.pop %v3480
        %v3581 = vtanh.pop %v2913
        %v3582 = vtanh.pop %v2951
        %v3583 = vtanh.pop %v2989
        %v3584 = vtanh.pop %v3027
        %v3585 = vtanh.pop %v3065
        %v3586 = vtanh.pop %v3103
        %v3587 = vtanh.pop %v3141
        %v3588 = vtanh.pop %v3179
        %v3589 = vtanh.pop %v3217
        %v3590 = vtanh.pop %v3255
        %v3591 = vtanh.pop %v3293
        %v3592 = vtanh.pop %v3331
        %v3593 = vtanh.pop %v3369
        %v3594 = vtanh.pop %v3407
        %v3595 = vtanh.pop %v3445
        %v3596 = vtanh.pop %v3483
        %s3597 = scalar_lea.vmem %s3, 168
        %v3598 = vld [vmem:[%s3597] sm:$0xff]
        %v3599 = vld [vmem:[%s3597 + $0x8] sm:$0xff]
        %v3600 = vld [vmem:[%s3597 + $0x10] sm:$0xff]
        %v3601 = vld [vmem:[%s3597 + $0x18] sm:$0xff]
        %v3602 = vld [vmem:[%s3597 + $0x20] sm:$0xff]
        %v3603 = vld [vmem:[%s3597 + $0x28] sm:$0xff]
        %v3604 = vld [vmem:[%s3597 + $0x30] sm:$0x3]
        %s3605 = scalar_lea.vmem %s4, 168
        %v3606 = vld [vmem:[%s3605] sm:$0xff]
        %v3607 = vld [vmem:[%s3605 + $0x8] sm:$0xff]
        %v3608 = vld [vmem:[%s3605 + $0x10] sm:$0xff]
        %v3609 = vld [vmem:[%s3605 + $0x18] sm:$0xff]
        %v3610 = vld [vmem:[%s3605 + $0x20] sm:$0xff]
        %v3611 = vld [vmem:[%s3605 + $0x28] sm:$0xff]
        %v3612 = vld [vmem:[%s3605 + $0x30] sm:$0x3]
        %3614 = vset.pattern.permute.xlu0 0
        %3615 = vperm.xlu0 %3614, %v3606
        %v3616 = vpop.permute.xlu0 %3615
        %3619 = vset.pattern.permute.xlu0 0
        %3620 = vperm.xlu0 %3619, %v3607
        %v3621 = vpop.permute.xlu0 %3620
        %3624 = vset.pattern.permute.xlu0 0
        %3625 = vperm.xlu0 %3624, %v3608
        %v3626 = vpop.permute.xlu0 %3625
        %3629 = vset.pattern.permute.xlu0 0
        %3630 = vperm.xlu0 %3629, %v3609
        %v3631 = vpop.permute.xlu0 %3630
        %3634 = vset.pattern.permute.xlu0 0
        %3635 = vperm.xlu0 %3634, %v3610
        %v3636 = vpop.permute.xlu0 %3635
        %3639 = vset.pattern.permute.xlu0 0
        %3640 = vperm.xlu0 %3639, %v3611
        %v3641 = vpop.permute.xlu0 %3640
        %3644 = vset.pattern.permute.xlu0 0
        %3645 = vperm.xlu0 %3644, %v3612
        %v3646 = vpop.permute.xlu0 %3645
        %v3649 = vsel %vm1126, %v3598, 0
        %v3652 = vsel %vm1126, %v3599, 0
        %v3655 = vsel %vm1126, %v3600, 0
        %v3658 = vsel %vm1126, %v3601, 0
        %v3661 = vsel %vm1126, %v3602, 0
        %v3664 = vsel %vm1126, %v3603, 0
        %v3667 = vsel %vm1126, %v3604, 0
        %v3670 = vsel %vm1148, %v3581, 0
        %v3673 = vsel %vm1148, %v3582, 0
        %v3676 = vsel %vm1148, %v3583, 0
        %v3679 = vsel %vm1148, %v3584, 0
        %v3682 = vsel %vm1148, %v3585, 0
        %v3685 = vsel %vm1148, %v3586, 0
        %v3688 = vsel %vm1148, %v3587, 0
        %v3691 = vsel %vm1148, %v3588, 0
        %v3694 = vsel %vm1148, %v3589, 0
        %v3697 = vsel %vm1148, %v3590, 0
        %v3700 = vsel %vm1148, %v3591, 0
        %v3703 = vsel %vm1148, %v3592, 0
        %v3706 = vsel %vm1148, %v3593, 0
        %v3709 = vsel %vm1148, %v3594, 0
        %v3712 = vsel %vm1148, %v3595, 0
        %v3715 = vsel %vm1148, %v3596, 0
        %3717 = vmatpush.msra.mxu0 0.0
        %3718 = vmatpush.msra.mxu0 0.0
        %3719 = vmatpush.msra.mxu0 0.0
        %3720 = vmatpush.msra.mxu0 0.0
        %3721 = vmatpush.msra.mxu0 0.0
        %3722 = vmatpush.msra.mxu0 0.0
        %3723 = vmatpush.msra.mxu0 0.0
        %3724 = vmatpush.msra.mxu0 0.0
        %3725 = vmatpush.msra.mxu0 0.0
        %3726 = vmatpush.msra.mxu0 %v3670
        %3727 = vmatpush.msra.mxu0 %v3565
        %3728 = vmatpush.msra.mxu0 %v3549
        %3729 = vmatpush.msra.mxu0 %v3533
        %3730 = vmatpush.msra.mxu0 %v3517
        %3731 = vmatpush.msra.mxu0 %v3501
        %3732 = vmatpush.msra.mxu0 %v3485
        %3733 = vmatmul.f32.gmra.mxu0 %v3649
        %v3734 = vpop.f32.mrf.mxu0
        %v3735 = vadd.f32 %v3616, %v3734
        %3736 = vmatmul.f32.gmra.mxu0 %v3652
        %v3737 = vpop.f32.mrf.mxu0
        %v3738 = vadd.f32 %v3621, %v3737
        %3739 = vmatmul.f32.gmra.mxu0 %v3655
        %v3740 = vpop.f32.mrf.mxu0
        %v3741 = vadd.f32 %v3626, %v3740
        %3742 = vmatmul.f32.gmra.mxu0 %v3658
        %v3743 = vpop.f32.mrf.mxu0
        %v3744 = vadd.f32 %v3631, %v3743
        %3745 = vmatmul.f32.gmra.mxu0 %v3661
        %v3746 = vpop.f32.mrf.mxu0
        %v3747 = vadd.f32 %v3636, %v3746
        %3748 = vmatmul.f32.gmra.mxu0 %v3664
        %v3749 = vpop.f32.mrf.mxu0
        %v3750 = vadd.f32 %v3641, %v3749
        %3751 = vmatmul.f32.gmra.mxu0 %v3667
        %v3752 = vpop.f32.mrf.mxu0
        %v3753 = vadd.f32 %v3646, %v3752
        %3754 = vdwg.mxu0
        %3755 = vmatpush.msra.mxu0 0.0
        %3756 = vmatpush.msra.mxu0 0.0
        %3757 = vmatpush.msra.mxu0 0.0
        %3758 = vmatpush.msra.mxu0 0.0
        %3759 = vmatpush.msra.mxu0 0.0
        %3760 = vmatpush.msra.mxu0 0.0
        %3761 = vmatpush.msra.mxu0 0.0
        %3762 = vmatpush.msra.mxu0 0.0
        %3763 = vmatpush.msra.mxu0 0.0
        %3764 = vmatpush.msra.mxu0 %v3673
        %3765 = vmatpush.msra.mxu0 %v3566
        %3766 = vmatpush.msra.mxu0 %v3550
        %3767 = vmatpush.msra.mxu0 %v3534
        %3768 = vmatpush.msra.mxu0 %v3518
        %3769 = vmatpush.msra.mxu0 %v3502
        %3770 = vmatpush.msra.mxu0 %v3486
        %3771 = vmatmul.f32.gmra.mxu0 %v3649
        %v3772 = vpop.f32.mrf.mxu0
        %v3773 = vadd.f32 %v3616, %v3772
        %3774 = vmatmul.f32.gmra.mxu0 %v3652
        %v3775 = vpop.f32.mrf.mxu0
        %v3776 = vadd.f32 %v3621, %v3775
        %3777 = vmatmul.f32.gmra.mxu0 %v3655
        %v3778 = vpop.f32.mrf.mxu0
        %v3779 = vadd.f32 %v3626, %v3778
        %3780 = vmatmul.f32.gmra.mxu0 %v3658
        %v3781 = vpop.f32.mrf.mxu0
        %v3782 = vadd.f32 %v3631, %v3781
        %3783 = vmatmul.f32.gmra.mxu0 %v3661
        %v3784 = vpop.f32.mrf.mxu0
        %v3785 = vadd.f32 %v3636, %v3784
        %3786 = vmatmul.f32.gmra.mxu0 %v3664
        %v3787 = vpop.f32.mrf.mxu0
        %v3788 = vadd.f32 %v3641, %v3787
        %3789 = vmatmul.f32.gmra.mxu0 %v3667
        %v3790 = vpop.f32.mrf.mxu0
        %v3791 = vadd.f32 %v3646, %v3790
        %3792 = vdwg.mxu0
        %3793 = vmatpush.msra.mxu0 0.0
        %3794 = vmatpush.msra.mxu0 0.0
        %3795 = vmatpush.msra.mxu0 0.0
        %3796 = vmatpush.msra.mxu0 0.0
        %3797 = vmatpush.msra.mxu0 0.0
        %3798 = vmatpush.msra.mxu0 0.0
        %3799 = vmatpush.msra.mxu0 0.0
        %3800 = vmatpush.msra.mxu0 0.0
        %3801 = vmatpush.msra.mxu0 0.0
        %3802 = vmatpush.msra.mxu0 %v3676
        %3803 = vmatpush.msra.mxu0 %v3567
        %3804 = vmatpush.msra.mxu0 %v3551
        %3805 = vmatpush.msra.mxu0 %v3535
        %3806 = vmatpush.msra.mxu0 %v3519
        %3807 = vmatpush.msra.mxu0 %v3503
        %3808 = vmatpush.msra.mxu0 %v3487
        %3809 = vmatmul.f32.gmra.mxu0 %v3649
        %v3810 = vpop.f32.mrf.mxu0
        %v3811 = vadd.f32 %v3616, %v3810
        %3812 = vmatmul.f32.gmra.mxu0 %v3652
        %v3813 = vpop.f32.mrf.mxu0
        %v3814 = vadd.f32 %v3621, %v3813
        %3815 = vmatmul.f32.gmra.mxu0 %v3655
        %v3816 = vpop.f32.mrf.mxu0
        %v3817 = vadd.f32 %v3626, %v3816
        %3818 = vmatmul.f32.gmra.mxu0 %v3658
        %v3819 = vpop.f32.mrf.mxu0
        %v3820 = vadd.f32 %v3631, %v3819
        %3821 = vmatmul.f32.gmra.mxu0 %v3661
        %v3822 = vpop.f32.mrf.mxu0
        %v3823 = vadd.f32 %v3636, %v3822
        %3824 = vmatmul.f32.gmra.mxu0 %v3664
        %v3825 = vpop.f32.mrf.mxu0
        %v3826 = vadd.f32 %v3641, %v3825
        %3827 = vmatmul.f32.gmra.mxu0 %v3667
        %v3828 = vpop.f32.mrf.mxu0
        %v3829 = vadd.f32 %v3646, %v3828
        %3830 = vdwg.mxu0
        %3831 = vmatpush.msra.mxu0 0.0
        %3832 = vmatpush.msra.mxu0 0.0
        %3833 = vmatpush.msra.mxu0 0.0
        %3834 = vmatpush.msra.mxu0 0.0
        %3835 = vmatpush.msra.mxu0 0.0
        %3836 = vmatpush.msra.mxu0 0.0
        %3837 = vmatpush.msra.mxu0 0.0
        %3838 = vmatpush.msra.mxu0 0.0
        %3839 = vmatpush.msra.mxu0 0.0
        %3840 = vmatpush.msra.mxu0 %v3679
        %3841 = vmatpush.msra.mxu0 %v3568
        %3842 = vmatpush.msra.mxu0 %v3552
        %3843 = vmatpush.msra.mxu0 %v3536
        %3844 = vmatpush.msra.mxu0 %v3520
        %3845 = vmatpush.msra.mxu0 %v3504
        %3846 = vmatpush.msra.mxu0 %v3488
        %3847 = vmatmul.f32.gmra.mxu0 %v3649
        %v3848 = vpop.f32.mrf.mxu0
        %v3849 = vadd.f32 %v3616, %v3848
        %3850 = vmatmul.f32.gmra.mxu0 %v3652
        %v3851 = vpop.f32.mrf.mxu0
        %v3852 = vadd.f32 %v3621, %v3851
        %3853 = vmatmul.f32.gmra.mxu0 %v3655
        %v3854 = vpop.f32.mrf.mxu0
        %v3855 = vadd.f32 %v3626, %v3854
        %3856 = vmatmul.f32.gmra.mxu0 %v3658
        %v3857 = vpop.f32.mrf.mxu0
        %v3858 = vadd.f32 %v3631, %v3857
        %3859 = vmatmul.f32.gmra.mxu0 %v3661
        %v3860 = vpop.f32.mrf.mxu0
        %v3861 = vadd.f32 %v3636, %v3860
        %3862 = vmatmul.f32.gmra.mxu0 %v3664
        %v3863 = vpop.f32.mrf.mxu0
        %v3864 = vadd.f32 %v3641, %v3863
        %3865 = vmatmul.f32.gmra.mxu0 %v3667
        %v3866 = vpop.f32.mrf.mxu0
        %v3867 = vadd.f32 %v3646, %v3866
        %3868 = vdwg.mxu0
        %3869 = vmatpush.msra.mxu0 0.0
        %3870 = vmatpush.msra.mxu0 0.0
        %3871 = vmatpush.msra.mxu0 0.0
        %3872 = vmatpush.msra.mxu0 0.0
        %3873 = vmatpush.msra.mxu0 0.0
        %3874 = vmatpush.msra.mxu0 0.0
        %3875 = vmatpush.msra.mxu0 0.0
        %3876 = vmatpush.msra.mxu0 0.0
        %3877 = vmatpush.msra.mxu0 0.0
        %3878 = vmatpush.msra.mxu0 %v3682
        %3879 = vmatpush.msra.mxu0 %v3569
        %3880 = vmatpush.msra.mxu0 %v3553
        %3881 = vmatpush.msra.mxu0 %v3537
        %3882 = vmatpush.msra.mxu0 %v3521
        %3883 = vmatpush.msra.mxu0 %v3505
        %3884 = vmatpush.msra.mxu0 %v3489
        %3885 = vmatmul.f32.gmra.mxu0 %v3649
        %v3886 = vpop.f32.mrf.mxu0
        %v3887 = vadd.f32 %v3616, %v3886
        %3888 = vmatmul.f32.gmra.mxu0 %v3652
        %v3889 = vpop.f32.mrf.mxu0
        %v3890 = vadd.f32 %v3621, %v3889
        %3891 = vmatmul.f32.gmra.mxu0 %v3655
        %v3892 = vpop.f32.mrf.mxu0
        %v3893 = vadd.f32 %v3626, %v3892
        %3894 = vmatmul.f32.gmra.mxu0 %v3658
        %v3895 = vpop.f32.mrf.mxu0
        %v3896 = vadd.f32 %v3631, %v3895
        %3897 = vmatmul.f32.gmra.mxu0 %v3661
        %v3898 = vpop.f32.mrf.mxu0
        %v3899 = vadd.f32 %v3636, %v3898
        %3900 = vmatmul.f32.gmra.mxu0 %v3664
        %v3901 = vpop.f32.mrf.mxu0
        %v3902 = vadd.f32 %v3641, %v3901
        %3903 = vmatmul.f32.gmra.mxu0 %v3667
        %v3904 = vpop.f32.mrf.mxu0
        %v3905 = vadd.f32 %v3646, %v3904
        %3906 = vdwg.mxu0
        %3907 = vmatpush.msra.mxu0 0.0
        %3908 = vmatpush.msra.mxu0 0.0
        %3909 = vmatpush.msra.mxu0 0.0
        %3910 = vmatpush.msra.mxu0 0.0
        %3911 = vmatpush.msra.mxu0 0.0
        %3912 = vmatpush.msra.mxu0 0.0
        %3913 = vmatpush.msra.mxu0 0.0
        %3914 = vmatpush.msra.mxu0 0.0
        %3915 = vmatpush.msra.mxu0 0.0
        %3916 = vmatpush.msra.mxu0 %v3685
        %3917 = vmatpush.msra.mxu0 %v3570
        %3918 = vmatpush.msra.mxu0 %v3554
        %3919 = vmatpush.msra.mxu0 %v3538
        %3920 = vmatpush.msra.mxu0 %v3522
        %3921 = vmatpush.msra.mxu0 %v3506
        %3922 = vmatpush.msra.mxu0 %v3490
        %3923 = vmatmul.f32.gmra.mxu0 %v3649
        %v3924 = vpop.f32.mrf.mxu0
        %v3925 = vadd.f32 %v3616, %v3924
        %3926 = vmatmul.f32.gmra.mxu0 %v3652
        %v3927 = vpop.f32.mrf.mxu0
        %v3928 = vadd.f32 %v3621, %v3927
        %3929 = vmatmul.f32.gmra.mxu0 %v3655
        %v3930 = vpop.f32.mrf.mxu0
        %v3931 = vadd.f32 %v3626, %v3930
        %3932 = vmatmul.f32.gmra.mxu0 %v3658
        %v3933 = vpop.f32.mrf.mxu0
        %v3934 = vadd.f32 %v3631, %v3933
        %3935 = vmatmul.f32.gmra.mxu0 %v3661
        %v3936 = vpop.f32.mrf.mxu0
        %v3937 = vadd.f32 %v3636, %v3936
        %3938 = vmatmul.f32.gmra.mxu0 %v3664
        %v3939 = vpop.f32.mrf.mxu0
        %v3940 = vadd.f32 %v3641, %v3939
        %3941 = vmatmul.f32.gmra.mxu0 %v3667
        %v3942 = vpop.f32.mrf.mxu0
        %v3943 = vadd.f32 %v3646, %v3942
        %3944 = vdwg.mxu0
        %3945 = vmatpush.msra.mxu0 0.0
        %3946 = vmatpush.msra.mxu0 0.0
        %3947 = vmatpush.msra.mxu0 0.0
        %3948 = vmatpush.msra.mxu0 0.0
        %3949 = vmatpush.msra.mxu0 0.0
        %3950 = vmatpush.msra.mxu0 0.0
        %3951 = vmatpush.msra.mxu0 0.0
        %3952 = vmatpush.msra.mxu0 0.0
        %3953 = vmatpush.msra.mxu0 0.0
        %3954 = vmatpush.msra.mxu0 %v3688
        %3955 = vmatpush.msra.mxu0 %v3571
        %3956 = vmatpush.msra.mxu0 %v3555
        %3957 = vmatpush.msra.mxu0 %v3539
        %3958 = vmatpush.msra.mxu0 %v3523
        %3959 = vmatpush.msra.mxu0 %v3507
        %3960 = vmatpush.msra.mxu0 %v3491
        %3961 = vmatmul.f32.gmra.mxu0 %v3649
        %v3962 = vpop.f32.mrf.mxu0
        %v3963 = vadd.f32 %v3616, %v3962
        %3964 = vmatmul.f32.gmra.mxu0 %v3652
        %v3965 = vpop.f32.mrf.mxu0
        %v3966 = vadd.f32 %v3621, %v3965
        %3967 = vmatmul.f32.gmra.mxu0 %v3655
        %v3968 = vpop.f32.mrf.mxu0
        %v3969 = vadd.f32 %v3626, %v3968
        %3970 = vmatmul.f32.gmra.mxu0 %v3658
        %v3971 = vpop.f32.mrf.mxu0
        %v3972 = vadd.f32 %v3631, %v3971
        %3973 = vmatmul.f32.gmra.mxu0 %v3661
        %v3974 = vpop.f32.mrf.mxu0
        %v3975 = vadd.f32 %v3636, %v3974
        %3976 = vmatmul.f32.gmra.mxu0 %v3664
        %v3977 = vpop.f32.mrf.mxu0
        %v3978 = vadd.f32 %v3641, %v3977
        %3979 = vmatmul.f32.gmra.mxu0 %v3667
        %v3980 = vpop.f32.mrf.mxu0
        %v3981 = vadd.f32 %v3646, %v3980
        %3982 = vdwg.mxu0
        %3983 = vmatpush.msra.mxu0 0.0
        %3984 = vmatpush.msra.mxu0 0.0
        %3985 = vmatpush.msra.mxu0 0.0
        %3986 = vmatpush.msra.mxu0 0.0
        %3987 = vmatpush.msra.mxu0 0.0
        %3988 = vmatpush.msra.mxu0 0.0
        %3989 = vmatpush.msra.mxu0 0.0
        %3990 = vmatpush.msra.mxu0 0.0
        %3991 = vmatpush.msra.mxu0 0.0
        %3992 = vmatpush.msra.mxu0 %v3691
        %3993 = vmatpush.msra.mxu0 %v3572
        %3994 = vmatpush.msra.mxu0 %v3556
        %3995 = vmatpush.msra.mxu0 %v3540
        %3996 = vmatpush.msra.mxu0 %v3524
        %3997 = vmatpush.msra.mxu0 %v3508
        %3998 = vmatpush.msra.mxu0 %v3492
        %3999 = vmatmul.f32.gmra.mxu0 %v3649
        %v4000 = vpop.f32.mrf.mxu0
        %v4001 = vadd.f32 %v3616, %v4000
        %4002 = vmatmul.f32.gmra.mxu0 %v3652
        %v4003 = vpop.f32.mrf.mxu0
        %v4004 = vadd.f32 %v3621, %v4003
        %4005 = vmatmul.f32.gmra.mxu0 %v3655
        %v4006 = vpop.f32.mrf.mxu0
        %v4007 = vadd.f32 %v3626, %v4006
        %4008 = vmatmul.f32.gmra.mxu0 %v3658
        %v4009 = vpop.f32.mrf.mxu0
        %v4010 = vadd.f32 %v3631, %v4009
        %4011 = vmatmul.f32.gmra.mxu0 %v3661
        %v4012 = vpop.f32.mrf.mxu0
        %v4013 = vadd.f32 %v3636, %v4012
        %4014 = vmatmul.f32.gmra.mxu0 %v3664
        %v4015 = vpop.f32.mrf.mxu0
        %v4016 = vadd.f32 %v3641, %v4015
        %4017 = vmatmul.f32.gmra.mxu0 %v3667
        %v4018 = vpop.f32.mrf.mxu0
        %v4019 = vadd.f32 %v3646, %v4018
        %4020 = vdwg.mxu0
        %4021 = vmatpush.msra.mxu0 0.0
        %4022 = vmatpush.msra.mxu0 0.0
        %4023 = vmatpush.msra.mxu0 0.0
        %4024 = vmatpush.msra.mxu0 0.0
        %4025 = vmatpush.msra.mxu0 0.0
        %4026 = vmatpush.msra.mxu0 0.0
        %4027 = vmatpush.msra.mxu0 0.0
        %4028 = vmatpush.msra.mxu0 0.0
        %4029 = vmatpush.msra.mxu0 0.0
        %4030 = vmatpush.msra.mxu0 %v3694
        %4031 = vmatpush.msra.mxu0 %v3573
        %4032 = vmatpush.msra.mxu0 %v3557
        %4033 = vmatpush.msra.mxu0 %v3541
        %4034 = vmatpush.msra.mxu0 %v3525
        %4035 = vmatpush.msra.mxu0 %v3509
        %4036 = vmatpush.msra.mxu0 %v3493
        %4037 = vmatmul.f32.gmra.mxu0 %v3649
        %v4038 = vpop.f32.mrf.mxu0
        %v4039 = vadd.f32 %v3616, %v4038
        %4040 = vmatmul.f32.gmra.mxu0 %v3652
        %v4041 = vpop.f32.mrf.mxu0
        %v4042 = vadd.f32 %v3621, %v4041
        %4043 = vmatmul.f32.gmra.mxu0 %v3655
        %v4044 = vpop.f32.mrf.mxu0
        %v4045 = vadd.f32 %v3626, %v4044
        %4046 = vmatmul.f32.gmra.mxu0 %v3658
        %v4047 = vpop.f32.mrf.mxu0
        %v4048 = vadd.f32 %v3631, %v4047
        %4049 = vmatmul.f32.gmra.mxu0 %v3661
        %v4050 = vpop.f32.mrf.mxu0
        %v4051 = vadd.f32 %v3636, %v4050
        %4052 = vmatmul.f32.gmra.mxu0 %v3664
        %v4053 = vpop.f32.mrf.mxu0
        %v4054 = vadd.f32 %v3641, %v4053
        %4055 = vmatmul.f32.gmra.mxu0 %v3667
        %v4056 = vpop.f32.mrf.mxu0
        %v4057 = vadd.f32 %v3646, %v4056
        %4058 = vdwg.mxu0
        %4059 = vmatpush.msra.mxu0 0.0
        %4060 = vmatpush.msra.mxu0 0.0
        %4061 = vmatpush.msra.mxu0 0.0
        %4062 = vmatpush.msra.mxu0 0.0
        %4063 = vmatpush.msra.mxu0 0.0
        %4064 = vmatpush.msra.mxu0 0.0
        %4065 = vmatpush.msra.mxu0 0.0
        %4066 = vmatpush.msra.mxu0 0.0
        %4067 = vmatpush.msra.mxu0 0.0
        %4068 = vmatpush.msra.mxu0 %v3697
        %4069 = vmatpush.msra.mxu0 %v3574
        %4070 = vmatpush.msra.mxu0 %v3558
        %4071 = vmatpush.msra.mxu0 %v3542
        %4072 = vmatpush.msra.mxu0 %v3526
        %4073 = vmatpush.msra.mxu0 %v3510
        %4074 = vmatpush.msra.mxu0 %v3494
        %4075 = vmatmul.f32.gmra.mxu0 %v3649
        %v4076 = vpop.f32.mrf.mxu0
        %v4077 = vadd.f32 %v3616, %v4076
        %4078 = vmatmul.f32.gmra.mxu0 %v3652
        %v4079 = vpop.f32.mrf.mxu0
        %v4080 = vadd.f32 %v3621, %v4079
        %4081 = vmatmul.f32.gmra.mxu0 %v3655
        %v4082 = vpop.f32.mrf.mxu0
        %v4083 = vadd.f32 %v3626, %v4082
        %4084 = vmatmul.f32.gmra.mxu0 %v3658
        %v4085 = vpop.f32.mrf.mxu0
        %v4086 = vadd.f32 %v3631, %v4085
        %4087 = vmatmul.f32.gmra.mxu0 %v3661
        %v4088 = vpop.f32.mrf.mxu0
        %v4089 = vadd.f32 %v3636, %v4088
        %4090 = vmatmul.f32.gmra.mxu0 %v3664
        %v4091 = vpop.f32.mrf.mxu0
        %v4092 = vadd.f32 %v3641, %v4091
        %4093 = vmatmul.f32.gmra.mxu0 %v3667
        %v4094 = vpop.f32.mrf.mxu0
        %v4095 = vadd.f32 %v3646, %v4094
        %4096 = vdwg.mxu0
        %4097 = vmatpush.msra.mxu0 0.0
        %4098 = vmatpush.msra.mxu0 0.0
        %4099 = vmatpush.msra.mxu0 0.0
        %4100 = vmatpush.msra.mxu0 0.0
        %4101 = vmatpush.msra.mxu0 0.0
        %4102 = vmatpush.msra.mxu0 0.0
        %4103 = vmatpush.msra.mxu0 0.0
        %4104 = vmatpush.msra.mxu0 0.0
        %4105 = vmatpush.msra.mxu0 0.0
        %4106 = vmatpush.msra.mxu0 %v3700
        %4107 = vmatpush.msra.mxu0 %v3575
        %4108 = vmatpush.msra.mxu0 %v3559
        %4109 = vmatpush.msra.mxu0 %v3543
        %4110 = vmatpush.msra.mxu0 %v3527
        %4111 = vmatpush.msra.mxu0 %v3511
        %4112 = vmatpush.msra.mxu0 %v3495
        %4113 = vmatmul.f32.gmra.mxu0 %v3649
        %v4114 = vpop.f32.mrf.mxu0
        %v4115 = vadd.f32 %v3616, %v4114
        %4116 = vmatmul.f32.gmra.mxu0 %v3652
        %v4117 = vpop.f32.mrf.mxu0
        %v4118 = vadd.f32 %v3621, %v4117
        %4119 = vmatmul.f32.gmra.mxu0 %v3655
        %v4120 = vpop.f32.mrf.mxu0
        %v4121 = vadd.f32 %v3626, %v4120
        %4122 = vmatmul.f32.gmra.mxu0 %v3658
        %v4123 = vpop.f32.mrf.mxu0
        %v4124 = vadd.f32 %v3631, %v4123
        %4125 = vmatmul.f32.gmra.mxu0 %v3661
        %v4126 = vpop.f32.mrf.mxu0
        %v4127 = vadd.f32 %v3636, %v4126
        %4128 = vmatmul.f32.gmra.mxu0 %v3664
        %v4129 = vpop.f32.mrf.mxu0
        %v4130 = vadd.f32 %v3641, %v4129
        %4131 = vmatmul.f32.gmra.mxu0 %v3667
        %v4132 = vpop.f32.mrf.mxu0
        %v4133 = vadd.f32 %v3646, %v4132
        %4134 = vdwg.mxu0
        %4135 = vmatpush.msra.mxu0 0.0
        %4136 = vmatpush.msra.mxu0 0.0
        %4137 = vmatpush.msra.mxu0 0.0
        %4138 = vmatpush.msra.mxu0 0.0
        %4139 = vmatpush.msra.mxu0 0.0
        %4140 = vmatpush.msra.mxu0 0.0
        %4141 = vmatpush.msra.mxu0 0.0
        %4142 = vmatpush.msra.mxu0 0.0
        %4143 = vmatpush.msra.mxu0 0.0
        %4144 = vmatpush.msra.mxu0 %v3703
        %4145 = vmatpush.msra.mxu0 %v3576
        %4146 = vmatpush.msra.mxu0 %v3560
        %4147 = vmatpush.msra.mxu0 %v3544
        %4148 = vmatpush.msra.mxu0 %v3528
        %4149 = vmatpush.msra.mxu0 %v3512
        %4150 = vmatpush.msra.mxu0 %v3496
        %4151 = vmatmul.f32.gmra.mxu0 %v3649
        %v4152 = vpop.f32.mrf.mxu0
        %v4153 = vadd.f32 %v3616, %v4152
        %4154 = vmatmul.f32.gmra.mxu0 %v3652
        %v4155 = vpop.f32.mrf.mxu0
        %v4156 = vadd.f32 %v3621, %v4155
        %4157 = vmatmul.f32.gmra.mxu0 %v3655
        %v4158 = vpop.f32.mrf.mxu0
        %v4159 = vadd.f32 %v3626, %v4158
        %4160 = vmatmul.f32.gmra.mxu0 %v3658
        %v4161 = vpop.f32.mrf.mxu0
        %v4162 = vadd.f32 %v3631, %v4161
        %4163 = vmatmul.f32.gmra.mxu0 %v3661
        %v4164 = vpop.f32.mrf.mxu0
        %v4165 = vadd.f32 %v3636, %v4164
        %4166 = vmatmul.f32.gmra.mxu0 %v3664
        %v4167 = vpop.f32.mrf.mxu0
        %v4168 = vadd.f32 %v3641, %v4167
        %4169 = vmatmul.f32.gmra.mxu0 %v3667
        %v4170 = vpop.f32.mrf.mxu0
        %v4171 = vadd.f32 %v3646, %v4170
        %4172 = vdwg.mxu0
        %4173 = vmatpush.msra.mxu0 0.0
        %4174 = vmatpush.msra.mxu0 0.0
        %4175 = vmatpush.msra.mxu0 0.0
        %4176 = vmatpush.msra.mxu0 0.0
        %4177 = vmatpush.msra.mxu0 0.0
        %4178 = vmatpush.msra.mxu0 0.0
        %4179 = vmatpush.msra.mxu0 0.0
        %4180 = vmatpush.msra.mxu0 0.0
        %4181 = vmatpush.msra.mxu0 0.0
        %4182 = vmatpush.msra.mxu0 %v3706
        %4183 = vmatpush.msra.mxu0 %v3577
        %4184 = vmatpush.msra.mxu0 %v3561
        %4185 = vmatpush.msra.mxu0 %v3545
        %4186 = vmatpush.msra.mxu0 %v3529
        %4187 = vmatpush.msra.mxu0 %v3513
        %4188 = vmatpush.msra.mxu0 %v3497
        %4189 = vmatmul.f32.gmra.mxu0 %v3649
        %v4190 = vpop.f32.mrf.mxu0
        %v4191 = vadd.f32 %v3616, %v4190
        %4192 = vmatmul.f32.gmra.mxu0 %v3652
        %v4193 = vpop.f32.mrf.mxu0
        %v4194 = vadd.f32 %v3621, %v4193
        %4195 = vmatmul.f32.gmra.mxu0 %v3655
        %v4196 = vpop.f32.mrf.mxu0
        %v4197 = vadd.f32 %v3626, %v4196
        %4198 = vmatmul.f32.gmra.mxu0 %v3658
        %v4199 = vpop.f32.mrf.mxu0
        %v4200 = vadd.f32 %v3631, %v4199
        %4201 = vmatmul.f32.gmra.mxu0 %v3661
        %v4202 = vpop.f32.mrf.mxu0
        %v4203 = vadd.f32 %v3636, %v4202
        %4204 = vmatmul.f32.gmra.mxu0 %v3664
        %v4205 = vpop.f32.mrf.mxu0
        %v4206 = vadd.f32 %v3641, %v4205
        %4207 = vmatmul.f32.gmra.mxu0 %v3667
        %v4208 = vpop.f32.mrf.mxu0
        %v4209 = vadd.f32 %v3646, %v4208
        %4210 = vdwg.mxu0
        %4211 = vmatpush.msra.mxu0 0.0
        %4212 = vmatpush.msra.mxu0 0.0
        %4213 = vmatpush.msra.mxu0 0.0
        %4214 = vmatpush.msra.mxu0 0.0
        %4215 = vmatpush.msra.mxu0 0.0
        %4216 = vmatpush.msra.mxu0 0.0
        %4217 = vmatpush.msra.mxu0 0.0
        %4218 = vmatpush.msra.mxu0 0.0
        %4219 = vmatpush.msra.mxu0 0.0
        %4220 = vmatpush.msra.mxu0 %v3709
        %4221 = vmatpush.msra.mxu0 %v3578
        %4222 = vmatpush.msra.mxu0 %v3562
        %4223 = vmatpush.msra.mxu0 %v3546
        %4224 = vmatpush.msra.mxu0 %v3530
        %4225 = vmatpush.msra.mxu0 %v3514
        %4226 = vmatpush.msra.mxu0 %v3498
        %4227 = vmatmul.f32.gmra.mxu0 %v3649
        %v4228 = vpop.f32.mrf.mxu0
        %v4229 = vadd.f32 %v3616, %v4228
        %4230 = vmatmul.f32.gmra.mxu0 %v3652
        %v4231 = vpop.f32.mrf.mxu0
        %v4232 = vadd.f32 %v3621, %v4231
        %4233 = vmatmul.f32.gmra.mxu0 %v3655
        %v4234 = vpop.f32.mrf.mxu0
        %v4235 = vadd.f32 %v3626, %v4234
        %4236 = vmatmul.f32.gmra.mxu0 %v3658
        %v4237 = vpop.f32.mrf.mxu0
        %v4238 = vadd.f32 %v3631, %v4237
        %4239 = vmatmul.f32.gmra.mxu0 %v3661
        %v4240 = vpop.f32.mrf.mxu0
        %v4241 = vadd.f32 %v3636, %v4240
        %4242 = vmatmul.f32.gmra.mxu0 %v3664
        %v4243 = vpop.f32.mrf.mxu0
        %v4244 = vadd.f32 %v3641, %v4243
        %4245 = vmatmul.f32.gmra.mxu0 %v3667
        %v4246 = vpop.f32.mrf.mxu0
        %v4247 = vadd.f32 %v3646, %v4246
        %4248 = vdwg.mxu0
        %4249 = vmatpush.msra.mxu0 0.0
        %4250 = vmatpush.msra.mxu0 0.0
        %4251 = vmatpush.msra.mxu0 0.0
        %4252 = vmatpush.msra.mxu0 0.0
        %4253 = vmatpush.msra.mxu0 0.0
        %4254 = vmatpush.msra.mxu0 0.0
        %4255 = vmatpush.msra.mxu0 0.0
        %4256 = vmatpush.msra.mxu0 0.0
        %4257 = vmatpush.msra.mxu0 0.0
        %4258 = vmatpush.msra.mxu0 %v3712
        %4259 = vmatpush.msra.mxu0 %v3579
        %4260 = vmatpush.msra.mxu0 %v3563
        %4261 = vmatpush.msra.mxu0 %v3547
        %4262 = vmatpush.msra.mxu0 %v3531
        %4263 = vmatpush.msra.mxu0 %v3515
        %4264 = vmatpush.msra.mxu0 %v3499
        %4265 = vmatmul.f32.gmra.mxu0 %v3649
        %v4266 = vpop.f32.mrf.mxu0
        %v4267 = vadd.f32 %v3616, %v4266
        %4268 = vmatmul.f32.gmra.mxu0 %v3652
        %v4269 = vpop.f32.mrf.mxu0
        %v4270 = vadd.f32 %v3621, %v4269
        %4271 = vmatmul.f32.gmra.mxu0 %v3655
        %v4272 = vpop.f32.mrf.mxu0
        %v4273 = vadd.f32 %v3626, %v4272
        %4274 = vmatmul.f32.gmra.mxu0 %v3658
        %v4275 = vpop.f32.mrf.mxu0
        %v4276 = vadd.f32 %v3631, %v4275
        %4277 = vmatmul.f32.gmra.mxu0 %v3661
        %v4278 = vpop.f32.mrf.mxu0
        %v4279 = vadd.f32 %v3636, %v4278
        %4280 = vmatmul.f32.gmra.mxu0 %v3664
        %v4281 = vpop.f32.mrf.mxu0
        %v4282 = vadd.f32 %v3641, %v4281
        %4283 = vmatmul.f32.gmra.mxu0 %v3667
        %v4284 = vpop.f32.mrf.mxu0
        %v4285 = vadd.f32 %v3646, %v4284
        %4286 = vdwg.mxu0
        %4287 = vmatpush.msra.mxu0 0.0
        %4288 = vmatpush.msra.mxu0 0.0
        %4289 = vmatpush.msra.mxu0 0.0
        %4290 = vmatpush.msra.mxu0 0.0
        %4291 = vmatpush.msra.mxu0 0.0
        %4292 = vmatpush.msra.mxu0 0.0
        %4293 = vmatpush.msra.mxu0 0.0
        %4294 = vmatpush.msra.mxu0 0.0
        %4295 = vmatpush.msra.mxu0 0.0
        %4296 = vmatpush.msra.mxu0 %v3715
        %4297 = vmatpush.msra.mxu0 %v3580
        %4298 = vmatpush.msra.mxu0 %v3564
        %4299 = vmatpush.msra.mxu0 %v3548
        %4300 = vmatpush.msra.mxu0 %v3532
        %4301 = vmatpush.msra.mxu0 %v3516
        %4302 = vmatpush.msra.mxu0 %v3500
        %4303 = vmatmul.f32.gmra.mxu0 %v3649
        %v4304 = vpop.f32.mrf.mxu0
        %v4305 = vadd.f32 %v3616, %v4304
        %4306 = vmatmul.f32.gmra.mxu0 %v3652
        %v4307 = vpop.f32.mrf.mxu0
        %v4308 = vadd.f32 %v3621, %v4307
        %4309 = vmatmul.f32.gmra.mxu0 %v3655
        %v4310 = vpop.f32.mrf.mxu0
        %v4311 = vadd.f32 %v3626, %v4310
        %4312 = vmatmul.f32.gmra.mxu0 %v3658
        %v4313 = vpop.f32.mrf.mxu0
        %v4314 = vadd.f32 %v3631, %v4313
        %4315 = vmatmul.f32.gmra.mxu0 %v3661
        %v4316 = vpop.f32.mrf.mxu0
        %v4317 = vadd.f32 %v3636, %v4316
        %4318 = vmatmul.f32.gmra.mxu0 %v3664
        %v4319 = vpop.f32.mrf.mxu0
        %v4320 = vadd.f32 %v3641, %v4319
        %4321 = vmatmul.f32.gmra.mxu0 %v3667
        %v4322 = vpop.f32.mrf.mxu0
        %v4323 = vadd.f32 %v3646, %v4322
        %4324 = vdwg.mxu0
        %v4325 = vtanh.pop %v3735
        %v4326 = vtanh.pop %v3773
        %v4327 = vtanh.pop %v3811
        %v4328 = vtanh.pop %v3849
        %v4329 = vtanh.pop %v3887
        %v4330 = vtanh.pop %v3925
        %v4331 = vtanh.pop %v3963
        %v4332 = vtanh.pop %v4001
        %v4333 = vtanh.pop %v4039
        %v4334 = vtanh.pop %v4077
        %v4335 = vtanh.pop %v4115
        %v4336 = vtanh.pop %v4153
        %v4337 = vtanh.pop %v4191
        %v4338 = vtanh.pop %v4229
        %v4339 = vtanh.pop %v4267
        %v4340 = vtanh.pop %v4305
        %v4341 = vtanh.pop %v3738
        %v4342 = vtanh.pop %v3776
        %v4343 = vtanh.pop %v3814
        %v4344 = vtanh.pop %v3852
        %v4345 = vtanh.pop %v3890
        %v4346 = vtanh.pop %v3928
        %v4347 = vtanh.pop %v3966
        %v4348 = vtanh.pop %v4004
        %v4349 = vtanh.pop %v4042
        %v4350 = vtanh.pop %v4080
        %v4351 = vtanh.pop %v4118
        %v4352 = vtanh.pop %v4156
        %v4353 = vtanh.pop %v4194
        %v4354 = vtanh.pop %v4232
        %v4355 = vtanh.pop %v4270
        %v4356 = vtanh.pop %v4308
        %v4357 = vtanh.pop %v3741
        %v4358 = vtanh.pop %v3779
        %v4359 = vtanh.pop %v3817
        %v4360 = vtanh.pop %v3855
        %v4361 = vtanh.pop %v3893
        %v4362 = vtanh.pop %v3931
        %v4363 = vtanh.pop %v3969
        %v4364 = vtanh.pop %v4007
        %v4365 = vtanh.pop %v4045
        %v4366 = vtanh.pop %v4083
        %v4367 = vtanh.pop %v4121
        %v4368 = vtanh.pop %v4159
        %v4369 = vtanh.pop %v4197
        %v4370 = vtanh.pop %v4235
        %v4371 = vtanh.pop %v4273
        %v4372 = vtanh.pop %v4311
        %v4373 = vtanh.pop %v3744
        %v4374 = vtanh.pop %v3782
        %v4375 = vtanh.pop %v3820
        %v4376 = vtanh.pop %v3858
        %v4377 = vtanh.pop %v3896
        %v4378 = vtanh.pop %v3934
        %v4379 = vtanh.pop %v3972
        %v4380 = vtanh.pop %v4010
        %v4381 = vtanh.pop %v4048
        %v4382 = vtanh.pop %v4086
        %v4383 = vtanh.pop %v4124
        %v4384 = vtanh.pop %v4162
        %v4385 = vtanh.pop %v4200
        %v4386 = vtanh.pop %v4238
        %v4387 = vtanh.pop %v4276
        %v4388 = vtanh.pop %v4314
        %v4389 = vtanh.pop %v3747
        %v4390 = vtanh.pop %v3785
        %v4391 = vtanh.pop %v3823
        %v4392 = vtanh.pop %v3861
        %v4393 = vtanh.pop %v3899
        %v4394 = vtanh.pop %v3937
        %v4395 = vtanh.pop %v3975
        %v4396 = vtanh.pop %v4013
        %v4397 = vtanh.pop %v4051
        %v4398 = vtanh.pop %v4089
        %v4399 = vtanh.pop %v4127
        %v4400 = vtanh.pop %v4165
        %v4401 = vtanh.pop %v4203
        %v4402 = vtanh.pop %v4241
        %v4403 = vtanh.pop %v4279
        %v4404 = vtanh.pop %v4317
        %v4405 = vtanh.pop %v3750
        %v4406 = vtanh.pop %v3788
        %v4407 = vtanh.pop %v3826
        %v4408 = vtanh.pop %v3864
        %v4409 = vtanh.pop %v3902
        %v4410 = vtanh.pop %v3940
        %v4411 = vtanh.pop %v3978
        %v4412 = vtanh.pop %v4016
        %v4413 = vtanh.pop %v4054
        %v4414 = vtanh.pop %v4092
        %v4415 = vtanh.pop %v4130
        %v4416 = vtanh.pop %v4168
        %v4417 = vtanh.pop %v4206
        %v4418 = vtanh.pop %v4244
        %v4419 = vtanh.pop %v4282
        %v4420 = vtanh.pop %v4320
        %v4421 = vtanh.pop %v3753
        %v4422 = vtanh.pop %v3791
        %v4423 = vtanh.pop %v3829
        %v4424 = vtanh.pop %v3867
        %v4425 = vtanh.pop %v3905
        %v4426 = vtanh.pop %v3943
        %v4427 = vtanh.pop %v3981
        %v4428 = vtanh.pop %v4019
        %v4429 = vtanh.pop %v4057
        %v4430 = vtanh.pop %v4095
        %v4431 = vtanh.pop %v4133
        %v4432 = vtanh.pop %v4171
        %v4433 = vtanh.pop %v4209
        %v4434 = vtanh.pop %v4247
        %v4435 = vtanh.pop %v4285
        %v4436 = vtanh.pop %v4323
        %s4437 = scalar_lea.vmem %s3, 224
        %v4438 = vld [vmem:[%s4437] sm:$0xff]
        %v4439 = vld [vmem:[%s4437 + $0x8] sm:$0xff]
        %v4440 = vld [vmem:[%s4437 + $0x10] sm:$0xff]
        %v4441 = vld [vmem:[%s4437 + $0x18] sm:$0xff]
        %v4442 = vld [vmem:[%s4437 + $0x20] sm:$0xff]
        %v4443 = vld [vmem:[%s4437 + $0x28] sm:$0xff]
        %v4444 = vld [vmem:[%s4437 + $0x30] sm:$0x3]
        %s4445 = scalar_lea.vmem %s4, 224
        %v4446 = vld [vmem:[%s4445] sm:$0xff]
        %v4447 = vld [vmem:[%s4445 + $0x8] sm:$0xff]
        %v4448 = vld [vmem:[%s4445 + $0x10] sm:$0xff]
        %v4449 = vld [vmem:[%s4445 + $0x18] sm:$0xff]
        %v4450 = vld [vmem:[%s4445 + $0x20] sm:$0xff]
        %v4451 = vld [vmem:[%s4445 + $0x28] sm:$0xff]
        %v4452 = vld [vmem:[%s4445 + $0x30] sm:$0x3]
        %4454 = vset.pattern.permute.xlu0 0
        %4455 = vperm.xlu0 %4454, %v4446
        %v4456 = vpop.permute.xlu0 %4455
        %4459 = vset.pattern.permute.xlu0 0
        %4460 = vperm.xlu0 %4459, %v4447
        %v4461 = vpop.permute.xlu0 %4460
        %4464 = vset.pattern.permute.xlu0 0
        %4465 = vperm.xlu0 %4464, %v4448
        %v4466 = vpop.permute.xlu0 %4465
        %4469 = vset.pattern.permute.xlu0 0
        %4470 = vperm.xlu0 %4469, %v4449
        %v4471 = vpop.permute.xlu0 %4470
        %4474 = vset.pattern.permute.xlu0 0
        %4475 = vperm.xlu0 %4474, %v4450
        %v4476 = vpop.permute.xlu0 %4475
        %4479 = vset.pattern.permute.xlu0 0
        %4480 = vperm.xlu0 %4479, %v4451
        %v4481 = vpop.permute.xlu0 %4480
        %4484 = vset.pattern.permute.xlu0 0
        %4485 = vperm.xlu0 %4484, %v4452
        %v4486 = vpop.permute.xlu0 %4485
        %v4489 = vsel %vm1126, %v4438, 0
        %v4492 = vsel %vm1126, %v4439, 0
        %v4495 = vsel %vm1126, %v4440, 0
        %v4498 = vsel %vm1126, %v4441, 0
        %v4501 = vsel %vm1126, %v4442, 0
        %v4504 = vsel %vm1126, %v4443, 0
        %v4507 = vsel %vm1126, %v4444, 0
        %v4510 = vsel %vm1148, %v4421, 0
        %v4513 = vsel %vm1148, %v4422, 0
        %v4516 = vsel %vm1148, %v4423, 0
        %v4519 = vsel %vm1148, %v4424, 0
        %v4522 = vsel %vm1148, %v4425, 0
        %v4525 = vsel %vm1148, %v4426, 0
        %v4528 = vsel %vm1148, %v4427, 0
        %v4531 = vsel %vm1148, %v4428, 0
        %v4534 = vsel %vm1148, %v4429, 0
        %v4537 = vsel %vm1148, %v4430, 0
        %v4540 = vsel %vm1148, %v4431, 0
        %v4543 = vsel %vm1148, %v4432, 0
        %v4546 = vsel %vm1148, %v4433, 0
        %v4549 = vsel %vm1148, %v4434, 0
        %v4552 = vsel %vm1148, %v4435, 0
        %v4555 = vsel %vm1148, %v4436, 0
        %4557 = vmatpush.msra.mxu0 0.0
        %4558 = vmatpush.msra.mxu0 0.0
        %4559 = vmatpush.msra.mxu0 0.0
        %4560 = vmatpush.msra.mxu0 0.0
        %4561 = vmatpush.msra.mxu0 0.0
        %4562 = vmatpush.msra.mxu0 0.0
        %4563 = vmatpush.msra.mxu0 0.0
        %4564 = vmatpush.msra.mxu0 0.0
        %4565 = vmatpush.msra.mxu0 0.0
        %4566 = vmatpush.msra.mxu0 %v4510
        %4567 = vmatpush.msra.mxu0 %v4405
        %4568 = vmatpush.msra.mxu0 %v4389
        %4569 = vmatpush.msra.mxu0 %v4373
        %4570 = vmatpush.msra.mxu0 %v4357
        %4571 = vmatpush.msra.mxu0 %v4341
        %4572 = vmatpush.msra.mxu0 %v4325
        %4573 = vmatmul.f32.gmra.mxu0 %v4489
        %v4574 = vpop.f32.mrf.mxu0
        %v4575 = vadd.f32 %v4456, %v4574
        %4576 = vmatmul.f32.gmra.mxu0 %v4492
        %v4577 = vpop.f32.mrf.mxu0
        %v4578 = vadd.f32 %v4461, %v4577
        %4579 = vmatmul.f32.gmra.mxu0 %v4495
        %v4580 = vpop.f32.mrf.mxu0
        %v4581 = vadd.f32 %v4466, %v4580
        %4582 = vmatmul.f32.gmra.mxu0 %v4498
        %v4583 = vpop.f32.mrf.mxu0
        %v4584 = vadd.f32 %v4471, %v4583
        %4585 = vmatmul.f32.gmra.mxu0 %v4501
        %v4586 = vpop.f32.mrf.mxu0
        %v4587 = vadd.f32 %v4476, %v4586
        %4588 = vmatmul.f32.gmra.mxu0 %v4504
        %v4589 = vpop.f32.mrf.mxu0
        %v4590 = vadd.f32 %v4481, %v4589
        %4591 = vmatmul.f32.gmra.mxu0 %v4507
        %v4592 = vpop.f32.mrf.mxu0
        %v4593 = vadd.f32 %v4486, %v4592
        %4594 = vdwg.mxu0
        %4595 = vmatpush.msra.mxu0 0.0
        %4596 = vmatpush.msra.mxu0 0.0
        %4597 = vmatpush.msra.mxu0 0.0
        %4598 = vmatpush.msra.mxu0 0.0
        %4599 = vmatpush.msra.mxu0 0.0
        %4600 = vmatpush.msra.mxu0 0.0
        %4601 = vmatpush.msra.mxu0 0.0
        %4602 = vmatpush.msra.mxu0 0.0
        %4603 = vmatpush.msra.mxu0 0.0
        %4604 = vmatpush.msra.mxu0 %v4513
        %4605 = vmatpush.msra.mxu0 %v4406
        %4606 = vmatpush.msra.mxu0 %v4390
        %4607 = vmatpush.msra.mxu0 %v4374
        %4608 = vmatpush.msra.mxu0 %v4358
        %4609 = vmatpush.msra.mxu0 %v4342
        %4610 = vmatpush.msra.mxu0 %v4326
        %4611 = vmatmul.f32.gmra.mxu0 %v4489
        %v4612 = vpop.f32.mrf.mxu0
        %v4613 = vadd.f32 %v4456, %v4612
        %4614 = vmatmul.f32.gmra.mxu0 %v4492
        %v4615 = vpop.f32.mrf.mxu0
        %v4616 = vadd.f32 %v4461, %v4615
        %4617 = vmatmul.f32.gmra.mxu0 %v4495
        %v4618 = vpop.f32.mrf.mxu0
        %v4619 = vadd.f32 %v4466, %v4618
        %4620 = vmatmul.f32.gmra.mxu0 %v4498
        %v4621 = vpop.f32.mrf.mxu0
        %v4622 = vadd.f32 %v4471, %v4621
        %4623 = vmatmul.f32.gmra.mxu0 %v4501
        %v4624 = vpop.f32.mrf.mxu0
        %v4625 = vadd.f32 %v4476, %v4624
        %4626 = vmatmul.f32.gmra.mxu0 %v4504
        %v4627 = vpop.f32.mrf.mxu0
        %v4628 = vadd.f32 %v4481, %v4627
        %4629 = vmatmul.f32.gmra.mxu0 %v4507
        %v4630 = vpop.f32.mrf.mxu0
        %v4631 = vadd.f32 %v4486, %v4630
        %4632 = vdwg.mxu0
        %4633 = vmatpush.msra.mxu0 0.0
        %4634 = vmatpush.msra.mxu0 0.0
        %4635 = vmatpush.msra.mxu0 0.0
        %4636 = vmatpush.msra.mxu0 0.0
        %4637 = vmatpush.msra.mxu0 0.0
        %4638 = vmatpush.msra.mxu0 0.0
        %4639 = vmatpush.msra.mxu0 0.0
        %4640 = vmatpush.msra.mxu0 0.0
        %4641 = vmatpush.msra.mxu0 0.0
        %4642 = vmatpush.msra.mxu0 %v4516
        %4643 = vmatpush.msra.mxu0 %v4407
        %4644 = vmatpush.msra.mxu0 %v4391
        %4645 = vmatpush.msra.mxu0 %v4375
        %4646 = vmatpush.msra.mxu0 %v4359
        %4647 = vmatpush.msra.mxu0 %v4343
        %4648 = vmatpush.msra.mxu0 %v4327
        %4649 = vmatmul.f32.gmra.mxu0 %v4489
        %v4650 = vpop.f32.mrf.mxu0
        %v4651 = vadd.f32 %v4456, %v4650
        %4652 = vmatmul.f32.gmra.mxu0 %v4492
        %v4653 = vpop.f32.mrf.mxu0
        %v4654 = vadd.f32 %v4461, %v4653
        %4655 = vmatmul.f32.gmra.mxu0 %v4495
        %v4656 = vpop.f32.mrf.mxu0
        %v4657 = vadd.f32 %v4466, %v4656
        %4658 = vmatmul.f32.gmra.mxu0 %v4498
        %v4659 = vpop.f32.mrf.mxu0
        %v4660 = vadd.f32 %v4471, %v4659
        %4661 = vmatmul.f32.gmra.mxu0 %v4501
        %v4662 = vpop.f32.mrf.mxu0
        %v4663 = vadd.f32 %v4476, %v4662
        %4664 = vmatmul.f32.gmra.mxu0 %v4504
        %v4665 = vpop.f32.mrf.mxu0
        %v4666 = vadd.f32 %v4481, %v4665
        %4667 = vmatmul.f32.gmra.mxu0 %v4507
        %v4668 = vpop.f32.mrf.mxu0
        %v4669 = vadd.f32 %v4486, %v4668
        %4670 = vdwg.mxu0
        %4671 = vmatpush.msra.mxu0 0.0
        %4672 = vmatpush.msra.mxu0 0.0
        %4673 = vmatpush.msra.mxu0 0.0
        %4674 = vmatpush.msra.mxu0 0.0
        %4675 = vmatpush.msra.mxu0 0.0
        %4676 = vmatpush.msra.mxu0 0.0
        %4677 = vmatpush.msra.mxu0 0.0
        %4678 = vmatpush.msra.mxu0 0.0
        %4679 = vmatpush.msra.mxu0 0.0
        %4680 = vmatpush.msra.mxu0 %v4519
        %4681 = vmatpush.msra.mxu0 %v4408
        %4682 = vmatpush.msra.mxu0 %v4392
        %4683 = vmatpush.msra.mxu0 %v4376
        %4684 = vmatpush.msra.mxu0 %v4360
        %4685 = vmatpush.msra.mxu0 %v4344
        %4686 = vmatpush.msra.mxu0 %v4328
        %4687 = vmatmul.f32.gmra.mxu0 %v4489
        %v4688 = vpop.f32.mrf.mxu0
        %v4689 = vadd.f32 %v4456, %v4688
        %4690 = vmatmul.f32.gmra.mxu0 %v4492
        %v4691 = vpop.f32.mrf.mxu0
        %v4692 = vadd.f32 %v4461, %v4691
        %4693 = vmatmul.f32.gmra.mxu0 %v4495
        %v4694 = vpop.f32.mrf.mxu0
        %v4695 = vadd.f32 %v4466, %v4694
        %4696 = vmatmul.f32.gmra.mxu0 %v4498
        %v4697 = vpop.f32.mrf.mxu0
        %v4698 = vadd.f32 %v4471, %v4697
        %4699 = vmatmul.f32.gmra.mxu0 %v4501
        %v4700 = vpop.f32.mrf.mxu0
        %v4701 = vadd.f32 %v4476, %v4700
        %4702 = vmatmul.f32.gmra.mxu0 %v4504
        %v4703 = vpop.f32.mrf.mxu0
        %v4704 = vadd.f32 %v4481, %v4703
        %4705 = vmatmul.f32.gmra.mxu0 %v4507
        %v4706 = vpop.f32.mrf.mxu0
        %v4707 = vadd.f32 %v4486, %v4706
        %4708 = vdwg.mxu0
        %4709 = vmatpush.msra.mxu0 0.0
        %4710 = vmatpush.msra.mxu0 0.0
        %4711 = vmatpush.msra.mxu0 0.0
        %4712 = vmatpush.msra.mxu0 0.0
        %4713 = vmatpush.msra.mxu0 0.0
        %4714 = vmatpush.msra.mxu0 0.0
        %4715 = vmatpush.msra.mxu0 0.0
        %4716 = vmatpush.msra.mxu0 0.0
        %4717 = vmatpush.msra.mxu0 0.0
        %4718 = vmatpush.msra.mxu0 %v4522
        %4719 = vmatpush.msra.mxu0 %v4409
        %4720 = vmatpush.msra.mxu0 %v4393
        %4721 = vmatpush.msra.mxu0 %v4377
        %4722 = vmatpush.msra.mxu0 %v4361
        %4723 = vmatpush.msra.mxu0 %v4345
        %4724 = vmatpush.msra.mxu0 %v4329
        %4725 = vmatmul.f32.gmra.mxu0 %v4489
        %v4726 = vpop.f32.mrf.mxu0
        %v4727 = vadd.f32 %v4456, %v4726
        %4728 = vmatmul.f32.gmra.mxu0 %v4492
        %v4729 = vpop.f32.mrf.mxu0
        %v4730 = vadd.f32 %v4461, %v4729
        %4731 = vmatmul.f32.gmra.mxu0 %v4495
        %v4732 = vpop.f32.mrf.mxu0
        %v4733 = vadd.f32 %v4466, %v4732
        %4734 = vmatmul.f32.gmra.mxu0 %v4498
        %v4735 = vpop.f32.mrf.mxu0
        %v4736 = vadd.f32 %v4471, %v4735
        %4737 = vmatmul.f32.gmra.mxu0 %v4501
        %v4738 = vpop.f32.mrf.mxu0
        %v4739 = vadd.f32 %v4476, %v4738
        %4740 = vmatmul.f32.gmra.mxu0 %v4504
        %v4741 = vpop.f32.mrf.mxu0
        %v4742 = vadd.f32 %v4481, %v4741
        %4743 = vmatmul.f32.gmra.mxu0 %v4507
        %v4744 = vpop.f32.mrf.mxu0
        %v4745 = vadd.f32 %v4486, %v4744
        %4746 = vdwg.mxu0
        %4747 = vmatpush.msra.mxu0 0.0
        %4748 = vmatpush.msra.mxu0 0.0
        %4749 = vmatpush.msra.mxu0 0.0
        %4750 = vmatpush.msra.mxu0 0.0
        %4751 = vmatpush.msra.mxu0 0.0
        %4752 = vmatpush.msra.mxu0 0.0
        %4753 = vmatpush.msra.mxu0 0.0
        %4754 = vmatpush.msra.mxu0 0.0
        %4755 = vmatpush.msra.mxu0 0.0
        %4756 = vmatpush.msra.mxu0 %v4525
        %4757 = vmatpush.msra.mxu0 %v4410
        %4758 = vmatpush.msra.mxu0 %v4394
        %4759 = vmatpush.msra.mxu0 %v4378
        %4760 = vmatpush.msra.mxu0 %v4362
        %4761 = vmatpush.msra.mxu0 %v4346
        %4762 = vmatpush.msra.mxu0 %v4330
        %4763 = vmatmul.f32.gmra.mxu0 %v4489
        %v4764 = vpop.f32.mrf.mxu0
        %v4765 = vadd.f32 %v4456, %v4764
        %4766 = vmatmul.f32.gmra.mxu0 %v4492
        %v4767 = vpop.f32.mrf.mxu0
        %v4768 = vadd.f32 %v4461, %v4767
        %4769 = vmatmul.f32.gmra.mxu0 %v4495
        %v4770 = vpop.f32.mrf.mxu0
        %v4771 = vadd.f32 %v4466, %v4770
        %4772 = vmatmul.f32.gmra.mxu0 %v4498
        %v4773 = vpop.f32.mrf.mxu0
        %v4774 = vadd.f32 %v4471, %v4773
        %4775 = vmatmul.f32.gmra.mxu0 %v4501
        %v4776 = vpop.f32.mrf.mxu0
        %v4777 = vadd.f32 %v4476, %v4776
        %4778 = vmatmul.f32.gmra.mxu0 %v4504
        %v4779 = vpop.f32.mrf.mxu0
        %v4780 = vadd.f32 %v4481, %v4779
        %4781 = vmatmul.f32.gmra.mxu0 %v4507
        %v4782 = vpop.f32.mrf.mxu0
        %v4783 = vadd.f32 %v4486, %v4782
        %4784 = vdwg.mxu0
        %4785 = vmatpush.msra.mxu0 0.0
        %4786 = vmatpush.msra.mxu0 0.0
        %4787 = vmatpush.msra.mxu0 0.0
        %4788 = vmatpush.msra.mxu0 0.0
        %4789 = vmatpush.msra.mxu0 0.0
        %4790 = vmatpush.msra.mxu0 0.0
        %4791 = vmatpush.msra.mxu0 0.0
        %4792 = vmatpush.msra.mxu0 0.0
        %4793 = vmatpush.msra.mxu0 0.0
        %4794 = vmatpush.msra.mxu0 %v4528
        %4795 = vmatpush.msra.mxu0 %v4411
        %4796 = vmatpush.msra.mxu0 %v4395
        %4797 = vmatpush.msra.mxu0 %v4379
        %4798 = vmatpush.msra.mxu0 %v4363
        %4799 = vmatpush.msra.mxu0 %v4347
        %4800 = vmatpush.msra.mxu0 %v4331
        %4801 = vmatmul.f32.gmra.mxu0 %v4489
        %v4802 = vpop.f32.mrf.mxu0
        %v4803 = vadd.f32 %v4456, %v4802
        %4804 = vmatmul.f32.gmra.mxu0 %v4492
        %v4805 = vpop.f32.mrf.mxu0
        %v4806 = vadd.f32 %v4461, %v4805
        %4807 = vmatmul.f32.gmra.mxu0 %v4495
        %v4808 = vpop.f32.mrf.mxu0
        %v4809 = vadd.f32 %v4466, %v4808
        %4810 = vmatmul.f32.gmra.mxu0 %v4498
        %v4811 = vpop.f32.mrf.mxu0
        %v4812 = vadd.f32 %v4471, %v4811
        %4813 = vmatmul.f32.gmra.mxu0 %v4501
        %v4814 = vpop.f32.mrf.mxu0
        %v4815 = vadd.f32 %v4476, %v4814
        %4816 = vmatmul.f32.gmra.mxu0 %v4504
        %v4817 = vpop.f32.mrf.mxu0
        %v4818 = vadd.f32 %v4481, %v4817
        %4819 = vmatmul.f32.gmra.mxu0 %v4507
        %v4820 = vpop.f32.mrf.mxu0
        %v4821 = vadd.f32 %v4486, %v4820
        %4822 = vdwg.mxu0
        %4823 = vmatpush.msra.mxu0 0.0
        %4824 = vmatpush.msra.mxu0 0.0
        %4825 = vmatpush.msra.mxu0 0.0
        %4826 = vmatpush.msra.mxu0 0.0
        %4827 = vmatpush.msra.mxu0 0.0
        %4828 = vmatpush.msra.mxu0 0.0
        %4829 = vmatpush.msra.mxu0 0.0
        %4830 = vmatpush.msra.mxu0 0.0
        %4831 = vmatpush.msra.mxu0 0.0
        %4832 = vmatpush.msra.mxu0 %v4531
        %4833 = vmatpush.msra.mxu0 %v4412
        %4834 = vmatpush.msra.mxu0 %v4396
        %4835 = vmatpush.msra.mxu0 %v4380
        %4836 = vmatpush.msra.mxu0 %v4364
        %4837 = vmatpush.msra.mxu0 %v4348
        %4838 = vmatpush.msra.mxu0 %v4332
        %4839 = vmatmul.f32.gmra.mxu0 %v4489
        %v4840 = vpop.f32.mrf.mxu0
        %v4841 = vadd.f32 %v4456, %v4840
        %4842 = vmatmul.f32.gmra.mxu0 %v4492
        %v4843 = vpop.f32.mrf.mxu0
        %v4844 = vadd.f32 %v4461, %v4843
        %4845 = vmatmul.f32.gmra.mxu0 %v4495
        %v4846 = vpop.f32.mrf.mxu0
        %v4847 = vadd.f32 %v4466, %v4846
        %4848 = vmatmul.f32.gmra.mxu0 %v4498
        %v4849 = vpop.f32.mrf.mxu0
        %v4850 = vadd.f32 %v4471, %v4849
        %4851 = vmatmul.f32.gmra.mxu0 %v4501
        %v4852 = vpop.f32.mrf.mxu0
        %v4853 = vadd.f32 %v4476, %v4852
        %4854 = vmatmul.f32.gmra.mxu0 %v4504
        %v4855 = vpop.f32.mrf.mxu0
        %v4856 = vadd.f32 %v4481, %v4855
        %4857 = vmatmul.f32.gmra.mxu0 %v4507
        %v4858 = vpop.f32.mrf.mxu0
        %v4859 = vadd.f32 %v4486, %v4858
        %4860 = vdwg.mxu0
        %4861 = vmatpush.msra.mxu0 0.0
        %4862 = vmatpush.msra.mxu0 0.0
        %4863 = vmatpush.msra.mxu0 0.0
        %4864 = vmatpush.msra.mxu0 0.0
        %4865 = vmatpush.msra.mxu0 0.0
        %4866 = vmatpush.msra.mxu0 0.0
        %4867 = vmatpush.msra.mxu0 0.0
        %4868 = vmatpush.msra.mxu0 0.0
        %4869 = vmatpush.msra.mxu0 0.0
        %4870 = vmatpush.msra.mxu0 %v4534
        %4871 = vmatpush.msra.mxu0 %v4413
        %4872 = vmatpush.msra.mxu0 %v4397
        %4873 = vmatpush.msra.mxu0 %v4381
        %4874 = vmatpush.msra.mxu0 %v4365
        %4875 = vmatpush.msra.mxu0 %v4349
        %4876 = vmatpush.msra.mxu0 %v4333
        %4877 = vmatmul.f32.gmra.mxu0 %v4489
        %v4878 = vpop.f32.mrf.mxu0
        %v4879 = vadd.f32 %v4456, %v4878
        %4880 = vmatmul.f32.gmra.mxu0 %v4492
        %v4881 = vpop.f32.mrf.mxu0
        %v4882 = vadd.f32 %v4461, %v4881
        %4883 = vmatmul.f32.gmra.mxu0 %v4495
        %v4884 = vpop.f32.mrf.mxu0
        %v4885 = vadd.f32 %v4466, %v4884
        %4886 = vmatmul.f32.gmra.mxu0 %v4498
        %v4887 = vpop.f32.mrf.mxu0
        %v4888 = vadd.f32 %v4471, %v4887
        %4889 = vmatmul.f32.gmra.mxu0 %v4501
        %v4890 = vpop.f32.mrf.mxu0
        %v4891 = vadd.f32 %v4476, %v4890
        %4892 = vmatmul.f32.gmra.mxu0 %v4504
        %v4893 = vpop.f32.mrf.mxu0
        %v4894 = vadd.f32 %v4481, %v4893
        %4895 = vmatmul.f32.gmra.mxu0 %v4507
        %v4896 = vpop.f32.mrf.mxu0
        %v4897 = vadd.f32 %v4486, %v4896
        %4898 = vdwg.mxu0
        %4899 = vmatpush.msra.mxu0 0.0
        %4900 = vmatpush.msra.mxu0 0.0
        %4901 = vmatpush.msra.mxu0 0.0
        %4902 = vmatpush.msra.mxu0 0.0
        %4903 = vmatpush.msra.mxu0 0.0
        %4904 = vmatpush.msra.mxu0 0.0
        %4905 = vmatpush.msra.mxu0 0.0
        %4906 = vmatpush.msra.mxu0 0.0
        %4907 = vmatpush.msra.mxu0 0.0
        %4908 = vmatpush.msra.mxu0 %v4537
        %4909 = vmatpush.msra.mxu0 %v4414
        %4910 = vmatpush.msra.mxu0 %v4398
        %4911 = vmatpush.msra.mxu0 %v4382
        %4912 = vmatpush.msra.mxu0 %v4366
        %4913 = vmatpush.msra.mxu0 %v4350
        %4914 = vmatpush.msra.mxu0 %v4334
        %4915 = vmatmul.f32.gmra.mxu0 %v4489
        %v4916 = vpop.f32.mrf.mxu0
        %v4917 = vadd.f32 %v4456, %v4916
        %4918 = vmatmul.f32.gmra.mxu0 %v4492
        %v4919 = vpop.f32.mrf.mxu0
        %v4920 = vadd.f32 %v4461, %v4919
        %4921 = vmatmul.f32.gmra.mxu0 %v4495
        %v4922 = vpop.f32.mrf.mxu0
        %v4923 = vadd.f32 %v4466, %v4922
        %4924 = vmatmul.f32.gmra.mxu0 %v4498
        %v4925 = vpop.f32.mrf.mxu0
        %v4926 = vadd.f32 %v4471, %v4925
        %4927 = vmatmul.f32.gmra.mxu0 %v4501
        %v4928 = vpop.f32.mrf.mxu0
        %v4929 = vadd.f32 %v4476, %v4928
        %4930 = vmatmul.f32.gmra.mxu0 %v4504
        %v4931 = vpop.f32.mrf.mxu0
        %v4932 = vadd.f32 %v4481, %v4931
        %4933 = vmatmul.f32.gmra.mxu0 %v4507
        %v4934 = vpop.f32.mrf.mxu0
        %v4935 = vadd.f32 %v4486, %v4934
        %4936 = vdwg.mxu0
        %4937 = vmatpush.msra.mxu0 0.0
        %4938 = vmatpush.msra.mxu0 0.0
        %4939 = vmatpush.msra.mxu0 0.0
        %4940 = vmatpush.msra.mxu0 0.0
        %4941 = vmatpush.msra.mxu0 0.0
        %4942 = vmatpush.msra.mxu0 0.0
        %4943 = vmatpush.msra.mxu0 0.0
        %4944 = vmatpush.msra.mxu0 0.0
        %4945 = vmatpush.msra.mxu0 0.0
        %4946 = vmatpush.msra.mxu0 %v4540
        %4947 = vmatpush.msra.mxu0 %v4415
        %4948 = vmatpush.msra.mxu0 %v4399
        %4949 = vmatpush.msra.mxu0 %v4383
        %4950 = vmatpush.msra.mxu0 %v4367
        %4951 = vmatpush.msra.mxu0 %v4351
        %4952 = vmatpush.msra.mxu0 %v4335
        %4953 = vmatmul.f32.gmra.mxu0 %v4489
        %v4954 = vpop.f32.mrf.mxu0
        %v4955 = vadd.f32 %v4456, %v4954
        %4956 = vmatmul.f32.gmra.mxu0 %v4492
        %v4957 = vpop.f32.mrf.mxu0
        %v4958 = vadd.f32 %v4461, %v4957
        %4959 = vmatmul.f32.gmra.mxu0 %v4495
        %v4960 = vpop.f32.mrf.mxu0
        %v4961 = vadd.f32 %v4466, %v4960
        %4962 = vmatmul.f32.gmra.mxu0 %v4498
        %v4963 = vpop.f32.mrf.mxu0
        %v4964 = vadd.f32 %v4471, %v4963
        %4965 = vmatmul.f32.gmra.mxu0 %v4501
        %v4966 = vpop.f32.mrf.mxu0
        %v4967 = vadd.f32 %v4476, %v4966
        %4968 = vmatmul.f32.gmra.mxu0 %v4504
        %v4969 = vpop.f32.mrf.mxu0
        %v4970 = vadd.f32 %v4481, %v4969
        %4971 = vmatmul.f32.gmra.mxu0 %v4507
        %v4972 = vpop.f32.mrf.mxu0
        %v4973 = vadd.f32 %v4486, %v4972
        %4974 = vdwg.mxu0
        %4975 = vmatpush.msra.mxu0 0.0
        %4976 = vmatpush.msra.mxu0 0.0
        %4977 = vmatpush.msra.mxu0 0.0
        %4978 = vmatpush.msra.mxu0 0.0
        %4979 = vmatpush.msra.mxu0 0.0
        %4980 = vmatpush.msra.mxu0 0.0
        %4981 = vmatpush.msra.mxu0 0.0
        %4982 = vmatpush.msra.mxu0 0.0
        %4983 = vmatpush.msra.mxu0 0.0
        %4984 = vmatpush.msra.mxu0 %v4543
        %4985 = vmatpush.msra.mxu0 %v4416
        %4986 = vmatpush.msra.mxu0 %v4400
        %4987 = vmatpush.msra.mxu0 %v4384
        %4988 = vmatpush.msra.mxu0 %v4368
        %4989 = vmatpush.msra.mxu0 %v4352
        %4990 = vmatpush.msra.mxu0 %v4336
        %4991 = vmatmul.f32.gmra.mxu0 %v4489
        %v4992 = vpop.f32.mrf.mxu0
        %v4993 = vadd.f32 %v4456, %v4992
        %4994 = vmatmul.f32.gmra.mxu0 %v4492
        %v4995 = vpop.f32.mrf.mxu0
        %v4996 = vadd.f32 %v4461, %v4995
        %4997 = vmatmul.f32.gmra.mxu0 %v4495
        %v4998 = vpop.f32.mrf.mxu0
        %v4999 = vadd.f32 %v4466, %v4998
        %5000 = vmatmul.f32.gmra.mxu0 %v4498
        %v5001 = vpop.f32.mrf.mxu0
        %v5002 = vadd.f32 %v4471, %v5001
        %5003 = vmatmul.f32.gmra.mxu0 %v4501
        %v5004 = vpop.f32.mrf.mxu0
        %v5005 = vadd.f32 %v4476, %v5004
        %5006 = vmatmul.f32.gmra.mxu0 %v4504
        %v5007 = vpop.f32.mrf.mxu0
        %v5008 = vadd.f32 %v4481, %v5007
        %5009 = vmatmul.f32.gmra.mxu0 %v4507
        %v5010 = vpop.f32.mrf.mxu0
        %v5011 = vadd.f32 %v4486, %v5010
        %5012 = vdwg.mxu0
        %5013 = vmatpush.msra.mxu0 0.0
        %5014 = vmatpush.msra.mxu0 0.0
        %5015 = vmatpush.msra.mxu0 0.0
        %5016 = vmatpush.msra.mxu0 0.0
        %5017 = vmatpush.msra.mxu0 0.0
        %5018 = vmatpush.msra.mxu0 0.0
        %5019 = vmatpush.msra.mxu0 0.0
        %5020 = vmatpush.msra.mxu0 0.0
        %5021 = vmatpush.msra.mxu0 0.0
        %5022 = vmatpush.msra.mxu0 %v4546
        %5023 = vmatpush.msra.mxu0 %v4417
        %5024 = vmatpush.msra.mxu0 %v4401
        %5025 = vmatpush.msra.mxu0 %v4385
        %5026 = vmatpush.msra.mxu0 %v4369
        %5027 = vmatpush.msra.mxu0 %v4353
        %5028 = vmatpush.msra.mxu0 %v4337
        %5029 = vmatmul.f32.gmra.mxu0 %v4489
        %v5030 = vpop.f32.mrf.mxu0
        %v5031 = vadd.f32 %v4456, %v5030
        %5032 = vmatmul.f32.gmra.mxu0 %v4492
        %v5033 = vpop.f32.mrf.mxu0
        %v5034 = vadd.f32 %v4461, %v5033
        %5035 = vmatmul.f32.gmra.mxu0 %v4495
        %v5036 = vpop.f32.mrf.mxu0
        %v5037 = vadd.f32 %v4466, %v5036
        %5038 = vmatmul.f32.gmra.mxu0 %v4498
        %v5039 = vpop.f32.mrf.mxu0
        %v5040 = vadd.f32 %v4471, %v5039
        %5041 = vmatmul.f32.gmra.mxu0 %v4501
        %v5042 = vpop.f32.mrf.mxu0
        %v5043 = vadd.f32 %v4476, %v5042
        %5044 = vmatmul.f32.gmra.mxu0 %v4504
        %v5045 = vpop.f32.mrf.mxu0
        %v5046 = vadd.f32 %v4481, %v5045
        %5047 = vmatmul.f32.gmra.mxu0 %v4507
        %v5048 = vpop.f32.mrf.mxu0
        %v5049 = vadd.f32 %v4486, %v5048
        %5050 = vdwg.mxu0
        %5051 = vmatpush.msra.mxu0 0.0
        %5052 = vmatpush.msra.mxu0 0.0
        %5053 = vmatpush.msra.mxu0 0.0
        %5054 = vmatpush.msra.mxu0 0.0
        %5055 = vmatpush.msra.mxu0 0.0
        %5056 = vmatpush.msra.mxu0 0.0
        %5057 = vmatpush.msra.mxu0 0.0
        %5058 = vmatpush.msra.mxu0 0.0
        %5059 = vmatpush.msra.mxu0 0.0
        %5060 = vmatpush.msra.mxu0 %v4549
        %5061 = vmatpush.msra.mxu0 %v4418
        %5062 = vmatpush.msra.mxu0 %v4402
        %5063 = vmatpush.msra.mxu0 %v4386
        %5064 = vmatpush.msra.mxu0 %v4370
        %5065 = vmatpush.msra.mxu0 %v4354
        %5066 = vmatpush.msra.mxu0 %v4338
        %5067 = vmatmul.f32.gmra.mxu0 %v4489
        %v5068 = vpop.f32.mrf.mxu0
        %v5069 = vadd.f32 %v4456, %v5068
        %5070 = vmatmul.f32.gmra.mxu0 %v4492
        %v5071 = vpop.f32.mrf.mxu0
        %v5072 = vadd.f32 %v4461, %v5071
        %5073 = vmatmul.f32.gmra.mxu0 %v4495
        %v5074 = vpop.f32.mrf.mxu0
        %v5075 = vadd.f32 %v4466, %v5074
        %5076 = vmatmul.f32.gmra.mxu0 %v4498
        %v5077 = vpop.f32.mrf.mxu0
        %v5078 = vadd.f32 %v4471, %v5077
        %5079 = vmatmul.f32.gmra.mxu0 %v4501
        %v5080 = vpop.f32.mrf.mxu0
        %v5081 = vadd.f32 %v4476, %v5080
        %5082 = vmatmul.f32.gmra.mxu0 %v4504
        %v5083 = vpop.f32.mrf.mxu0
        %v5084 = vadd.f32 %v4481, %v5083
        %5085 = vmatmul.f32.gmra.mxu0 %v4507
        %v5086 = vpop.f32.mrf.mxu0
        %v5087 = vadd.f32 %v4486, %v5086
        %5088 = vdwg.mxu0
        %5089 = vmatpush.msra.mxu0 0.0
        %5090 = vmatpush.msra.mxu0 0.0
        %5091 = vmatpush.msra.mxu0 0.0
        %5092 = vmatpush.msra.mxu0 0.0
        %5093 = vmatpush.msra.mxu0 0.0
        %5094 = vmatpush.msra.mxu0 0.0
        %5095 = vmatpush.msra.mxu0 0.0
        %5096 = vmatpush.msra.mxu0 0.0
        %5097 = vmatpush.msra.mxu0 0.0
        %5098 = vmatpush.msra.mxu0 %v4552
        %5099 = vmatpush.msra.mxu0 %v4419
        %5100 = vmatpush.msra.mxu0 %v4403
        %5101 = vmatpush.msra.mxu0 %v4387
        %5102 = vmatpush.msra.mxu0 %v4371
        %5103 = vmatpush.msra.mxu0 %v4355
        %5104 = vmatpush.msra.mxu0 %v4339
        %5105 = vmatmul.f32.gmra.mxu0 %v4489
        %v5106 = vpop.f32.mrf.mxu0
        %v5107 = vadd.f32 %v4456, %v5106
        %5108 = vmatmul.f32.gmra.mxu0 %v4492
        %v5109 = vpop.f32.mrf.mxu0
        %v5110 = vadd.f32 %v4461, %v5109
        %5111 = vmatmul.f32.gmra.mxu0 %v4495
        %v5112 = vpop.f32.mrf.mxu0
        %v5113 = vadd.f32 %v4466, %v5112
        %5114 = vmatmul.f32.gmra.mxu0 %v4498
        %v5115 = vpop.f32.mrf.mxu0
        %v5116 = vadd.f32 %v4471, %v5115
        %5117 = vmatmul.f32.gmra.mxu0 %v4501
        %v5118 = vpop.f32.mrf.mxu0
        %v5119 = vadd.f32 %v4476, %v5118
        %5120 = vmatmul.f32.gmra.mxu0 %v4504
        %v5121 = vpop.f32.mrf.mxu0
        %v5122 = vadd.f32 %v4481, %v5121
        %5123 = vmatmul.f32.gmra.mxu0 %v4507
        %v5124 = vpop.f32.mrf.mxu0
        %v5125 = vadd.f32 %v4486, %v5124
        %5126 = vdwg.mxu0
        %5127 = vmatpush.msra.mxu0 0.0
        %5128 = vmatpush.msra.mxu0 0.0
        %5129 = vmatpush.msra.mxu0 0.0
        %5130 = vmatpush.msra.mxu0 0.0
        %5131 = vmatpush.msra.mxu0 0.0
        %5132 = vmatpush.msra.mxu0 0.0
        %5133 = vmatpush.msra.mxu0 0.0
        %5134 = vmatpush.msra.mxu0 0.0
        %5135 = vmatpush.msra.mxu0 0.0
        %5136 = vmatpush.msra.mxu0 %v4555
        %5137 = vmatpush.msra.mxu0 %v4420
        %5138 = vmatpush.msra.mxu0 %v4404
        %5139 = vmatpush.msra.mxu0 %v4388
        %5140 = vmatpush.msra.mxu0 %v4372
        %5141 = vmatpush.msra.mxu0 %v4356
        %5142 = vmatpush.msra.mxu0 %v4340
        %5143 = vmatmul.f32.gmra.mxu0 %v4489
        %v5144 = vpop.f32.mrf.mxu0
        %v5145 = vadd.f32 %v4456, %v5144
        %5146 = vmatmul.f32.gmra.mxu0 %v4492
        %v5147 = vpop.f32.mrf.mxu0
        %v5148 = vadd.f32 %v4461, %v5147
        %5149 = vmatmul.f32.gmra.mxu0 %v4495
        %v5150 = vpop.f32.mrf.mxu0
        %v5151 = vadd.f32 %v4466, %v5150
        %5152 = vmatmul.f32.gmra.mxu0 %v4498
        %v5153 = vpop.f32.mrf.mxu0
        %v5154 = vadd.f32 %v4471, %v5153
        %5155 = vmatmul.f32.gmra.mxu0 %v4501
        %v5156 = vpop.f32.mrf.mxu0
        %v5157 = vadd.f32 %v4476, %v5156
        %5158 = vmatmul.f32.gmra.mxu0 %v4504
        %v5159 = vpop.f32.mrf.mxu0
        %v5160 = vadd.f32 %v4481, %v5159
        %5161 = vmatmul.f32.gmra.mxu0 %v4507
        %v5162 = vpop.f32.mrf.mxu0
        %v5163 = vadd.f32 %v4486, %v5162
        %5164 = vdwg.mxu0
        %v5165 = vtanh.pop %v4575
        %v5166 = vtanh.pop %v4613
        %v5167 = vtanh.pop %v4651
        %v5168 = vtanh.pop %v4689
        %v5169 = vtanh.pop %v4727
        %v5170 = vtanh.pop %v4765
        %v5171 = vtanh.pop %v4803
        %v5172 = vtanh.pop %v4841
        %v5173 = vtanh.pop %v4879
        %v5174 = vtanh.pop %v4917
        %v5175 = vtanh.pop %v4955
        %v5176 = vtanh.pop %v4993
        %v5177 = vtanh.pop %v5031
        %v5178 = vtanh.pop %v5069
        %v5179 = vtanh.pop %v5107
        %v5180 = vtanh.pop %v5145
        %v5181 = vtanh.pop %v4578
        %v5182 = vtanh.pop %v4616
        %v5183 = vtanh.pop %v4654
        %v5184 = vtanh.pop %v4692
        %v5185 = vtanh.pop %v4730
        %v5186 = vtanh.pop %v4768
        %v5187 = vtanh.pop %v4806
        %v5188 = vtanh.pop %v4844
        %v5189 = vtanh.pop %v4882
        %v5190 = vtanh.pop %v4920
        %v5191 = vtanh.pop %v4958
        %v5192 = vtanh.pop %v4996
        %v5193 = vtanh.pop %v5034
        %v5194 = vtanh.pop %v5072
        %v5195 = vtanh.pop %v5110
        %v5196 = vtanh.pop %v5148
        %v5197 = vtanh.pop %v4581
        %v5198 = vtanh.pop %v4619
        %v5199 = vtanh.pop %v4657
        %v5200 = vtanh.pop %v4695
        %v5201 = vtanh.pop %v4733
        %v5202 = vtanh.pop %v4771
        %v5203 = vtanh.pop %v4809
        %v5204 = vtanh.pop %v4847
        %v5205 = vtanh.pop %v4885
        %v5206 = vtanh.pop %v4923
        %v5207 = vtanh.pop %v4961
        %v5208 = vtanh.pop %v4999
        %v5209 = vtanh.pop %v5037
        %v5210 = vtanh.pop %v5075
        %v5211 = vtanh.pop %v5113
        %v5212 = vtanh.pop %v5151
        %v5213 = vtanh.pop %v4584
        %v5214 = vtanh.pop %v4622
        %v5215 = vtanh.pop %v4660
        %v5216 = vtanh.pop %v4698
        %v5217 = vtanh.pop %v4736
        %v5218 = vtanh.pop %v4774
        %v5219 = vtanh.pop %v4812
        %v5220 = vtanh.pop %v4850
        %v5221 = vtanh.pop %v4888
        %v5222 = vtanh.pop %v4926
        %v5223 = vtanh.pop %v4964
        %v5224 = vtanh.pop %v5002
        %v5225 = vtanh.pop %v5040
        %v5226 = vtanh.pop %v5078
        %v5227 = vtanh.pop %v5116
        %v5228 = vtanh.pop %v5154
        %v5229 = vtanh.pop %v4587
        %v5230 = vtanh.pop %v4625
        %v5231 = vtanh.pop %v4663
        %v5232 = vtanh.pop %v4701
        %v5233 = vtanh.pop %v4739
        %v5234 = vtanh.pop %v4777
        %v5235 = vtanh.pop %v4815
        %v5236 = vtanh.pop %v4853
        %v5237 = vtanh.pop %v4891
        %v5238 = vtanh.pop %v4929
        %v5239 = vtanh.pop %v4967
        %v5240 = vtanh.pop %v5005
        %v5241 = vtanh.pop %v5043
        %v5242 = vtanh.pop %v5081
        %v5243 = vtanh.pop %v5119
        %v5244 = vtanh.pop %v5157
        %v5245 = vtanh.pop %v4590
        %v5246 = vtanh.pop %v4628
        %v5247 = vtanh.pop %v4666
        %v5248 = vtanh.pop %v4704
        %v5249 = vtanh.pop %v4742
        %v5250 = vtanh.pop %v4780
        %v5251 = vtanh.pop %v4818
        %v5252 = vtanh.pop %v4856
        %v5253 = vtanh.pop %v4894
        %v5254 = vtanh.pop %v4932
        %v5255 = vtanh.pop %v4970
        %v5256 = vtanh.pop %v5008
        %v5257 = vtanh.pop %v5046
        %v5258 = vtanh.pop %v5084
        %v5259 = vtanh.pop %v5122
        %v5260 = vtanh.pop %v5160
        %v5261 = vtanh.pop %v4593
        %v5262 = vtanh.pop %v4631
        %v5263 = vtanh.pop %v4669
        %v5264 = vtanh.pop %v4707
        %v5265 = vtanh.pop %v4745
        %v5266 = vtanh.pop %v4783
        %v5267 = vtanh.pop %v4821
        %v5268 = vtanh.pop %v4859
        %v5269 = vtanh.pop %v4897
        %v5270 = vtanh.pop %v4935
        %v5271 = vtanh.pop %v4973
        %v5272 = vtanh.pop %v5011
        %v5273 = vtanh.pop %v5049
        %v5274 = vtanh.pop %v5087
        %v5275 = vtanh.pop %v5125
        %v5276 = vtanh.pop %v5163
        %s5277 = scalar_lea.vmem %s3, 280
        %v5278 = vld [vmem:[%s5277] sm:$0xff]
        %v5279 = vld [vmem:[%s5277 + $0x8] sm:$0xff]
        %v5280 = vld [vmem:[%s5277 + $0x10] sm:$0xff]
        %v5281 = vld [vmem:[%s5277 + $0x18] sm:$0xff]
        %v5282 = vld [vmem:[%s5277 + $0x20] sm:$0xff]
        %v5283 = vld [vmem:[%s5277 + $0x28] sm:$0xff]
        %v5284 = vld [vmem:[%s5277 + $0x30] sm:$0x3]
        %s5285 = scalar_lea.vmem %s4, 280
        %v5286 = vld [vmem:[%s5285] sm:$0xff]
        %v5287 = vld [vmem:[%s5285 + $0x8] sm:$0xff]
        %v5288 = vld [vmem:[%s5285 + $0x10] sm:$0xff]
        %v5289 = vld [vmem:[%s5285 + $0x18] sm:$0xff]
        %v5290 = vld [vmem:[%s5285 + $0x20] sm:$0xff]
        %v5291 = vld [vmem:[%s5285 + $0x28] sm:$0xff]
        %v5292 = vld [vmem:[%s5285 + $0x30] sm:$0x3]
        %5294 = vset.pattern.permute.xlu0 0
        %5295 = vperm.xlu0 %5294, %v5286
        %v5296 = vpop.permute.xlu0 %5295
        %5299 = vset.pattern.permute.xlu0 0
        %5300 = vperm.xlu0 %5299, %v5287
        %v5301 = vpop.permute.xlu0 %5300
        %5304 = vset.pattern.permute.xlu0 0
        %5305 = vperm.xlu0 %5304, %v5288
        %v5306 = vpop.permute.xlu0 %5305
        %5309 = vset.pattern.permute.xlu0 0
        %5310 = vperm.xlu0 %5309, %v5289
        %v5311 = vpop.permute.xlu0 %5310
        %5314 = vset.pattern.permute.xlu0 0
        %5315 = vperm.xlu0 %5314, %v5290
        %v5316 = vpop.permute.xlu0 %5315
        %5319 = vset.pattern.permute.xlu0 0
        %5320 = vperm.xlu0 %5319, %v5291
        %v5321 = vpop.permute.xlu0 %5320
        %5324 = vset.pattern.permute.xlu0 0
        %5325 = vperm.xlu0 %5324, %v5292
        %v5326 = vpop.permute.xlu0 %5325
        %v5329 = vsel %vm1126, %v5278, 0
        %v5332 = vsel %vm1126, %v5279, 0
        %v5335 = vsel %vm1126, %v5280, 0
        %v5338 = vsel %vm1126, %v5281, 0
        %v5341 = vsel %vm1126, %v5282, 0
        %v5344 = vsel %vm1126, %v5283, 0
        %v5347 = vsel %vm1126, %v5284, 0
        %v5350 = vsel %vm1148, %v5261, 0
        %v5353 = vsel %vm1148, %v5262, 0
        %v5356 = vsel %vm1148, %v5263, 0
        %v5359 = vsel %vm1148, %v5264, 0
        %v5362 = vsel %vm1148, %v5265, 0
        %v5365 = vsel %vm1148, %v5266, 0
        %v5368 = vsel %vm1148, %v5267, 0
        %v5371 = vsel %vm1148, %v5268, 0
        %v5374 = vsel %vm1148, %v5269, 0
        %v5377 = vsel %vm1148, %v5270, 0
        %v5380 = vsel %vm1148, %v5271, 0
        %v5383 = vsel %vm1148, %v5272, 0
        %v5386 = vsel %vm1148, %v5273, 0
        %v5389 = vsel %vm1148, %v5274, 0
        %v5392 = vsel %vm1148, %v5275, 0
        %v5395 = vsel %vm1148, %v5276, 0
        %5397 = vmatpush.msra.mxu0 0.0
        %5398 = vmatpush.msra.mxu0 0.0
        %5399 = vmatpush.msra.mxu0 0.0
        %5400 = vmatpush.msra.mxu0 0.0
        %5401 = vmatpush.msra.mxu0 0.0
        %5402 = vmatpush.msra.mxu0 0.0
        %5403 = vmatpush.msra.mxu0 0.0
        %5404 = vmatpush.msra.mxu0 0.0
        %5405 = vmatpush.msra.mxu0 0.0
        %5406 = vmatpush.msra.mxu0 %v5350
        %5407 = vmatpush.msra.mxu0 %v5245
        %5408 = vmatpush.msra.mxu0 %v5229
        %5409 = vmatpush.msra.mxu0 %v5213
        %5410 = vmatpush.msra.mxu0 %v5197
        %5411 = vmatpush.msra.mxu0 %v5181
        %5412 = vmatpush.msra.mxu0 %v5165
        %5413 = vmatmul.f32.gmra.mxu0 %v5329
        %v5414 = vpop.f32.mrf.mxu0
        %v5415 = vadd.f32 %v5296, %v5414
        %5416 = vmatmul.f32.gmra.mxu0 %v5332
        %v5417 = vpop.f32.mrf.mxu0
        %v5418 = vadd.f32 %v5301, %v5417
        %5419 = vmatmul.f32.gmra.mxu0 %v5335
        %v5420 = vpop.f32.mrf.mxu0
        %v5421 = vadd.f32 %v5306, %v5420
        %5422 = vmatmul.f32.gmra.mxu0 %v5338
        %v5423 = vpop.f32.mrf.mxu0
        %v5424 = vadd.f32 %v5311, %v5423
        %5425 = vmatmul.f32.gmra.mxu0 %v5341
        %v5426 = vpop.f32.mrf.mxu0
        %v5427 = vadd.f32 %v5316, %v5426
        %5428 = vmatmul.f32.gmra.mxu0 %v5344
        %v5429 = vpop.f32.mrf.mxu0
        %v5430 = vadd.f32 %v5321, %v5429
        %5431 = vmatmul.f32.gmra.mxu0 %v5347
        %v5432 = vpop.f32.mrf.mxu0
        %v5433 = vadd.f32 %v5326, %v5432
        %5434 = vdwg.mxu0
        %5435 = vmatpush.msra.mxu0 0.0
        %5436 = vmatpush.msra.mxu0 0.0
        %5437 = vmatpush.msra.mxu0 0.0
        %5438 = vmatpush.msra.mxu0 0.0
        %5439 = vmatpush.msra.mxu0 0.0
        %5440 = vmatpush.msra.mxu0 0.0
        %5441 = vmatpush.msra.mxu0 0.0
        %5442 = vmatpush.msra.mxu0 0.0
        %5443 = vmatpush.msra.mxu0 0.0
        %5444 = vmatpush.msra.mxu0 %v5353
        %5445 = vmatpush.msra.mxu0 %v5246
        %5446 = vmatpush.msra.mxu0 %v5230
        %5447 = vmatpush.msra.mxu0 %v5214
        %5448 = vmatpush.msra.mxu0 %v5198
        %5449 = vmatpush.msra.mxu0 %v5182
        %5450 = vmatpush.msra.mxu0 %v5166
        %5451 = vmatmul.f32.gmra.mxu0 %v5329
        %v5452 = vpop.f32.mrf.mxu0
        %v5453 = vadd.f32 %v5296, %v5452
        %5454 = vmatmul.f32.gmra.mxu0 %v5332
        %v5455 = vpop.f32.mrf.mxu0
        %v5456 = vadd.f32 %v5301, %v5455
        %5457 = vmatmul.f32.gmra.mxu0 %v5335
        %v5458 = vpop.f32.mrf.mxu0
        %v5459 = vadd.f32 %v5306, %v5458
        %5460 = vmatmul.f32.gmra.mxu0 %v5338
        %v5461 = vpop.f32.mrf.mxu0
        %v5462 = vadd.f32 %v5311, %v5461
        %5463 = vmatmul.f32.gmra.mxu0 %v5341
        %v5464 = vpop.f32.mrf.mxu0
        %v5465 = vadd.f32 %v5316, %v5464
        %5466 = vmatmul.f32.gmra.mxu0 %v5344
        %v5467 = vpop.f32.mrf.mxu0
        %v5468 = vadd.f32 %v5321, %v5467
        %5469 = vmatmul.f32.gmra.mxu0 %v5347
        %v5470 = vpop.f32.mrf.mxu0
        %v5471 = vadd.f32 %v5326, %v5470
        %5472 = vdwg.mxu0
        %5473 = vmatpush.msra.mxu0 0.0
        %5474 = vmatpush.msra.mxu0 0.0
        %5475 = vmatpush.msra.mxu0 0.0
        %5476 = vmatpush.msra.mxu0 0.0
        %5477 = vmatpush.msra.mxu0 0.0
        %5478 = vmatpush.msra.mxu0 0.0
        %5479 = vmatpush.msra.mxu0 0.0
        %5480 = vmatpush.msra.mxu0 0.0
        %5481 = vmatpush.msra.mxu0 0.0
        %5482 = vmatpush.msra.mxu0 %v5356
        %5483 = vmatpush.msra.mxu0 %v5247
        %5484 = vmatpush.msra.mxu0 %v5231
        %5485 = vmatpush.msra.mxu0 %v5215
        %5486 = vmatpush.msra.mxu0 %v5199
        %5487 = vmatpush.msra.mxu0 %v5183
        %5488 = vmatpush.msra.mxu0 %v5167
        %5489 = vmatmul.f32.gmra.mxu0 %v5329
        %v5490 = vpop.f32.mrf.mxu0
        %v5491 = vadd.f32 %v5296, %v5490
        %5492 = vmatmul.f32.gmra.mxu0 %v5332
        %v5493 = vpop.f32.mrf.mxu0
        %v5494 = vadd.f32 %v5301, %v5493
        %5495 = vmatmul.f32.gmra.mxu0 %v5335
        %v5496 = vpop.f32.mrf.mxu0
        %v5497 = vadd.f32 %v5306, %v5496
        %5498 = vmatmul.f32.gmra.mxu0 %v5338
        %v5499 = vpop.f32.mrf.mxu0
        %v5500 = vadd.f32 %v5311, %v5499
        %5501 = vmatmul.f32.gmra.mxu0 %v5341
        %v5502 = vpop.f32.mrf.mxu0
        %v5503 = vadd.f32 %v5316, %v5502
        %5504 = vmatmul.f32.gmra.mxu0 %v5344
        %v5505 = vpop.f32.mrf.mxu0
        %v5506 = vadd.f32 %v5321, %v5505
        %5507 = vmatmul.f32.gmra.mxu0 %v5347
        %v5508 = vpop.f32.mrf.mxu0
        %v5509 = vadd.f32 %v5326, %v5508
        %5510 = vdwg.mxu0
        %5511 = vmatpush.msra.mxu0 0.0
        %5512 = vmatpush.msra.mxu0 0.0
        %5513 = vmatpush.msra.mxu0 0.0
        %5514 = vmatpush.msra.mxu0 0.0
        %5515 = vmatpush.msra.mxu0 0.0
        %5516 = vmatpush.msra.mxu0 0.0
        %5517 = vmatpush.msra.mxu0 0.0
        %5518 = vmatpush.msra.mxu0 0.0
        %5519 = vmatpush.msra.mxu0 0.0
        %5520 = vmatpush.msra.mxu0 %v5359
        %5521 = vmatpush.msra.mxu0 %v5248
        %5522 = vmatpush.msra.mxu0 %v5232
        %5523 = vmatpush.msra.mxu0 %v5216
        %5524 = vmatpush.msra.mxu0 %v5200
        %5525 = vmatpush.msra.mxu0 %v5184
        %5526 = vmatpush.msra.mxu0 %v5168
        %5527 = vmatmul.f32.gmra.mxu0 %v5329
        %v5528 = vpop.f32.mrf.mxu0
        %v5529 = vadd.f32 %v5296, %v5528
        %5530 = vmatmul.f32.gmra.mxu0 %v5332
        %v5531 = vpop.f32.mrf.mxu0
        %v5532 = vadd.f32 %v5301, %v5531
        %5533 = vmatmul.f32.gmra.mxu0 %v5335
        %v5534 = vpop.f32.mrf.mxu0
        %v5535 = vadd.f32 %v5306, %v5534
        %5536 = vmatmul.f32.gmra.mxu0 %v5338
        %v5537 = vpop.f32.mrf.mxu0
        %v5538 = vadd.f32 %v5311, %v5537
        %5539 = vmatmul.f32.gmra.mxu0 %v5341
        %v5540 = vpop.f32.mrf.mxu0
        %v5541 = vadd.f32 %v5316, %v5540
        %5542 = vmatmul.f32.gmra.mxu0 %v5344
        %v5543 = vpop.f32.mrf.mxu0
        %v5544 = vadd.f32 %v5321, %v5543
        %5545 = vmatmul.f32.gmra.mxu0 %v5347
        %v5546 = vpop.f32.mrf.mxu0
        %v5547 = vadd.f32 %v5326, %v5546
        %5548 = vdwg.mxu0
        %5549 = vmatpush.msra.mxu0 0.0
        %5550 = vmatpush.msra.mxu0 0.0
        %5551 = vmatpush.msra.mxu0 0.0
        %5552 = vmatpush.msra.mxu0 0.0
        %5553 = vmatpush.msra.mxu0 0.0
        %5554 = vmatpush.msra.mxu0 0.0
        %5555 = vmatpush.msra.mxu0 0.0
        %5556 = vmatpush.msra.mxu0 0.0
        %5557 = vmatpush.msra.mxu0 0.0
        %5558 = vmatpush.msra.mxu0 %v5362
        %5559 = vmatpush.msra.mxu0 %v5249
        %5560 = vmatpush.msra.mxu0 %v5233
        %5561 = vmatpush.msra.mxu0 %v5217
        %5562 = vmatpush.msra.mxu0 %v5201
        %5563 = vmatpush.msra.mxu0 %v5185
        %5564 = vmatpush.msra.mxu0 %v5169
        %5565 = vmatmul.f32.gmra.mxu0 %v5329
        %v5566 = vpop.f32.mrf.mxu0
        %v5567 = vadd.f32 %v5296, %v5566
        %5568 = vmatmul.f32.gmra.mxu0 %v5332
        %v5569 = vpop.f32.mrf.mxu0
        %v5570 = vadd.f32 %v5301, %v5569
        %5571 = vmatmul.f32.gmra.mxu0 %v5335
        %v5572 = vpop.f32.mrf.mxu0
        %v5573 = vadd.f32 %v5306, %v5572
        %5574 = vmatmul.f32.gmra.mxu0 %v5338
        %v5575 = vpop.f32.mrf.mxu0
        %v5576 = vadd.f32 %v5311, %v5575
        %5577 = vmatmul.f32.gmra.mxu0 %v5341
        %v5578 = vpop.f32.mrf.mxu0
        %v5579 = vadd.f32 %v5316, %v5578
        %5580 = vmatmul.f32.gmra.mxu0 %v5344
        %v5581 = vpop.f32.mrf.mxu0
        %v5582 = vadd.f32 %v5321, %v5581
        %5583 = vmatmul.f32.gmra.mxu0 %v5347
        %v5584 = vpop.f32.mrf.mxu0
        %v5585 = vadd.f32 %v5326, %v5584
        %5586 = vdwg.mxu0
        %5587 = vmatpush.msra.mxu0 0.0
        %5588 = vmatpush.msra.mxu0 0.0
        %5589 = vmatpush.msra.mxu0 0.0
        %5590 = vmatpush.msra.mxu0 0.0
        %5591 = vmatpush.msra.mxu0 0.0
        %5592 = vmatpush.msra.mxu0 0.0
        %5593 = vmatpush.msra.mxu0 0.0
        %5594 = vmatpush.msra.mxu0 0.0
        %5595 = vmatpush.msra.mxu0 0.0
        %5596 = vmatpush.msra.mxu0 %v5365
        %5597 = vmatpush.msra.mxu0 %v5250
        %5598 = vmatpush.msra.mxu0 %v5234
        %5599 = vmatpush.msra.mxu0 %v5218
        %5600 = vmatpush.msra.mxu0 %v5202
        %5601 = vmatpush.msra.mxu0 %v5186
        %5602 = vmatpush.msra.mxu0 %v5170
        %5603 = vmatmul.f32.gmra.mxu0 %v5329
        %v5604 = vpop.f32.mrf.mxu0
        %v5605 = vadd.f32 %v5296, %v5604
        %5606 = vmatmul.f32.gmra.mxu0 %v5332
        %v5607 = vpop.f32.mrf.mxu0
        %v5608 = vadd.f32 %v5301, %v5607
        %5609 = vmatmul.f32.gmra.mxu0 %v5335
        %v5610 = vpop.f32.mrf.mxu0
        %v5611 = vadd.f32 %v5306, %v5610
        %5612 = vmatmul.f32.gmra.mxu0 %v5338
        %v5613 = vpop.f32.mrf.mxu0
        %v5614 = vadd.f32 %v5311, %v5613
        %5615 = vmatmul.f32.gmra.mxu0 %v5341
        %v5616 = vpop.f32.mrf.mxu0
        %v5617 = vadd.f32 %v5316, %v5616
        %5618 = vmatmul.f32.gmra.mxu0 %v5344
        %v5619 = vpop.f32.mrf.mxu0
        %v5620 = vadd.f32 %v5321, %v5619
        %5621 = vmatmul.f32.gmra.mxu0 %v5347
        %v5622 = vpop.f32.mrf.mxu0
        %v5623 = vadd.f32 %v5326, %v5622
        %5624 = vdwg.mxu0
        %5625 = vmatpush.msra.mxu0 0.0
        %5626 = vmatpush.msra.mxu0 0.0
        %5627 = vmatpush.msra.mxu0 0.0
        %5628 = vmatpush.msra.mxu0 0.0
        %5629 = vmatpush.msra.mxu0 0.0
        %5630 = vmatpush.msra.mxu0 0.0
        %5631 = vmatpush.msra.mxu0 0.0
        %5632 = vmatpush.msra.mxu0 0.0
        %5633 = vmatpush.msra.mxu0 0.0
        %5634 = vmatpush.msra.mxu0 %v5368
        %5635 = vmatpush.msra.mxu0 %v5251
        %5636 = vmatpush.msra.mxu0 %v5235
        %5637 = vmatpush.msra.mxu0 %v5219
        %5638 = vmatpush.msra.mxu0 %v5203
        %5639 = vmatpush.msra.mxu0 %v5187
        %5640 = vmatpush.msra.mxu0 %v5171
        %5641 = vmatmul.f32.gmra.mxu0 %v5329
        %v5642 = vpop.f32.mrf.mxu0
        %v5643 = vadd.f32 %v5296, %v5642
        %5644 = vmatmul.f32.gmra.mxu0 %v5332
        %v5645 = vpop.f32.mrf.mxu0
        %v5646 = vadd.f32 %v5301, %v5645
        %5647 = vmatmul.f32.gmra.mxu0 %v5335
        %v5648 = vpop.f32.mrf.mxu0
        %v5649 = vadd.f32 %v5306, %v5648
        %5650 = vmatmul.f32.gmra.mxu0 %v5338
        %v5651 = vpop.f32.mrf.mxu0
        %v5652 = vadd.f32 %v5311, %v5651
        %5653 = vmatmul.f32.gmra.mxu0 %v5341
        %v5654 = vpop.f32.mrf.mxu0
        %v5655 = vadd.f32 %v5316, %v5654
        %5656 = vmatmul.f32.gmra.mxu0 %v5344
        %v5657 = vpop.f32.mrf.mxu0
        %v5658 = vadd.f32 %v5321, %v5657
        %5659 = vmatmul.f32.gmra.mxu0 %v5347
        %v5660 = vpop.f32.mrf.mxu0
        %v5661 = vadd.f32 %v5326, %v5660
        %5662 = vdwg.mxu0
        %5663 = vmatpush.msra.mxu0 0.0
        %5664 = vmatpush.msra.mxu0 0.0
        %5665 = vmatpush.msra.mxu0 0.0
        %5666 = vmatpush.msra.mxu0 0.0
        %5667 = vmatpush.msra.mxu0 0.0
        %5668 = vmatpush.msra.mxu0 0.0
        %5669 = vmatpush.msra.mxu0 0.0
        %5670 = vmatpush.msra.mxu0 0.0
        %5671 = vmatpush.msra.mxu0 0.0
        %5672 = vmatpush.msra.mxu0 %v5371
        %5673 = vmatpush.msra.mxu0 %v5252
        %5674 = vmatpush.msra.mxu0 %v5236
        %5675 = vmatpush.msra.mxu0 %v5220
        %5676 = vmatpush.msra.mxu0 %v5204
        %5677 = vmatpush.msra.mxu0 %v5188
        %5678 = vmatpush.msra.mxu0 %v5172
        %5679 = vmatmul.f32.gmra.mxu0 %v5329
        %v5680 = vpop.f32.mrf.mxu0
        %v5681 = vadd.f32 %v5296, %v5680
        %5682 = vmatmul.f32.gmra.mxu0 %v5332
        %v5683 = vpop.f32.mrf.mxu0
        %v5684 = vadd.f32 %v5301, %v5683
        %5685 = vmatmul.f32.gmra.mxu0 %v5335
        %v5686 = vpop.f32.mrf.mxu0
        %v5687 = vadd.f32 %v5306, %v5686
        %5688 = vmatmul.f32.gmra.mxu0 %v5338
        %v5689 = vpop.f32.mrf.mxu0
        %v5690 = vadd.f32 %v5311, %v5689
        %5691 = vmatmul.f32.gmra.mxu0 %v5341
        %v5692 = vpop.f32.mrf.mxu0
        %v5693 = vadd.f32 %v5316, %v5692
        %5694 = vmatmul.f32.gmra.mxu0 %v5344
        %v5695 = vpop.f32.mrf.mxu0
        %v5696 = vadd.f32 %v5321, %v5695
        %5697 = vmatmul.f32.gmra.mxu0 %v5347
        %v5698 = vpop.f32.mrf.mxu0
        %v5699 = vadd.f32 %v5326, %v5698
        %5700 = vdwg.mxu0
        %5701 = vmatpush.msra.mxu0 0.0
        %5702 = vmatpush.msra.mxu0 0.0
        %5703 = vmatpush.msra.mxu0 0.0
        %5704 = vmatpush.msra.mxu0 0.0
        %5705 = vmatpush.msra.mxu0 0.0
        %5706 = vmatpush.msra.mxu0 0.0
        %5707 = vmatpush.msra.mxu0 0.0
        %5708 = vmatpush.msra.mxu0 0.0
        %5709 = vmatpush.msra.mxu0 0.0
        %5710 = vmatpush.msra.mxu0 %v5374
        %5711 = vmatpush.msra.mxu0 %v5253
        %5712 = vmatpush.msra.mxu0 %v5237
        %5713 = vmatpush.msra.mxu0 %v5221
        %5714 = vmatpush.msra.mxu0 %v5205
        %5715 = vmatpush.msra.mxu0 %v5189
        %5716 = vmatpush.msra.mxu0 %v5173
        %5717 = vmatmul.f32.gmra.mxu0 %v5329
        %v5718 = vpop.f32.mrf.mxu0
        %v5719 = vadd.f32 %v5296, %v5718
        %5720 = vmatmul.f32.gmra.mxu0 %v5332
        %v5721 = vpop.f32.mrf.mxu0
        %v5722 = vadd.f32 %v5301, %v5721
        %5723 = vmatmul.f32.gmra.mxu0 %v5335
        %v5724 = vpop.f32.mrf.mxu0
        %v5725 = vadd.f32 %v5306, %v5724
        %5726 = vmatmul.f32.gmra.mxu0 %v5338
        %v5727 = vpop.f32.mrf.mxu0
        %v5728 = vadd.f32 %v5311, %v5727
        %5729 = vmatmul.f32.gmra.mxu0 %v5341
        %v5730 = vpop.f32.mrf.mxu0
        %v5731 = vadd.f32 %v5316, %v5730
        %5732 = vmatmul.f32.gmra.mxu0 %v5344
        %v5733 = vpop.f32.mrf.mxu0
        %v5734 = vadd.f32 %v5321, %v5733
        %5735 = vmatmul.f32.gmra.mxu0 %v5347
        %v5736 = vpop.f32.mrf.mxu0
        %v5737 = vadd.f32 %v5326, %v5736
        %5738 = vdwg.mxu0
        %5739 = vmatpush.msra.mxu0 0.0
        %5740 = vmatpush.msra.mxu0 0.0
        %5741 = vmatpush.msra.mxu0 0.0
        %5742 = vmatpush.msra.mxu0 0.0
        %5743 = vmatpush.msra.mxu0 0.0
        %5744 = vmatpush.msra.mxu0 0.0
        %5745 = vmatpush.msra.mxu0 0.0
        %5746 = vmatpush.msra.mxu0 0.0
        %5747 = vmatpush.msra.mxu0 0.0
        %5748 = vmatpush.msra.mxu0 %v5377
        %5749 = vmatpush.msra.mxu0 %v5254
        %5750 = vmatpush.msra.mxu0 %v5238
        %5751 = vmatpush.msra.mxu0 %v5222
        %5752 = vmatpush.msra.mxu0 %v5206
        %5753 = vmatpush.msra.mxu0 %v5190
        %5754 = vmatpush.msra.mxu0 %v5174
        %5755 = vmatmul.f32.gmra.mxu0 %v5329
        %v5756 = vpop.f32.mrf.mxu0
        %v5757 = vadd.f32 %v5296, %v5756
        %5758 = vmatmul.f32.gmra.mxu0 %v5332
        %v5759 = vpop.f32.mrf.mxu0
        %v5760 = vadd.f32 %v5301, %v5759
        %5761 = vmatmul.f32.gmra.mxu0 %v5335
        %v5762 = vpop.f32.mrf.mxu0
        %v5763 = vadd.f32 %v5306, %v5762
        %5764 = vmatmul.f32.gmra.mxu0 %v5338
        %v5765 = vpop.f32.mrf.mxu0
        %v5766 = vadd.f32 %v5311, %v5765
        %5767 = vmatmul.f32.gmra.mxu0 %v5341
        %v5768 = vpop.f32.mrf.mxu0
        %v5769 = vadd.f32 %v5316, %v5768
        %5770 = vmatmul.f32.gmra.mxu0 %v5344
        %v5771 = vpop.f32.mrf.mxu0
        %v5772 = vadd.f32 %v5321, %v5771
        %5773 = vmatmul.f32.gmra.mxu0 %v5347
        %v5774 = vpop.f32.mrf.mxu0
        %v5775 = vadd.f32 %v5326, %v5774
        %5776 = vdwg.mxu0
        %5777 = vmatpush.msra.mxu0 0.0
        %5778 = vmatpush.msra.mxu0 0.0
        %5779 = vmatpush.msra.mxu0 0.0
        %5780 = vmatpush.msra.mxu0 0.0
        %5781 = vmatpush.msra.mxu0 0.0
        %5782 = vmatpush.msra.mxu0 0.0
        %5783 = vmatpush.msra.mxu0 0.0
        %5784 = vmatpush.msra.mxu0 0.0
        %5785 = vmatpush.msra.mxu0 0.0
        %5786 = vmatpush.msra.mxu0 %v5380
        %5787 = vmatpush.msra.mxu0 %v5255
        %5788 = vmatpush.msra.mxu0 %v5239
        %5789 = vmatpush.msra.mxu0 %v5223
        %5790 = vmatpush.msra.mxu0 %v5207
        %5791 = vmatpush.msra.mxu0 %v5191
        %5792 = vmatpush.msra.mxu0 %v5175
        %5793 = vmatmul.f32.gmra.mxu0 %v5329
        %v5794 = vpop.f32.mrf.mxu0
        %v5795 = vadd.f32 %v5296, %v5794
        %5796 = vmatmul.f32.gmra.mxu0 %v5332
        %v5797 = vpop.f32.mrf.mxu0
        %v5798 = vadd.f32 %v5301, %v5797
        %5799 = vmatmul.f32.gmra.mxu0 %v5335
        %v5800 = vpop.f32.mrf.mxu0
        %v5801 = vadd.f32 %v5306, %v5800
        %5802 = vmatmul.f32.gmra.mxu0 %v5338
        %v5803 = vpop.f32.mrf.mxu0
        %v5804 = vadd.f32 %v5311, %v5803
        %5805 = vmatmul.f32.gmra.mxu0 %v5341
        %v5806 = vpop.f32.mrf.mxu0
        %v5807 = vadd.f32 %v5316, %v5806
        %5808 = vmatmul.f32.gmra.mxu0 %v5344
        %v5809 = vpop.f32.mrf.mxu0
        %v5810 = vadd.f32 %v5321, %v5809
        %5811 = vmatmul.f32.gmra.mxu0 %v5347
        %v5812 = vpop.f32.mrf.mxu0
        %v5813 = vadd.f32 %v5326, %v5812
        %5814 = vdwg.mxu0
        %5815 = vmatpush.msra.mxu0 0.0
        %5816 = vmatpush.msra.mxu0 0.0
        %5817 = vmatpush.msra.mxu0 0.0
        %5818 = vmatpush.msra.mxu0 0.0
        %5819 = vmatpush.msra.mxu0 0.0
        %5820 = vmatpush.msra.mxu0 0.0
        %5821 = vmatpush.msra.mxu0 0.0
        %5822 = vmatpush.msra.mxu0 0.0
        %5823 = vmatpush.msra.mxu0 0.0
        %5824 = vmatpush.msra.mxu0 %v5383
        %5825 = vmatpush.msra.mxu0 %v5256
        %5826 = vmatpush.msra.mxu0 %v5240
        %5827 = vmatpush.msra.mxu0 %v5224
        %5828 = vmatpush.msra.mxu0 %v5208
        %5829 = vmatpush.msra.mxu0 %v5192
        %5830 = vmatpush.msra.mxu0 %v5176
        %5831 = vmatmul.f32.gmra.mxu0 %v5329
        %v5832 = vpop.f32.mrf.mxu0
        %v5833 = vadd.f32 %v5296, %v5832
        %5834 = vmatmul.f32.gmra.mxu0 %v5332
        %v5835 = vpop.f32.mrf.mxu0
        %v5836 = vadd.f32 %v5301, %v5835
        %5837 = vmatmul.f32.gmra.mxu0 %v5335
        %v5838 = vpop.f32.mrf.mxu0
        %v5839 = vadd.f32 %v5306, %v5838
        %5840 = vmatmul.f32.gmra.mxu0 %v5338
        %v5841 = vpop.f32.mrf.mxu0
        %v5842 = vadd.f32 %v5311, %v5841
        %5843 = vmatmul.f32.gmra.mxu0 %v5341
        %v5844 = vpop.f32.mrf.mxu0
        %v5845 = vadd.f32 %v5316, %v5844
        %5846 = vmatmul.f32.gmra.mxu0 %v5344
        %v5847 = vpop.f32.mrf.mxu0
        %v5848 = vadd.f32 %v5321, %v5847
        %5849 = vmatmul.f32.gmra.mxu0 %v5347
        %v5850 = vpop.f32.mrf.mxu0
        %v5851 = vadd.f32 %v5326, %v5850
        %5852 = vdwg.mxu0
        %5853 = vmatpush.msra.mxu0 0.0
        %5854 = vmatpush.msra.mxu0 0.0
        %5855 = vmatpush.msra.mxu0 0.0
        %5856 = vmatpush.msra.mxu0 0.0
        %5857 = vmatpush.msra.mxu0 0.0
        %5858 = vmatpush.msra.mxu0 0.0
        %5859 = vmatpush.msra.mxu0 0.0
        %5860 = vmatpush.msra.mxu0 0.0
        %5861 = vmatpush.msra.mxu0 0.0
        %5862 = vmatpush.msra.mxu0 %v5386
        %5863 = vmatpush.msra.mxu0 %v5257
        %5864 = vmatpush.msra.mxu0 %v5241
        %5865 = vmatpush.msra.mxu0 %v5225
        %5866 = vmatpush.msra.mxu0 %v5209
        %5867 = vmatpush.msra.mxu0 %v5193
        %5868 = vmatpush.msra.mxu0 %v5177
        %5869 = vmatmul.f32.gmra.mxu0 %v5329
        %v5870 = vpop.f32.mrf.mxu0
        %v5871 = vadd.f32 %v5296, %v5870
        %5872 = vmatmul.f32.gmra.mxu0 %v5332
        %v5873 = vpop.f32.mrf.mxu0
        %v5874 = vadd.f32 %v5301, %v5873
        %5875 = vmatmul.f32.gmra.mxu0 %v5335
        %v5876 = vpop.f32.mrf.mxu0
        %v5877 = vadd.f32 %v5306, %v5876
        %5878 = vmatmul.f32.gmra.mxu0 %v5338
        %v5879 = vpop.f32.mrf.mxu0
        %v5880 = vadd.f32 %v5311, %v5879
        %5881 = vmatmul.f32.gmra.mxu0 %v5341
        %v5882 = vpop.f32.mrf.mxu0
        %v5883 = vadd.f32 %v5316, %v5882
        %5884 = vmatmul.f32.gmra.mxu0 %v5344
        %v5885 = vpop.f32.mrf.mxu0
        %v5886 = vadd.f32 %v5321, %v5885
        %5887 = vmatmul.f32.gmra.mxu0 %v5347
        %v5888 = vpop.f32.mrf.mxu0
        %v5889 = vadd.f32 %v5326, %v5888
        %5890 = vdwg.mxu0
        %5891 = vmatpush.msra.mxu0 0.0
        %5892 = vmatpush.msra.mxu0 0.0
        %5893 = vmatpush.msra.mxu0 0.0
        %5894 = vmatpush.msra.mxu0 0.0
        %5895 = vmatpush.msra.mxu0 0.0
        %5896 = vmatpush.msra.mxu0 0.0
        %5897 = vmatpush.msra.mxu0 0.0
        %5898 = vmatpush.msra.mxu0 0.0
        %5899 = vmatpush.msra.mxu0 0.0
        %5900 = vmatpush.msra.mxu0 %v5389
        %5901 = vmatpush.msra.mxu0 %v5258
        %5902 = vmatpush.msra.mxu0 %v5242
        %5903 = vmatpush.msra.mxu0 %v5226
        %5904 = vmatpush.msra.mxu0 %v5210
        %5905 = vmatpush.msra.mxu0 %v5194
        %5906 = vmatpush.msra.mxu0 %v5178
        %5907 = vmatmul.f32.gmra.mxu0 %v5329
        %v5908 = vpop.f32.mrf.mxu0
        %v5909 = vadd.f32 %v5296, %v5908
        %5910 = vmatmul.f32.gmra.mxu0 %v5332
        %v5911 = vpop.f32.mrf.mxu0
        %v5912 = vadd.f32 %v5301, %v5911
        %5913 = vmatmul.f32.gmra.mxu0 %v5335
        %v5914 = vpop.f32.mrf.mxu0
        %v5915 = vadd.f32 %v5306, %v5914
        %5916 = vmatmul.f32.gmra.mxu0 %v5338
        %v5917 = vpop.f32.mrf.mxu0
        %v5918 = vadd.f32 %v5311, %v5917
        %5919 = vmatmul.f32.gmra.mxu0 %v5341
        %v5920 = vpop.f32.mrf.mxu0
        %v5921 = vadd.f32 %v5316, %v5920
        %5922 = vmatmul.f32.gmra.mxu0 %v5344
        %v5923 = vpop.f32.mrf.mxu0
        %v5924 = vadd.f32 %v5321, %v5923
        %5925 = vmatmul.f32.gmra.mxu0 %v5347
        %v5926 = vpop.f32.mrf.mxu0
        %v5927 = vadd.f32 %v5326, %v5926
        %5928 = vdwg.mxu0
        %5929 = vmatpush.msra.mxu0 0.0
        %5930 = vmatpush.msra.mxu0 0.0
        %5931 = vmatpush.msra.mxu0 0.0
        %5932 = vmatpush.msra.mxu0 0.0
        %5933 = vmatpush.msra.mxu0 0.0
        %5934 = vmatpush.msra.mxu0 0.0
        %5935 = vmatpush.msra.mxu0 0.0
        %5936 = vmatpush.msra.mxu0 0.0
        %5937 = vmatpush.msra.mxu0 0.0
        %5938 = vmatpush.msra.mxu0 %v5392
        %5939 = vmatpush.msra.mxu0 %v5259
        %5940 = vmatpush.msra.mxu0 %v5243
        %5941 = vmatpush.msra.mxu0 %v5227
        %5942 = vmatpush.msra.mxu0 %v5211
        %5943 = vmatpush.msra.mxu0 %v5195
        %5944 = vmatpush.msra.mxu0 %v5179
        %5945 = vmatmul.f32.gmra.mxu0 %v5329
        %v5946 = vpop.f32.mrf.mxu0
        %v5947 = vadd.f32 %v5296, %v5946
        %5948 = vmatmul.f32.gmra.mxu0 %v5332
        %v5949 = vpop.f32.mrf.mxu0
        %v5950 = vadd.f32 %v5301, %v5949
        %5951 = vmatmul.f32.gmra.mxu0 %v5335
        %v5952 = vpop.f32.mrf.mxu0
        %v5953 = vadd.f32 %v5306, %v5952
        %5954 = vmatmul.f32.gmra.mxu0 %v5338
        %v5955 = vpop.f32.mrf.mxu0
        %v5956 = vadd.f32 %v5311, %v5955
        %5957 = vmatmul.f32.gmra.mxu0 %v5341
        %v5958 = vpop.f32.mrf.mxu0
        %v5959 = vadd.f32 %v5316, %v5958
        %5960 = vmatmul.f32.gmra.mxu0 %v5344
        %v5961 = vpop.f32.mrf.mxu0
        %v5962 = vadd.f32 %v5321, %v5961
        %5963 = vmatmul.f32.gmra.mxu0 %v5347
        %v5964 = vpop.f32.mrf.mxu0
        %v5965 = vadd.f32 %v5326, %v5964
        %5966 = vdwg.mxu0
        %5967 = vmatpush.msra.mxu0 0.0
        %5968 = vmatpush.msra.mxu0 0.0
        %5969 = vmatpush.msra.mxu0 0.0
        %5970 = vmatpush.msra.mxu0 0.0
        %5971 = vmatpush.msra.mxu0 0.0
        %5972 = vmatpush.msra.mxu0 0.0
        %5973 = vmatpush.msra.mxu0 0.0
        %5974 = vmatpush.msra.mxu0 0.0
        %5975 = vmatpush.msra.mxu0 0.0
        %5976 = vmatpush.msra.mxu0 %v5395
        %5977 = vmatpush.msra.mxu0 %v5260
        %5978 = vmatpush.msra.mxu0 %v5244
        %5979 = vmatpush.msra.mxu0 %v5228
        %5980 = vmatpush.msra.mxu0 %v5212
        %5981 = vmatpush.msra.mxu0 %v5196
        %5982 = vmatpush.msra.mxu0 %v5180
        %5983 = vmatmul.f32.gmra.mxu0 %v5329
        %v5984 = vpop.f32.mrf.mxu0
        %v5985 = vadd.f32 %v5296, %v5984
        %5986 = vmatmul.f32.gmra.mxu0 %v5332
        %v5987 = vpop.f32.mrf.mxu0
        %v5988 = vadd.f32 %v5301, %v5987
        %5989 = vmatmul.f32.gmra.mxu0 %v5335
        %v5990 = vpop.f32.mrf.mxu0
        %v5991 = vadd.f32 %v5306, %v5990
        %5992 = vmatmul.f32.gmra.mxu0 %v5338
        %v5993 = vpop.f32.mrf.mxu0
        %v5994 = vadd.f32 %v5311, %v5993
        %5995 = vmatmul.f32.gmra.mxu0 %v5341
        %v5996 = vpop.f32.mrf.mxu0
        %v5997 = vadd.f32 %v5316, %v5996
        %5998 = vmatmul.f32.gmra.mxu0 %v5344
        %v5999 = vpop.f32.mrf.mxu0
        %v6000 = vadd.f32 %v5321, %v5999
        %6001 = vmatmul.f32.gmra.mxu0 %v5347
        %v6002 = vpop.f32.mrf.mxu0
        %v6003 = vadd.f32 %v5326, %v6002
        %6004 = vdwg.mxu0
        %v6005 = vtanh.pop %v5415
        %v6006 = vtanh.pop %v5453
        %v6007 = vtanh.pop %v5491
        %v6008 = vtanh.pop %v5529
        %v6009 = vtanh.pop %v5567
        %v6010 = vtanh.pop %v5605
        %v6011 = vtanh.pop %v5643
        %v6012 = vtanh.pop %v5681
        %v6013 = vtanh.pop %v5719
        %v6014 = vtanh.pop %v5757
        %v6015 = vtanh.pop %v5795
        %v6016 = vtanh.pop %v5833
        %v6017 = vtanh.pop %v5871
        %v6018 = vtanh.pop %v5909
        %v6019 = vtanh.pop %v5947
        %v6020 = vtanh.pop %v5985
        %v6021 = vtanh.pop %v5418
        %v6022 = vtanh.pop %v5456
        %v6023 = vtanh.pop %v5494
        %v6024 = vtanh.pop %v5532
        %v6025 = vtanh.pop %v5570
        %v6026 = vtanh.pop %v5608
        %v6027 = vtanh.pop %v5646
        %v6028 = vtanh.pop %v5684
        %v6029 = vtanh.pop %v5722
        %v6030 = vtanh.pop %v5760
        %v6031 = vtanh.pop %v5798
        %v6032 = vtanh.pop %v5836
        %v6033 = vtanh.pop %v5874
        %v6034 = vtanh.pop %v5912
        %v6035 = vtanh.pop %v5950
        %v6036 = vtanh.pop %v5988
        %v6037 = vtanh.pop %v5421
        %v6038 = vtanh.pop %v5459
        %v6039 = vtanh.pop %v5497
        %v6040 = vtanh.pop %v5535
        %v6041 = vtanh.pop %v5573
        %v6042 = vtanh.pop %v5611
        %v6043 = vtanh.pop %v5649
        %v6044 = vtanh.pop %v5687
        %v6045 = vtanh.pop %v5725
        %v6046 = vtanh.pop %v5763
        %v6047 = vtanh.pop %v5801
        %v6048 = vtanh.pop %v5839
        %v6049 = vtanh.pop %v5877
        %v6050 = vtanh.pop %v5915
        %v6051 = vtanh.pop %v5953
        %v6052 = vtanh.pop %v5991
        %v6053 = vtanh.pop %v5424
        %v6054 = vtanh.pop %v5462
        %v6055 = vtanh.pop %v5500
        %v6056 = vtanh.pop %v5538
        %v6057 = vtanh.pop %v5576
        %v6058 = vtanh.pop %v5614
        %v6059 = vtanh.pop %v5652
        %v6060 = vtanh.pop %v5690
        %v6061 = vtanh.pop %v5728
        %v6062 = vtanh.pop %v5766
        %v6063 = vtanh.pop %v5804
        %v6064 = vtanh.pop %v5842
        %v6065 = vtanh.pop %v5880
        %v6066 = vtanh.pop %v5918
        %v6067 = vtanh.pop %v5956
        %v6068 = vtanh.pop %v5994
        %v6069 = vtanh.pop %v5427
        %v6070 = vtanh.pop %v5465
        %v6071 = vtanh.pop %v5503
        %v6072 = vtanh.pop %v5541
        %v6073 = vtanh.pop %v5579
        %v6074 = vtanh.pop %v5617
        %v6075 = vtanh.pop %v5655
        %v6076 = vtanh.pop %v5693
        %v6077 = vtanh.pop %v5731
        %v6078 = vtanh.pop %v5769
        %v6079 = vtanh.pop %v5807
        %v6080 = vtanh.pop %v5845
        %v6081 = vtanh.pop %v5883
        %v6082 = vtanh.pop %v5921
        %v6083 = vtanh.pop %v5959
        %v6084 = vtanh.pop %v5997
        %v6085 = vtanh.pop %v5430
        %v6086 = vtanh.pop %v5468
        %v6087 = vtanh.pop %v5506
        %v6088 = vtanh.pop %v5544
        %v6089 = vtanh.pop %v5582
        %v6090 = vtanh.pop %v5620
        %v6091 = vtanh.pop %v5658
        %v6092 = vtanh.pop %v5696
        %v6093 = vtanh.pop %v5734
        %v6094 = vtanh.pop %v5772
        %v6095 = vtanh.pop %v5810
        %v6096 = vtanh.pop %v5848
        %v6097 = vtanh.pop %v5886
        %v6098 = vtanh.pop %v5924
        %v6099 = vtanh.pop %v5962
        %v6100 = vtanh.pop %v6000
        %v6101 = vtanh.pop %v5433
        %v6102 = vtanh.pop %v5471
        %v6103 = vtanh.pop %v5509
        %v6104 = vtanh.pop %v5547
        %v6105 = vtanh.pop %v5585
        %v6106 = vtanh.pop %v5623
        %v6107 = vtanh.pop %v5661
        %v6108 = vtanh.pop %v5699
        %v6109 = vtanh.pop %v5737
        %v6110 = vtanh.pop %v5775
        %v6111 = vtanh.pop %v5813
        %v6112 = vtanh.pop %v5851
        %v6113 = vtanh.pop %v5889
        %v6114 = vtanh.pop %v5927
        %v6115 = vtanh.pop %v5965
        %v6116 = vtanh.pop %v6003
        %v6117 = vld [vmem:[%s5] sm:$0xff]
        %v6118 = vld [vmem:[%s6] sm:$0xff]
        %6120 = vset.pattern.permute.xlu0 0
        %6121 = vperm.xlu0 %6120, %v6118
        %v6122 = vpop.permute.xlu0 %6121
        %v6125 = vsel %vm1126, %v6117, 0
        %v6128 = vsel %vm1148, %v6101, 0
        %v6131 = vsel %vm1148, %v6102, 0
        %v6134 = vsel %vm1148, %v6103, 0
        %v6137 = vsel %vm1148, %v6104, 0
        %v6140 = vsel %vm1148, %v6105, 0
        %v6143 = vsel %vm1148, %v6106, 0
        %v6146 = vsel %vm1148, %v6107, 0
        %v6149 = vsel %vm1148, %v6108, 0
        %v6152 = vsel %vm1148, %v6109, 0
        %v6155 = vsel %vm1148, %v6110, 0
        %v6158 = vsel %vm1148, %v6111, 0
        %v6161 = vsel %vm1148, %v6112, 0
        %v6164 = vsel %vm1148, %v6113, 0
        %v6167 = vsel %vm1148, %v6114, 0
        %v6170 = vsel %vm1148, %v6115, 0
        %v6173 = vsel %vm1148, %v6116, 0
        %6175 = vmatpush.msra.mxu0 0.0
        %6176 = vmatpush.msra.mxu0 0.0
        %6177 = vmatpush.msra.mxu0 0.0
        %6178 = vmatpush.msra.mxu0 0.0
        %6179 = vmatpush.msra.mxu0 0.0
        %6180 = vmatpush.msra.mxu0 0.0
        %6181 = vmatpush.msra.mxu0 0.0
        %6182 = vmatpush.msra.mxu0 0.0
        %6183 = vmatpush.msra.mxu0 0.0
        %6184 = vmatpush.msra.mxu0 %v6128
        %6185 = vmatpush.msra.mxu0 %v6085
        %6186 = vmatpush.msra.mxu0 %v6069
        %6187 = vmatpush.msra.mxu0 %v6053
        %6188 = vmatpush.msra.mxu0 %v6037
        %6189 = vmatpush.msra.mxu0 %v6021
        %6190 = vmatpush.msra.mxu0 %v6005
        %6191 = vmatmul.f32.gmra.mxu0 %v6125
        %v6192 = vpop.f32.mrf.mxu0
        %v6193 = vadd.f32 %v6122, %v6192
        %6194 = vdwg.mxu0
        %6195 = vmatpush.msra.mxu0 0.0
        %6196 = vmatpush.msra.mxu0 0.0
        %6197 = vmatpush.msra.mxu0 0.0
        %6198 = vmatpush.msra.mxu0 0.0
        %6199 = vmatpush.msra.mxu0 0.0
        %6200 = vmatpush.msra.mxu0 0.0
        %6201 = vmatpush.msra.mxu0 0.0
        %6202 = vmatpush.msra.mxu0 0.0
        %6203 = vmatpush.msra.mxu0 0.0
        %6204 = vmatpush.msra.mxu0 %v6131
        %6205 = vmatpush.msra.mxu0 %v6086
        %6206 = vmatpush.msra.mxu0 %v6070
        %6207 = vmatpush.msra.mxu0 %v6054
        %6208 = vmatpush.msra.mxu0 %v6038
        %6209 = vmatpush.msra.mxu0 %v6022
        %6210 = vmatpush.msra.mxu0 %v6006
        %6211 = vmatmul.f32.gmra.mxu0 %v6125
        %v6212 = vpop.f32.mrf.mxu0
        %v6213 = vadd.f32 %v6122, %v6212
        %6214 = vdwg.mxu0
        %6215 = vmatpush.msra.mxu0 0.0
        %6216 = vmatpush.msra.mxu0 0.0
        %6217 = vmatpush.msra.mxu0 0.0
        %6218 = vmatpush.msra.mxu0 0.0
        %6219 = vmatpush.msra.mxu0 0.0
        %6220 = vmatpush.msra.mxu0 0.0
        %6221 = vmatpush.msra.mxu0 0.0
        %6222 = vmatpush.msra.mxu0 0.0
        %6223 = vmatpush.msra.mxu0 0.0
        %6224 = vmatpush.msra.mxu0 %v6134
        %6225 = vmatpush.msra.mxu0 %v6087
        %6226 = vmatpush.msra.mxu0 %v6071
        %6227 = vmatpush.msra.mxu0 %v6055
        %6228 = vmatpush.msra.mxu0 %v6039
        %6229 = vmatpush.msra.mxu0 %v6023
        %6230 = vmatpush.msra.mxu0 %v6007
        %6231 = vmatmul.f32.gmra.mxu0 %v6125
        %v6232 = vpop.f32.mrf.mxu0
        %v6233 = vadd.f32 %v6122, %v6232
        %6234 = vdwg.mxu0
        %6235 = vmatpush.msra.mxu0 0.0
        %6236 = vmatpush.msra.mxu0 0.0
        %6237 = vmatpush.msra.mxu0 0.0
        %6238 = vmatpush.msra.mxu0 0.0
        %6239 = vmatpush.msra.mxu0 0.0
        %6240 = vmatpush.msra.mxu0 0.0
        %6241 = vmatpush.msra.mxu0 0.0
        %6242 = vmatpush.msra.mxu0 0.0
        %6243 = vmatpush.msra.mxu0 0.0
        %6244 = vmatpush.msra.mxu0 %v6137
        %6245 = vmatpush.msra.mxu0 %v6088
        %6246 = vmatpush.msra.mxu0 %v6072
        %6247 = vmatpush.msra.mxu0 %v6056
        %6248 = vmatpush.msra.mxu0 %v6040
        %6249 = vmatpush.msra.mxu0 %v6024
        %6250 = vmatpush.msra.mxu0 %v6008
        %6251 = vmatmul.f32.gmra.mxu0 %v6125
        %v6252 = vpop.f32.mrf.mxu0
        %v6253 = vadd.f32 %v6122, %v6252
        %6254 = vdwg.mxu0
        %6255 = vmatpush.msra.mxu0 0.0
        %6256 = vmatpush.msra.mxu0 0.0
        %6257 = vmatpush.msra.mxu0 0.0
        %6258 = vmatpush.msra.mxu0 0.0
        %6259 = vmatpush.msra.mxu0 0.0
        %6260 = vmatpush.msra.mxu0 0.0
        %6261 = vmatpush.msra.mxu0 0.0
        %6262 = vmatpush.msra.mxu0 0.0
        %6263 = vmatpush.msra.mxu0 0.0
        %6264 = vmatpush.msra.mxu0 %v6140
        %6265 = vmatpush.msra.mxu0 %v6089
        %6266 = vmatpush.msra.mxu0 %v6073
        %6267 = vmatpush.msra.mxu0 %v6057
        %6268 = vmatpush.msra.mxu0 %v6041
        %6269 = vmatpush.msra.mxu0 %v6025
        %6270 = vmatpush.msra.mxu0 %v6009
        %6271 = vmatmul.f32.gmra.mxu0 %v6125
        %v6272 = vpop.f32.mrf.mxu0
        %v6273 = vadd.f32 %v6122, %v6272
        %6274 = vdwg.mxu0
        %6275 = vmatpush.msra.mxu0 0.0
        %6276 = vmatpush.msra.mxu0 0.0
        %6277 = vmatpush.msra.mxu0 0.0
        %6278 = vmatpush.msra.mxu0 0.0
        %6279 = vmatpush.msra.mxu0 0.0
        %6280 = vmatpush.msra.mxu0 0.0
        %6281 = vmatpush.msra.mxu0 0.0
        %6282 = vmatpush.msra.mxu0 0.0
        %6283 = vmatpush.msra.mxu0 0.0
        %6284 = vmatpush.msra.mxu0 %v6143
        %6285 = vmatpush.msra.mxu0 %v6090
        %6286 = vmatpush.msra.mxu0 %v6074
        %6287 = vmatpush.msra.mxu0 %v6058
        %6288 = vmatpush.msra.mxu0 %v6042
        %6289 = vmatpush.msra.mxu0 %v6026
        %6290 = vmatpush.msra.mxu0 %v6010
        %6291 = vmatmul.f32.gmra.mxu0 %v6125
        %v6292 = vpop.f32.mrf.mxu0
        %v6293 = vadd.f32 %v6122, %v6292
        %6294 = vdwg.mxu0
        %6295 = vmatpush.msra.mxu0 0.0
        %6296 = vmatpush.msra.mxu0 0.0
        %6297 = vmatpush.msra.mxu0 0.0
        %6298 = vmatpush.msra.mxu0 0.0
        %6299 = vmatpush.msra.mxu0 0.0
        %6300 = vmatpush.msra.mxu0 0.0
        %6301 = vmatpush.msra.mxu0 0.0
        %6302 = vmatpush.msra.mxu0 0.0
        %6303 = vmatpush.msra.mxu0 0.0
        %6304 = vmatpush.msra.mxu0 %v6146
        %6305 = vmatpush.msra.mxu0 %v6091
        %6306 = vmatpush.msra.mxu0 %v6075
        %6307 = vmatpush.msra.mxu0 %v6059
        %6308 = vmatpush.msra.mxu0 %v6043
        %6309 = vmatpush.msra.mxu0 %v6027
        %6310 = vmatpush.msra.mxu0 %v6011
        %6311 = vmatmul.f32.gmra.mxu0 %v6125
        %v6312 = vpop.f32.mrf.mxu0
        %v6313 = vadd.f32 %v6122, %v6312
        %6314 = vdwg.mxu0
        %6315 = vmatpush.msra.mxu0 0.0
        %6316 = vmatpush.msra.mxu0 0.0
        %6317 = vmatpush.msra.mxu0 0.0
        %6318 = vmatpush.msra.mxu0 0.0
        %6319 = vmatpush.msra.mxu0 0.0
        %6320 = vmatpush.msra.mxu0 0.0
        %6321 = vmatpush.msra.mxu0 0.0
        %6322 = vmatpush.msra.mxu0 0.0
        %6323 = vmatpush.msra.mxu0 0.0
        %6324 = vmatpush.msra.mxu0 %v6149
        %6325 = vmatpush.msra.mxu0 %v6092
        %6326 = vmatpush.msra.mxu0 %v6076
        %6327 = vmatpush.msra.mxu0 %v6060
        %6328 = vmatpush.msra.mxu0 %v6044
        %6329 = vmatpush.msra.mxu0 %v6028
        %6330 = vmatpush.msra.mxu0 %v6012
        %6331 = vmatmul.f32.gmra.mxu0 %v6125
        %v6332 = vpop.f32.mrf.mxu0
        %v6333 = vadd.f32 %v6122, %v6332
        %6334 = vdwg.mxu0
        %6335 = vmatpush.msra.mxu0 0.0
        %6336 = vmatpush.msra.mxu0 0.0
        %6337 = vmatpush.msra.mxu0 0.0
        %6338 = vmatpush.msra.mxu0 0.0
        %6339 = vmatpush.msra.mxu0 0.0
        %6340 = vmatpush.msra.mxu0 0.0
        %6341 = vmatpush.msra.mxu0 0.0
        %6342 = vmatpush.msra.mxu0 0.0
        %6343 = vmatpush.msra.mxu0 0.0
        %6344 = vmatpush.msra.mxu0 %v6152
        %6345 = vmatpush.msra.mxu0 %v6093
        %6346 = vmatpush.msra.mxu0 %v6077
        %6347 = vmatpush.msra.mxu0 %v6061
        %6348 = vmatpush.msra.mxu0 %v6045
        %6349 = vmatpush.msra.mxu0 %v6029
        %6350 = vmatpush.msra.mxu0 %v6013
        %6351 = vmatmul.f32.gmra.mxu0 %v6125
        %v6352 = vpop.f32.mrf.mxu0
        %v6353 = vadd.f32 %v6122, %v6352
        %6354 = vdwg.mxu0
        %6355 = vmatpush.msra.mxu0 0.0
        %6356 = vmatpush.msra.mxu0 0.0
        %6357 = vmatpush.msra.mxu0 0.0
        %6358 = vmatpush.msra.mxu0 0.0
        %6359 = vmatpush.msra.mxu0 0.0
        %6360 = vmatpush.msra.mxu0 0.0
        %6361 = vmatpush.msra.mxu0 0.0
        %6362 = vmatpush.msra.mxu0 0.0
        %6363 = vmatpush.msra.mxu0 0.0
        %6364 = vmatpush.msra.mxu0 %v6155
        %6365 = vmatpush.msra.mxu0 %v6094
        %6366 = vmatpush.msra.mxu0 %v6078
        %6367 = vmatpush.msra.mxu0 %v6062
        %6368 = vmatpush.msra.mxu0 %v6046
        %6369 = vmatpush.msra.mxu0 %v6030
        %6370 = vmatpush.msra.mxu0 %v6014
        %6371 = vmatmul.f32.gmra.mxu0 %v6125
        %v6372 = vpop.f32.mrf.mxu0
        %v6373 = vadd.f32 %v6122, %v6372
        %6374 = vdwg.mxu0
        %6375 = vmatpush.msra.mxu0 0.0
        %6376 = vmatpush.msra.mxu0 0.0
        %6377 = vmatpush.msra.mxu0 0.0
        %6378 = vmatpush.msra.mxu0 0.0
        %6379 = vmatpush.msra.mxu0 0.0
        %6380 = vmatpush.msra.mxu0 0.0
        %6381 = vmatpush.msra.mxu0 0.0
        %6382 = vmatpush.msra.mxu0 0.0
        %6383 = vmatpush.msra.mxu0 0.0
        %6384 = vmatpush.msra.mxu0 %v6158
        %6385 = vmatpush.msra.mxu0 %v6095
        %6386 = vmatpush.msra.mxu0 %v6079
        %6387 = vmatpush.msra.mxu0 %v6063
        %6388 = vmatpush.msra.mxu0 %v6047
        %6389 = vmatpush.msra.mxu0 %v6031
        %6390 = vmatpush.msra.mxu0 %v6015
        %6391 = vmatmul.f32.gmra.mxu0 %v6125
        %v6392 = vpop.f32.mrf.mxu0
        %v6393 = vadd.f32 %v6122, %v6392
        %6394 = vdwg.mxu0
        %6395 = vmatpush.msra.mxu0 0.0
        %6396 = vmatpush.msra.mxu0 0.0
        %6397 = vmatpush.msra.mxu0 0.0
        %6398 = vmatpush.msra.mxu0 0.0
        %6399 = vmatpush.msra.mxu0 0.0
        %6400 = vmatpush.msra.mxu0 0.0
        %6401 = vmatpush.msra.mxu0 0.0
        %6402 = vmatpush.msra.mxu0 0.0
        %6403 = vmatpush.msra.mxu0 0.0
        %6404 = vmatpush.msra.mxu0 %v6161
        %6405 = vmatpush.msra.mxu0 %v6096
        %6406 = vmatpush.msra.mxu0 %v6080
        %6407 = vmatpush.msra.mxu0 %v6064
        %6408 = vmatpush.msra.mxu0 %v6048
        %6409 = vmatpush.msra.mxu0 %v6032
        %6410 = vmatpush.msra.mxu0 %v6016
        %6411 = vmatmul.f32.gmra.mxu0 %v6125
        %v6412 = vpop.f32.mrf.mxu0
        %v6413 = vadd.f32 %v6122, %v6412
        %6414 = vdwg.mxu0
        %6415 = vmatpush.msra.mxu0 0.0
        %6416 = vmatpush.msra.mxu0 0.0
        %6417 = vmatpush.msra.mxu0 0.0
        %6418 = vmatpush.msra.mxu0 0.0
        %6419 = vmatpush.msra.mxu0 0.0
        %6420 = vmatpush.msra.mxu0 0.0
        %6421 = vmatpush.msra.mxu0 0.0
        %6422 = vmatpush.msra.mxu0 0.0
        %6423 = vmatpush.msra.mxu0 0.0
        %6424 = vmatpush.msra.mxu0 %v6164
        %6425 = vmatpush.msra.mxu0 %v6097
        %6426 = vmatpush.msra.mxu0 %v6081
        %6427 = vmatpush.msra.mxu0 %v6065
        %6428 = vmatpush.msra.mxu0 %v6049
        %6429 = vmatpush.msra.mxu0 %v6033
        %6430 = vmatpush.msra.mxu0 %v6017
        %6431 = vmatmul.f32.gmra.mxu0 %v6125
        %v6432 = vpop.f32.mrf.mxu0
        %v6433 = vadd.f32 %v6122, %v6432
        %6434 = vdwg.mxu0
        %6435 = vmatpush.msra.mxu0 0.0
        %6436 = vmatpush.msra.mxu0 0.0
        %6437 = vmatpush.msra.mxu0 0.0
        %6438 = vmatpush.msra.mxu0 0.0
        %6439 = vmatpush.msra.mxu0 0.0
        %6440 = vmatpush.msra.mxu0 0.0
        %6441 = vmatpush.msra.mxu0 0.0
        %6442 = vmatpush.msra.mxu0 0.0
        %6443 = vmatpush.msra.mxu0 0.0
        %6444 = vmatpush.msra.mxu0 %v6167
        %6445 = vmatpush.msra.mxu0 %v6098
        %6446 = vmatpush.msra.mxu0 %v6082
        %6447 = vmatpush.msra.mxu0 %v6066
        %6448 = vmatpush.msra.mxu0 %v6050
        %6449 = vmatpush.msra.mxu0 %v6034
        %6450 = vmatpush.msra.mxu0 %v6018
        %6451 = vmatmul.f32.gmra.mxu0 %v6125
        %v6452 = vpop.f32.mrf.mxu0
        %v6453 = vadd.f32 %v6122, %v6452
        %6454 = vdwg.mxu0
        %6455 = vmatpush.msra.mxu0 0.0
        %6456 = vmatpush.msra.mxu0 0.0
        %6457 = vmatpush.msra.mxu0 0.0
        %6458 = vmatpush.msra.mxu0 0.0
        %6459 = vmatpush.msra.mxu0 0.0
        %6460 = vmatpush.msra.mxu0 0.0
        %6461 = vmatpush.msra.mxu0 0.0
        %6462 = vmatpush.msra.mxu0 0.0
        %6463 = vmatpush.msra.mxu0 0.0
        %6464 = vmatpush.msra.mxu0 %v6170
        %6465 = vmatpush.msra.mxu0 %v6099
        %6466 = vmatpush.msra.mxu0 %v6083
        %6467 = vmatpush.msra.mxu0 %v6067
        %6468 = vmatpush.msra.mxu0 %v6051
        %6469 = vmatpush.msra.mxu0 %v6035
        %6470 = vmatpush.msra.mxu0 %v6019
        %6471 = vmatmul.f32.gmra.mxu0 %v6125
        %v6472 = vpop.f32.mrf.mxu0
        %v6473 = vadd.f32 %v6122, %v6472
        %6474 = vdwg.mxu0
        %6475 = vmatpush.msra.mxu0 0.0
        %6476 = vmatpush.msra.mxu0 0.0
        %6477 = vmatpush.msra.mxu0 0.0
        %6478 = vmatpush.msra.mxu0 0.0
        %6479 = vmatpush.msra.mxu0 0.0
        %6480 = vmatpush.msra.mxu0 0.0
        %6481 = vmatpush.msra.mxu0 0.0
        %6482 = vmatpush.msra.mxu0 0.0
        %6483 = vmatpush.msra.mxu0 0.0
        %6484 = vmatpush.msra.mxu0 %v6173
        %6485 = vmatpush.msra.mxu0 %v6100
        %6486 = vmatpush.msra.mxu0 %v6084
        %6487 = vmatpush.msra.mxu0 %v6068
        %6488 = vmatpush.msra.mxu0 %v6052
        %6489 = vmatpush.msra.mxu0 %v6036
        %6490 = vmatpush.msra.mxu0 %v6020
        %6491 = vmatmul.f32.gmra.mxu0 %v6125
        %v6492 = vpop.f32.mrf.mxu0
        %v6493 = vadd.f32 %v6122, %v6492
        %6494 = vdwg.mxu0
        %6495 = vst [vmem:[%s299] sm:$0xff] %v6193
        %6496 = vst [vmem:[%s299 + $0x8] sm:$0xff] %v6213
        %6497 = vst [vmem:[%s299 + $0x10] sm:$0xff] %v6233
        %6498 = vst [vmem:[%s299 + $0x18] sm:$0xff] %v6253
        %6499 = vst [vmem:[%s299 + $0x20] sm:$0xff] %v6273
        %6500 = vst [vmem:[%s299 + $0x28] sm:$0xff] %v6293
        %6501 = vst [vmem:[%s299 + $0x30] sm:$0xff] %v6313
        %6502 = vst [vmem:[%s299 + $0x38] sm:$0xff] %v6333
        %6503 = vst [vmem:[%s299 + $0x40] sm:$0xff] %v6353
        %6504 = vst [vmem:[%s299 + $0x48] sm:$0xff] %v6373
        %6505 = vst [vmem:[%s299 + $0x50] sm:$0xff] %v6393
        %6506 = vst [vmem:[%s299 + $0x58] sm:$0xff] %v6413
        %6507 = vst [vmem:[%s299 + $0x60] sm:$0xff] %v6433
        %6508 = vst [vmem:[%s299 + $0x68] sm:$0xff] %v6453
        %6509 = vst [vmem:[%s299 + $0x70] sm:$0xff] %v6473
        %6510 = vst [vmem:[%s299 + $0x78] sm:$0xff] %v6493
        %s6511 = smul.u32 16, %s21
        %p6512 = scmp.lt.s32.totalorder %s6511, 63
        %s6513 = scalar_select %p6512, %s6511, 63
        %s6514 = smul.addr %s6513, 8
        %s6515 = scalar_lea.vmem %s7, %s6514
        // Predicated region
        $region53: #{pinn_forward_t.1} parent=47 // pred_check
          %p6516 = pneg %p191
        $region54: #{pinn_forward_t.1} parent=47 // pred_check_branch
          %6518 = sbr.rel (%p6516) target = $region56
        $region55: #{pinn_forward_t.1} parent=47 // pred_region
          %s6519 = smul.u32 16, %s21
        $region56: #{pinn_forward_t.1} parent=47 // pred_fallthru
          _
      $region48: #{pinn_forward_t.1} parent=5 // pred_fallthru
        _
      %p6520 = scmp.le.s32.totalorder 2, %s16
      // Predicated region
      $region57: #{pinn_forward_t.1} parent=5 // pred_check
        %p6521 = pneg %p6520
      $region58: #{pinn_forward_t.1} parent=5 // pred_check_branch
        %6523 = sbr.rel (%p6521) target = $region60
      $region59: #{pinn_forward_t.1} parent=5 // pred_region
        %s6524 = ssub.s32 %s16, 2
        // Predicated region
        $region61: #{pinn_forward_t.1} parent=59 // pred_check
          %p6525 = pneg %p197
        $region62: #{pinn_forward_t.1} parent=59 // pred_check_branch
          %6527 = sbr.rel (%p6525) target = $region64
        $region63: #{pinn_forward_t.1} parent=59 // pred_region
          %s6528 = smul.u32 16, %s22
          %p6529 = scmp.lt.s32.totalorder %s6528, 63
          %s6530 = scalar_select %p6529, %s6528, 63
          %s6531 = smul.addr %s6530, 8
          %s6532 = scalar_lea.vmem %s7, %s6531
        $region64: #{pinn_forward_t.1} parent=59 // pred_fallthru
          _
      $region60: #{pinn_forward_t.1} parent=5 // pred_fallthru
        _
    $region6: #{pinn_forward_t.1} parent=1 // loop_footer
      %s20 = sadd.s32 1, %s16
    $region7: #{pinn_forward_t.1} parent=1 // loop_footer_branch
      %15 = sbr.rel target = $region3
    $region8: #{pinn_forward_t.1} parent=1 // loop_exit
      _
    %6533 = vsyncpa [#allocation3], 1
    %s6534 = scalar_lea.sflag [#allocation3], 1
    %6535 = vsyncpa %s6534, 1

</llo_original>
